<compile_context>
chip_gen: v6e
topology: v6e:2x2x1
jax: 0.10.0
libtpu: 0.0.40
codegen_flags: <defaults>
</compile_context>

<pallas_src>
import functools

import jax
import jax.numpy as jnp
import numpy as np
from jax.experimental import pallas as pl
from jax.experimental.pallas import tpu as pltpu

# bf16 operands -> 2-3x MXU throughput and half the operand VMEM footprint.
# Accumulation is always f32 (preferred_element_type).  Switch to jnp.float32
# for bit-closer-to-PyTorch results.
MATMUL_DTYPE = jnp.bfloat16


# ----------------------------------------------------------------------------
# Fused whole-network kernel (one batch tile of TB samples per grid step)
# ----------------------------------------------------------------------------
def _make_net_kernel(tb):
    def kernel(x_ref, t1_ref, b1_ref, t2_ref, b2_ref, w1p_ref, fb1_ref,
               w2_ref, fb2_ref, o_ref):
        f32 = jnp.float32

        # ---- conv1 (1->10,k5) + 2x2 maxpool + relu ------------------------
        # x_ref row layout: (a*12 + i)*TB + n  (a = pool-row parity, i = pooled
        # row, n = sample); each row is the 140-wide rows-im2col patch for conv
        # output row 2i+a.  t1[b] is the width-Toeplitz weight for pool-column
        # parity b, K-merged over the 5 kernel rows (K=140).  The 2x2 max-pool
        # is the elementwise max over the four (a,b) matmul results.
        pooled1 = None
        for a in range(2):
            lhs = x_ref[a * 12 * tb:(a + 1) * 12 * tb, :]          # (12*TB, 140)
            for b in range(2):
                c = jnp.dot(lhs, t1_ref[b], preferred_element_type=f32)
                pooled1 = c if pooled1 is None else jnp.maximum(pooled1, c)
        h1 = jnp.maximum(pooled1 + b1_ref[...], 0.0)               # (12*TB, 128)
        h1m = h1.astype(MATMUL_DTYPE)

        # ---- conv2 (10->20,k5) + dropout2d + 2x2 maxpool + relu -----------
        # TODO(synk): Dropout2d / F.dropout training-mode RNG masking not
        # implemented; inference (eval) semantics -> identity.
        # For kernel row di, the 8 needed h1 rows form a contiguous slab
        # (no concatenation).  Column-parity b handled by the Toeplitz t2.
        acc = [None, None]
        for di in range(5):
            slab = h1m[di * tb:(di + 8) * tb, :]                   # (8*TB, 128)
            for b in range(2):
                c = jnp.dot(slab, t2_ref[di, b], preferred_element_type=f32)
                acc[b] = c if acc[b] is None else acc[b] + c
        c2 = jnp.maximum(acc[0], acc[1])                           # (8*TB, 128)
        # Row-pool: rows are y2*TB + n, so a tile-aligned reshape splits
        # even/odd conv rows into two TB-row halves.
        c2 = c2.reshape(4, 2 * tb, 128)
        pooled2 = jnp.maximum(c2[:, :tb, :], c2[:, tb:, :]).reshape(4 * tb, 128)
        h2 = jnp.maximum(pooled2 + b2_ref[...], 0.0)               # (4*TB, 128)
        h2m = h2.astype(MATMUL_DTYPE)

        # ---- NCHW flatten + fc1 + relu + dropout(identity) + fc2 ----------
        # The NCHW flatten permutation is folded into w1p (host side), so the
        # flatten is a sum of 4 matmuls over the pooled-row blocks of h2.
        fc1 = None
        for i2 in range(4):
            c = jnp.dot(h2m[i2 * tb:(i2 + 1) * tb, :], w1p_ref[i2],
                        preferred_element_type=f32)
            fc1 = c if fc1 is None else fc1 + c
        fc1 = jnp.maximum(fc1 + fb1_ref[...], 0.0)                 # (TB, 128)

        logits = jnp.dot(fc1.astype(MATMUL_DTYPE), w2_ref[...],
                         preferred_element_type=f32) + fb2_ref[...]  # (TB, 128)

        # ---- log_softmax over the 10 real classes (cols >= 10 are padding) -
        col = jax.lax.broadcasted_iota(jnp.int32, (tb, 128), 1)
        lm = jnp.where(col < 10, logits, -1e30)
        mx = jnp.max(lm, axis=-1, keepdims=True)
        lse = jnp.log(jnp.sum(jnp.exp(lm - mx), axis=-1, keepdims=True)) + mx
        o_ref[...] = (logits - lse).astype(o_ref.dtype)

    return kernel


# ----------------------------------------------------------------------------
# One-time, weight-only preprocessing: fold im2col (width-Toeplitz), the pool
# column parity, the NCHW flatten permutation and 128-lane padding into the
# weight matrices.  Done once per model, host-side, with plain numpy loops.
# ----------------------------------------------------------------------------
def pack_params(params):
    f32 = np.float32
    w1 = np.asarray(params["conv1_w"], f32)[:, 0]        # (10,5,5)  [co,di,dj]
    w2c = np.asarray(params["conv2_w"], f32)             # (20,10,5,5)
    fc1_w = np.asarray(params["fc1_w"], f32)             # (50,320)
    fc2_w = np.asarray(params["fc2_w"], f32)             # (10,50)

    # t1[b, di*28 + w, j*10 + co] = w1[co, di, w - 2j - b]   (zero elsewhere)
    t1 = np.zeros((2, 140, 128), f32)
    for b in range(2):
        for di in range(5):
            for j in range(12):
                for dj in range(5):
                    w = 2 * j + b + dj                    # < 28 always
                    t1[b, di * 28 + w, j * 10:(j + 1) * 10] = w1[:, di, dj]

    # t2[di, b, x*10 + ci, j2*20 + c2] = w2c[c2, ci, di, x - 2*j2 - b]
    t2 = np.zeros((5, 2, 128, 128), f32)
    for di in range(5):
        for b in range(2):
            for j2 in range(4):
                for dj in range(5):
                    xw = 2 * j2 + b + dj                  # < 12 always
                    t2[di, b, xw * 10:(xw + 1) * 10,
                       j2 * 20:(j2 + 1) * 20] = w2c[:, :, di, dj].T

    # fc1 with the PyTorch NCHW flatten folded in, split per pooled row i2:
    # w1p[i2, j2*20 + c2, u] = fc1_w[u, c2*16 + i2*4 + j2]
    w1p = np.zeros((4, 128, 128), f32)
    for i2 in range(4):
        for j2 in range(4):
            for c2 in range(20):
                w1p[i2, j2 * 20 + c2, :50] = fc1_w[:, c2 * 16 + i2 * 4 + j2]

    w2m = np.zeros((128, 128), f32)
    w2m[:50, :10] = fc2_w.T

    b1 = np.zeros((1, 128), f32)
    b1[0, :120] = np.tile(np.asarray(params["conv1_b"], f32), 12)
    b2 = np.zeros((1, 128), f32)
    b2[0, :80] = np.tile(np.asarray(params["conv2_b"], f32), 4)
    fb1 = np.zeros((1, 128), f32)
    fb1[0, :50] = np.asarray(params["fc1_b"], f32)
    fb2 = np.zeros((1, 128), f32)
    fb2[0, :10] = np.asarray(params["fc2_b"], f32)

    return {
        "t1": jnp.asarray(t1, MATMUL_DTYPE),
        "t2": jnp.asarray(t2, MATMUL_DTYPE),
        "w1p": jnp.asarray(w1p, MATMUL_DTYPE),
        "w2": jnp.asarray(w2m, MATMUL_DTYPE),
        "b1": jnp.asarray(b1),
        "b2": jnp.asarray(b2),
        "fb1": jnp.asarray(fb1),
        "fb2": jnp.asarray(fb2),
    }


# ----------------------------------------------------------------------------
# Forward pass: host rows-im2col + batch padding, then ONE fused pallas_call.
# ----------------------------------------------------------------------------
@functools.partial(jax.jit, static_argnames=("tile_batch",))
def net_forward(x_nchw, packed, *, tile_batch=256):
    n = x_nchw.shape[0]
    assert x_nchw.shape[1:] == (1, 28, 28), x_nchw.shape

    tb = max(16, (int(tile_batch) // 16) * 16)            # TB: multiple of 16
    tb = min(tb, ((n + 15) // 16) * 16)                   # don't over-pad tiny batches
    n_pad = ((n + tb - 1) // tb) * tb
    n_tiles = n_pad // tb

    x = x_nchw.astype(jnp.float32).reshape(n, 28, 28)
    x = jnp.pad(x, ((0, n_pad - n), (0, 0), (0, 0)))

    # Rows-only im2col (host side): for conv output row y = 2i + a, gather the
    # 5 input rows y..y+4 and flatten to a 140-vector.  Rows are laid out as
    # (tile, a, i, sample) so each pool-row-parity slab is contiguous in VMEM.
    rows = (jnp.arange(2)[:, None, None] + 2 * jnp.arange(12)[None, :, None]
            + jnp.arange(5)[None, None, :])               # (2, 12, 5) = 2i+a+di
    p = x[:, rows, :]                                     # (n_pad, 2, 12, 5, 28)
    p = p.reshape(n_pad, 2, 12, 140)
    p = p.reshape(n_tiles, tb, 2, 12, 140).transpose(0, 2, 3, 1, 4)
    x2d = p.reshape(n_tiles * 24 * tb, 140).astype(MATMUL_DTYPE)

    out = pl.pallas_call(
        _make_net_kernel(tb),
        out_shape=jax.ShapeDtypeStruct((n_pad, 128), jnp.float32),
        grid=(n_tiles,),
        in_specs=[
            pl.BlockSpec((24 * tb, 140), lambda i: (i, 0)),      # im2col input
            pl.BlockSpec((2, 140, 128), lambda i: (0, 0, 0)),    # t1
            pl.BlockSpec((1, 128), lambda i: (0, 0)),            # b1
            pl.BlockSpec((5, 2, 128, 128), lambda i: (0, 0, 0, 0)),  # t2
            pl.BlockSpec((1, 128), lambda i: (0, 0)),            # b2
            pl.BlockSpec((4, 128, 128), lambda i: (0, 0, 0)),    # w1p
            pl.BlockSpec((1, 128), lambda i: (0, 0)),            # fb1
            pl.BlockSpec((128, 128), lambda i: (0, 0)),          # w2
            pl.BlockSpec((1, 128), lambda i: (0, 0)),            # fb2
        ],
        out_specs=pl.BlockSpec((tb, 128), lambda i: (i, 0)),
        compiler_params=pltpu.CompilerParams(
            dimension_semantics=("parallel",),
            # ~15-20 MiB live at TB=256; 48 MiB gives headroom while staying
            # under v7x's 64 MiB physical VMEM (v5e/v6e have 128 MiB).
            vmem_limit_bytes=48 * 1024 * 1024),
    )(x2d, packed["t1"], packed["b1"], packed["t2"], packed["b2"],
      packed["w1p"], packed["fb1"], packed["w2"], packed["fb2"])
    return out[:n, :10]


# ----------------------------------------------------------------------------
# Pure-JAX (XLA) reference of the PyTorch forward pass, for validation.
# ----------------------------------------------------------------------------
@jax.jit
def net_reference(x_nchw, params):
    x = x_nchw.astype(jnp.float32)
    dn = ("NCHW", "OIHW", "NCHW")
    c1 = jax.lax.conv_general_dilated(x, params["conv1_w"].astype(jnp.float32),
                                      (1, 1), "VALID", dimension_numbers=dn)
    c1 = c1 + params["conv1_b"].reshape(1, -1, 1, 1)
    p1 = jax.lax.reduce_window(c1, -jnp.inf, jax.lax.max,
                               (1, 1, 2, 2), (1, 1, 2, 2), "VALID")
    h1 = jnp.maximum(p1, 0.0)
    c2 = jax.lax.conv_general_dilated(h1, params["conv2_w"].astype(jnp.float32),
                                      (1, 1), "VALID", dimension_numbers=dn)
    c2 = c2 + params["conv2_b"].reshape(1, -1, 1, 1)
    p2 = jax.lax.reduce_window(c2, -jnp.inf, jax.lax.max,
                               (1, 1, 2, 2), (1, 1, 2, 2), "VALID")
    h2 = jnp.maximum(p2, 0.0)
    flat = h2.reshape(h2.shape[0], 320)
    f1 = jnp.maximum(flat @ params["fc1_w"].T + params["fc1_b"], 0.0)
    logits = f1 @ params["fc2_w"].T + params["fc2_b"]
    return jax.nn.log_softmax(logits, axis=-1)


# ----------------------------------------------------------------------------
# Deterministic parameter init (PyTorch-like uniform(-1/sqrt(fan_in), ...))
# ----------------------------------------------------------------------------
def init_params(key):
    ks = jax.random.split(key, 8)

    def u(k, shape, fan_in):
        bound = 1.0 / (fan_in ** 0.5)
        return jax.random.uniform(k, shape, jnp.float32, -bound, bound)

    return {
        "conv1_w": u(ks[0], (10, 1, 5, 5), 25),
        "conv1_b": u(ks[1], (10,), 25),
        "conv2_w": u(ks[2], (20, 10, 5, 5), 250),
        "conv2_b": u(ks[3], (20,), 250),
        "fc1_w":   u(ks[4], (50, 320), 320),
        "fc1_b":   u(ks[5], (50,), 320),
        "fc2_w":   u(ks[6], (10, 50), 50),
        "fc2_b":   u(ks[7], (10,), 50),
    }


if __name__ == "__main__":
    root = jax.random.PRNGKey(0)
    pkey, xkey = jax.random.split(root)
    params = init_params(pkey)
    packed = pack_params(params)   # weight-only preprocessing, done once

    # Input shape forced by the module's arithmetic (view(-1, 320) after two
    # conv+pool stages implies 28x28 single-channel input).  Batch = 2.
    x = jax.random.normal(xkey, (2, 1, 28, 28), dtype=jnp.float32)

    out = jax.block_until_ready(net_forward(x, packed))
    assert out.shape == (2, 10), out.shape
    # log_softmax rows must exponentiate-sum to 1
    assert bool(jnp.allclose(jnp.exp(out).sum(axis=-1), 1.0, atol=1e-3))

    # Validate against the pure-JAX reference.  bf16 matmul operands with f32
    # accumulation deviate from the f32 reference by ~1e-3..1e-2 on log-probs.
    ref = jax.block_until_ready(net_reference(x, params))
    max_err = float(jnp.max(jnp.abs(out - ref)))
    tol = 5e-2 if MATMUL_DTYPE == jnp.bfloat16 else 1e-4
    assert max_err < tol, f"max |kernel - reference| = {max_err} >= {tol}"

    print("KERNEL_OK")
</pallas_src>

<mosaic_0001>
module attributes {stable_mosaic.version = 11 : i64} {
  func.func @kernel(%arg0: i32, %arg1: memref<384x140xbf16, #tpu.memory_space<vmem>>, %arg2: memref<2x140x128xbf16, #tpu.memory_space<vmem>>, %arg3: memref<1x128xf32, #tpu.memory_space<vmem>>, %arg4: memref<5x2x128x128xbf16, #tpu.memory_space<vmem>>, %arg5: memref<1x128xf32, #tpu.memory_space<vmem>>, %arg6: memref<4x128x128xbf16, #tpu.memory_space<vmem>>, %arg7: memref<1x128xf32, #tpu.memory_space<vmem>>, %arg8: memref<128x128xbf16, #tpu.memory_space<vmem>>, %arg9: memref<1x128xf32, #tpu.memory_space<vmem>>, %arg10: memref<16x128xf32, #tpu.memory_space<vmem>>) attributes {dimension_semantics = [#tpu.dimension_semantics<parallel>], iteration_bounds = array<i64: 1>, scalar_prefetch = 0 : i64, scratch_operands = 0 : i64, tpu.core_type = #tpu.core_type<tc>, window_params = [{transform_indices = @transform_0, window_bounds = array<i64: 384, 140>}, {pipeline_mode = #tpu.pipeline_mode<synchronous>, transform_indices = @transform_1, window_bounds = array<i64: 2, 140, 128>}, {pipeline_mode = #tpu.pipeline_mode<synchronous>, transform_indices = @transform_2, window_bounds = array<i64: 1, 128>}, {pipeline_mode = #tpu.pipeline_mode<synchronous>, transform_indices = @transform_3, window_bounds = array<i64: 5, 2, 128, 128>}, {pipeline_mode = #tpu.pipeline_mode<synchronous>, transform_indices = @transform_4, window_bounds = array<i64: 1, 128>}, {pipeline_mode = #tpu.pipeline_mode<synchronous>, transform_indices = @transform_5, window_bounds = array<i64: 4, 128, 128>}, {pipeline_mode = #tpu.pipeline_mode<synchronous>, transform_indices = @transform_6, window_bounds = array<i64: 1, 128>}, {pipeline_mode = #tpu.pipeline_mode<synchronous>, transform_indices = @transform_7, window_bounds = array<i64: 128, 128>}, {pipeline_mode = #tpu.pipeline_mode<synchronous>, transform_indices = @transform_8, window_bounds = array<i64: 1, 128>}, {transform_indices = @transform_9, window_bounds = array<i64: 16, 128>}]} {
    %c0 = arith.constant 0 : index
    %c0_0 = arith.constant 0 : index
    %0 = vector.load %arg1[%c0, %c0_0] : memref<384x140xbf16, #tpu.memory_space<vmem>>, vector<192x140xbf16>
    %c0_1 = arith.constant 0 : index
    %c0_2 = arith.constant 0 : index
    %c0_3 = arith.constant 0 : index
    %1 = vector.load %arg2[%c0_1, %c0_2, %c0_3] : memref<2x140x128xbf16, #tpu.memory_space<vmem>>, vector<1x140x128xbf16>
    %2 = vector.shape_cast %1 : vector<1x140x128xbf16> to vector<140x128xbf16>
    %cst = arith.constant dense<0.000000e+00> : vector<192x128xf32>
    %3 = tpu.matmul %0, %2, %cst {dimension_numbers = #tpu.dot_dimension_numbers<[1], [0], [0], [1], [0, 0, 1, 1], [], []>} : vector<192x140xbf16>, vector<140x128xbf16>, vector<192x128xf32> -> vector<192x128xf32>
    %c1 = arith.constant 1 : index
    %c0_4 = arith.constant 0 : index
    %c0_5 = arith.constant 0 : index
    %4 = vector.load %arg2[%c1, %c0_4, %c0_5] : memref<2x140x128xbf16, #tpu.memory_space<vmem>>, vector<1x140x128xbf16>
    %5 = vector.shape_cast %4 : vector<1x140x128xbf16> to vector<140x128xbf16>
    %cst_6 = arith.constant dense<0.000000e+00> : vector<192x128xf32>
    %6 = tpu.matmul %0, %5, %cst_6 {dimension_numbers = #tpu.dot_dimension_numbers<[1], [0], [0], [1], [0, 0, 1, 1], [], []>} : vector<192x140xbf16>, vector<140x128xbf16>, vector<192x128xf32> -> vector<192x128xf32>
    %7 = arith.maximumf %3, %6 : vector<192x128xf32>
    %c192 = arith.constant 192 : index
    %c0_7 = arith.constant 0 : index
    %8 = vector.load %arg1[%c192, %c0_7] : memref<384x140xbf16, #tpu.memory_space<vmem>>, vector<192x140xbf16>
    %c0_8 = arith.constant 0 : index
    %c0_9 = arith.constant 0 : index
    %c0_10 = arith.constant 0 : index
    %9 = vector.load %arg2[%c0_8, %c0_9, %c0_10] : memref<2x140x128xbf16, #tpu.memory_space<vmem>>, vector<1x140x128xbf16>
    %10 = vector.shape_cast %9 : vector<1x140x128xbf16> to vector<140x128xbf16>
    %cst_11 = arith.constant dense<0.000000e+00> : vector<192x128xf32>
    %11 = tpu.matmul %8, %10, %cst_11 {dimension_numbers = #tpu.dot_dimension_numbers<[1], [0], [0], [1], [0, 0, 1, 1], [], []>} : vector<192x140xbf16>, vector<140x128xbf16>, vector<192x128xf32> -> vector<192x128xf32>
    %12 = arith.maximumf %7, %11 : vector<192x128xf32>
    %c1_12 = arith.constant 1 : index
    %c0_13 = arith.constant 0 : index
    %c0_14 = arith.constant 0 : index
    %13 = vector.load %arg2[%c1_12, %c0_13, %c0_14] : memref<2x140x128xbf16, #tpu.memory_space<vmem>>, vector<1x140x128xbf16>
    %14 = vector.shape_cast %13 : vector<1x140x128xbf16> to vector<140x128xbf16>
    %cst_15 = arith.constant dense<0.000000e+00> : vector<192x128xf32>
    %15 = tpu.matmul %8, %14, %cst_15 {dimension_numbers = #tpu.dot_dimension_numbers<[1], [0], [0], [1], [0, 0, 1, 1], [], []>} : vector<192x140xbf16>, vector<140x128xbf16>, vector<192x128xf32> -> vector<192x128xf32>
    %16 = arith.maximumf %12, %15 : vector<192x128xf32>
    %c0_16 = arith.constant 0 : index
    %c0_17 = arith.constant 0 : index
    %17 = vector.load %arg3[%c0_16, %c0_17] : memref<1x128xf32, #tpu.memory_space<vmem>>, vector<1x128xf32>
    %18 = vector.broadcast %17 : vector<1x128xf32> to vector<192x128xf32>
    %19 = arith.addf %16, %18 : vector<192x128xf32>
    %cst_18 = arith.constant 0.000000e+00 : f32
    %20 = vector.broadcast %cst_18 : f32 to vector<192x128xf32>
    %21 = arith.maximumf %19, %20 : vector<192x128xf32>
    %22 = arith.truncf %21 : vector<192x128xf32> to vector<192x128xbf16>
    %23 = vector.extract_strided_slice %22 {offsets = [0, 0], sizes = [128, 128], strides = [1, 1]} : vector<192x128xbf16> to vector<128x128xbf16>
    %c0_19 = arith.constant 0 : index
    %c0_20 = arith.constant 0 : index
    %c0_21 = arith.constant 0 : index
    %c0_22 = arith.constant 0 : index
    %24 = vector.load %arg4[%c0_19, %c0_20, %c0_21, %c0_22] : memref<5x2x128x128xbf16, #tpu.memory_space<vmem>>, vector<1x1x128x128xbf16>
    %25 = vector.shape_cast %24 : vector<1x1x128x128xbf16> to vector<128x128xbf16>
    %cst_23 = arith.constant dense<0.000000e+00> : vector<128x128xf32>
    %26 = tpu.matmul %23, %25, %cst_23 {dimension_numbers = #tpu.dot_dimension_numbers<[1], [0], [0], [1], [0, 0, 1, 1], [], []>} : vector<128x128xbf16>, vector<128x128xbf16>, vector<128x128xf32> -> vector<128x128xf32>
    %c0_24 = arith.constant 0 : index
    %c1_25 = arith.constant 1 : index
    %c0_26 = arith.constant 0 : index
    %c0_27 = arith.constant 0 : index
    %27 = vector.load %arg4[%c0_24, %c1_25, %c0_26, %c0_27] : memref<5x2x128x128xbf16, #tpu.memory_space<vmem>>, vector<1x1x128x128xbf16>
    %28 = vector.shape_cast %27 : vector<1x1x128x128xbf16> to vector<128x128xbf16>
    %cst_28 = arith.constant dense<0.000000e+00> : vector<128x128xf32>
    %29 = tpu.matmul %23, %28, %cst_28 {dimension_numbers = #tpu.dot_dimension_numbers<[1], [0], [0], [1], [0, 0, 1, 1], [], []>} : vector<128x128xbf16>, vector<128x128xbf16>, vector<128x128xf32> -> vector<128x128xf32>
    %30 = vector.extract_strided_slice %22 {offsets = [16, 0], sizes = [128, 128], strides = [1, 1]} : vector<192x128xbf16> to vector<128x128xbf16>
    %c1_29 = arith.constant 1 : index
    %c0_30 = arith.constant 0 : index
    %c0_31 = arith.constant 0 : index
    %c0_32 = arith.constant 0 : index
    %31 = vector.load %arg4[%c1_29, %c0_30, %c0_31, %c0_32] : memref<5x2x128x128xbf16, #tpu.memory_space<vmem>>, vector<1x1x128x128xbf16>
    %32 = vector.shape_cast %31 : vector<1x1x128x128xbf16> to vector<128x128xbf16>
    %cst_33 = arith.constant dense<0.000000e+00> : vector<128x128xf32>
    %33 = tpu.matmul %30, %32, %cst_33 {dimension_numbers = #tpu.dot_dimension_numbers<[1], [0], [0], [1], [0, 0, 1, 1], [], []>} : vector<128x128xbf16>, vector<128x128xbf16>, vector<128x128xf32> -> vector<128x128xf32>
    %34 = arith.addf %26, %33 : vector<128x128xf32>
    %c1_34 = arith.constant 1 : index
    %c1_35 = arith.constant 1 : index
    %c0_36 = arith.constant 0 : index
    %c0_37 = arith.constant 0 : index
    %35 = vector.load %arg4[%c1_34, %c1_35, %c0_36, %c0_37] : memref<5x2x128x128xbf16, #tpu.memory_space<vmem>>, vector<1x1x128x128xbf16>
    %36 = vector.shape_cast %35 : vector<1x1x128x128xbf16> to vector<128x128xbf16>
    %cst_38 = arith.constant dense<0.000000e+00> : vector<128x128xf32>
    %37 = tpu.matmul %30, %36, %cst_38 {dimension_numbers = #tpu.dot_dimension_numbers<[1], [0], [0], [1], [0, 0, 1, 1], [], []>} : vector<128x128xbf16>, vector<128x128xbf16>, vector<128x128xf32> -> vector<128x128xf32>
    %38 = arith.addf %29, %37 : vector<128x128xf32>
    %39 = vector.extract_strided_slice %22 {offsets = [32, 0], sizes = [128, 128], strides = [1, 1]} : vector<192x128xbf16> to vector<128x128xbf16>
    %c2 = arith.constant 2 : index
    %c0_39 = arith.constant 0 : index
    %c0_40 = arith.constant 0 : index
    %c0_41 = arith.constant 0 : index
    %40 = vector.load %arg4[%c2, %c0_39, %c0_40, %c0_41] : memref<5x2x128x128xbf16, #tpu.memory_space<vmem>>, vector<1x1x128x128xbf16>
    %41 = vector.shape_cast %40 : vector<1x1x128x128xbf16> to vector<128x128xbf16>
    %cst_42 = arith.constant dense<0.000000e+00> : vector<128x128xf32>
    %42 = tpu.matmul %39, %41, %cst_42 {dimension_numbers = #tpu.dot_dimension_numbers<[1], [0], [0], [1], [0, 0, 1, 1], [], []>} : vector<128x128xbf16>, vector<128x128xbf16>, vector<128x128xf32> -> vector<128x128xf32>
    %43 = arith.addf %34, %42 : vector<128x128xf32>
    %c2_43 = arith.constant 2 : index
    %c1_44 = arith.constant 1 : index
    %c0_45 = arith.constant 0 : index
    %c0_46 = arith.constant 0 : index
    %44 = vector.load %arg4[%c2_43, %c1_44, %c0_45, %c0_46] : memref<5x2x128x128xbf16, #tpu.memory_space<vmem>>, vector<1x1x128x128xbf16>
    %45 = vector.shape_cast %44 : vector<1x1x128x128xbf16> to vector<128x128xbf16>
    %cst_47 = arith.constant dense<0.000000e+00> : vector<128x128xf32>
    %46 = tpu.matmul %39, %45, %cst_47 {dimension_numbers = #tpu.dot_dimension_numbers<[1], [0], [0], [1], [0, 0, 1, 1], [], []>} : vector<128x128xbf16>, vector<128x128xbf16>, vector<128x128xf32> -> vector<128x128xf32>
    %47 = arith.addf %38, %46 : vector<128x128xf32>
    %48 = vector.extract_strided_slice %22 {offsets = [48, 0], sizes = [128, 128], strides = [1, 1]} : vector<192x128xbf16> to vector<128x128xbf16>
    %c3 = arith.constant 3 : index
    %c0_48 = arith.constant 0 : index
    %c0_49 = arith.constant 0 : index
    %c0_50 = arith.constant 0 : index
    %49 = vector.load %arg4[%c3, %c0_48, %c0_49, %c0_50] : memref<5x2x128x128xbf16, #tpu.memory_space<vmem>>, vector<1x1x128x128xbf16>
    %50 = vector.shape_cast %49 : vector<1x1x128x128xbf16> to vector<128x128xbf16>
    %cst_51 = arith.constant dense<0.000000e+00> : vector<128x128xf32>
    %51 = tpu.matmul %48, %50, %cst_51 {dimension_numbers = #tpu.dot_dimension_numbers<[1], [0], [0], [1], [0, 0, 1, 1], [], []>} : vector<128x128xbf16>, vector<128x128xbf16>, vector<128x128xf32> -> vector<128x128xf32>
    %52 = arith.addf %43, %51 : vector<128x128xf32>
    %c3_52 = arith.constant 3 : index
    %c1_53 = arith.constant 1 : index
    %c0_54 = arith.constant 0 : index
    %c0_55 = arith.constant 0 : index
    %53 = vector.load %arg4[%c3_52, %c1_53, %c0_54, %c0_55] : memref<5x2x128x128xbf16, #tpu.memory_space<vmem>>, vector<1x1x128x128xbf16>
    %54 = vector.shape_cast %53 : vector<1x1x128x128xbf16> to vector<128x128xbf16>
    %cst_56 = arith.constant dense<0.000000e+00> : vector<128x128xf32>
    %55 = tpu.matmul %48, %54, %cst_56 {dimension_numbers = #tpu.dot_dimension_numbers<[1], [0], [0], [1], [0, 0, 1, 1], [], []>} : vector<128x128xbf16>, vector<128x128xbf16>, vector<128x128xf32> -> vector<128x128xf32>
    %56 = arith.addf %47, %55 : vector<128x128xf32>
    %57 = vector.extract_strided_slice %22 {offsets = [64, 0], sizes = [128, 128], strides = [1, 1]} : vector<192x128xbf16> to vector<128x128xbf16>
    %c4 = arith.constant 4 : index
    %c0_57 = arith.constant 0 : index
    %c0_58 = arith.constant 0 : index
    %c0_59 = arith.constant 0 : index
    %58 = vector.load %arg4[%c4, %c0_57, %c0_58, %c0_59] : memref<5x2x128x128xbf16, #tpu.memory_space<vmem>>, vector<1x1x128x128xbf16>
    %59 = vector.shape_cast %58 : vector<1x1x128x128xbf16> to vector<128x128xbf16>
    %cst_60 = arith.constant dense<0.000000e+00> : vector<128x128xf32>
    %60 = tpu.matmul %57, %59, %cst_60 {dimension_numbers = #tpu.dot_dimension_numbers<[1], [0], [0], [1], [0, 0, 1, 1], [], []>} : vector<128x128xbf16>, vector<128x128xbf16>, vector<128x128xf32> -> vector<128x128xf32>
    %61 = arith.addf %52, %60 : vector<128x128xf32>
    %c4_61 = arith.constant 4 : index
    %c1_62 = arith.constant 1 : index
    %c0_63 = arith.constant 0 : index
    %c0_64 = arith.constant 0 : index
    %62 = vector.load %arg4[%c4_61, %c1_62, %c0_63, %c0_64] : memref<5x2x128x128xbf16, #tpu.memory_space<vmem>>, vector<1x1x128x128xbf16>
    %63 = vector.shape_cast %62 : vector<1x1x128x128xbf16> to vector<128x128xbf16>
    %cst_65 = arith.constant dense<0.000000e+00> : vector<128x128xf32>
    %64 = tpu.matmul %57, %63, %cst_65 {dimension_numbers = #tpu.dot_dimension_numbers<[1], [0], [0], [1], [0, 0, 1, 1], [], []>} : vector<128x128xbf16>, vector<128x128xbf16>, vector<128x128xf32> -> vector<128x128xf32>
    %65 = arith.addf %56, %64 : vector<128x128xf32>
    %66 = arith.maximumf %61, %65 : vector<128x128xf32>
    %67 = vector.shape_cast %66 : vector<128x128xf32> to vector<4x32x128xf32>
    %68 = vector.extract_strided_slice %67 {offsets = [0, 0, 0], sizes = [4, 16, 128], strides = [1, 1, 1]} : vector<4x32x128xf32> to vector<4x16x128xf32>
    %69 = vector.extract_strided_slice %67 {offsets = [0, 16, 0], sizes = [4, 16, 128], strides = [1, 1, 1]} : vector<4x32x128xf32> to vector<4x16x128xf32>
    %70 = arith.maximumf %68, %69 : vector<4x16x128xf32>
    %71 = vector.shape_cast %70 : vector<4x16x128xf32> to vector<64x128xf32>
    %c0_66 = arith.constant 0 : index
    %c0_67 = arith.constant 0 : index
    %72 = vector.load %arg5[%c0_66, %c0_67] : memref<1x128xf32, #tpu.memory_space<vmem>>, vector<1x128xf32>
    %73 = vector.broadcast %72 : vector<1x128xf32> to vector<64x128xf32>
    %74 = arith.addf %71, %73 : vector<64x128xf32>
    %cst_68 = arith.constant 0.000000e+00 : f32
    %75 = vector.broadcast %cst_68 : f32 to vector<64x128xf32>
    %76 = arith.maximumf %74, %75 : vector<64x128xf32>
    %77 = arith.truncf %76 : vector<64x128xf32> to vector<64x128xbf16>
    %78 = vector.extract_strided_slice %77 {offsets = [0, 0], sizes = [16, 128], strides = [1, 1]} : vector<64x128xbf16> to vector<16x128xbf16>
    %c0_69 = arith.constant 0 : index
    %c0_70 = arith.constant 0 : index
    %c0_71 = arith.constant 0 : index
    %79 = vector.load %arg6[%c0_69, %c0_70, %c0_71] : memref<4x128x128xbf16, #tpu.memory_space<vmem>>, vector<1x128x128xbf16>
    %80 = vector.shape_cast %79 : vector<1x128x128xbf16> to vector<128x128xbf16>
    %cst_72 = arith.constant dense<0.000000e+00> : vector<16x128xf32>
    %81 = tpu.matmul %78, %80, %cst_72 {dimension_numbers = #tpu.dot_dimension_numbers<[1], [0], [0], [1], [0, 0, 1, 1], [], []>} : vector<16x128xbf16>, vector<128x128xbf16>, vector<16x128xf32> -> vector<16x128xf32>
    %82 = vector.extract_strided_slice %77 {offsets = [16, 0], sizes = [16, 128], strides = [1, 1]} : vector<64x128xbf16> to vector<16x128xbf16>
    %c1_73 = arith.constant 1 : index
    %c0_74 = arith.constant 0 : index
    %c0_75 = arith.constant 0 : index
    %83 = vector.load %arg6[%c1_73, %c0_74, %c0_75] : memref<4x128x128xbf16, #tpu.memory_space<vmem>>, vector<1x128x128xbf16>
    %84 = vector.shape_cast %83 : vector<1x128x128xbf16> to vector<128x128xbf16>
    %cst_76 = arith.constant dense<0.000000e+00> : vector<16x128xf32>
    %85 = tpu.matmul %82, %84, %cst_76 {dimension_numbers = #tpu.dot_dimension_numbers<[1], [0], [0], [1], [0, 0, 1, 1], [], []>} : vector<16x128xbf16>, vector<128x128xbf16>, vector<16x128xf32> -> vector<16x128xf32>
    %86 = arith.addf %81, %85 : vector<16x128xf32>
    %87 = vector.extract_strided_slice %77 {offsets = [32, 0], sizes = [16, 128], strides = [1, 1]} : vector<64x128xbf16> to vector<16x128xbf16>
    %c2_77 = arith.constant 2 : index
    %c0_78 = arith.constant 0 : index
    %c0_79 = arith.constant 0 : index
    %88 = vector.load %arg6[%c2_77, %c0_78, %c0_79] : memref<4x128x128xbf16, #tpu.memory_space<vmem>>, vector<1x128x128xbf16>
    %89 = vector.shape_cast %88 : vector<1x128x128xbf16> to vector<128x128xbf16>
    %cst_80 = arith.constant dense<0.000000e+00> : vector<16x128xf32>
    %90 = tpu.matmul %87, %89, %cst_80 {dimension_numbers = #tpu.dot_dimension_numbers<[1], [0], [0], [1], [0, 0, 1, 1], [], []>} : vector<16x128xbf16>, vector<128x128xbf16>, vector<16x128xf32> -> vector<16x128xf32>
    %91 = arith.addf %86, %90 : vector<16x128xf32>
    %92 = vector.extract_strided_slice %77 {offsets = [48, 0], sizes = [16, 128], strides = [1, 1]} : vector<64x128xbf16> to vector<16x128xbf16>
    %c3_81 = arith.constant 3 : index
    %c0_82 = arith.constant 0 : index
    %c0_83 = arith.constant 0 : index
    %93 = vector.load %arg6[%c3_81, %c0_82, %c0_83] : memref<4x128x128xbf16, #tpu.memory_space<vmem>>, vector<1x128x128xbf16>
    %94 = vector.shape_cast %93 : vector<1x128x128xbf16> to vector<128x128xbf16>
    %cst_84 = arith.constant dense<0.000000e+00> : vector<16x128xf32>
    %95 = tpu.matmul %92, %94, %cst_84 {dimension_numbers = #tpu.dot_dimension_numbers<[1], [0], [0], [1], [0, 0, 1, 1], [], []>} : vector<16x128xbf16>, vector<128x128xbf16>, vector<16x128xf32> -> vector<16x128xf32>
    %96 = arith.addf %91, %95 : vector<16x128xf32>
    %c0_85 = arith.constant 0 : index
    %c0_86 = arith.constant 0 : index
    %97 = vector.load %arg7[%c0_85, %c0_86] : memref<1x128xf32, #tpu.memory_space<vmem>>, vector<1x128xf32>
    %98 = vector.broadcast %97 : vector<1x128xf32> to vector<16x128xf32>
    %99 = arith.addf %96, %98 : vector<16x128xf32>
    %cst_87 = arith.constant 0.000000e+00 : f32
    %100 = vector.broadcast %cst_87 : f32 to vector<16x128xf32>
    %101 = arith.maximumf %99, %100 : vector<16x128xf32>
    %102 = arith.truncf %101 : vector<16x128xf32> to vector<16x128xbf16>
    %c0_88 = arith.constant 0 : index
    %c0_89 = arith.constant 0 : index
    %103 = vector.load %arg8[%c0_88, %c0_89] : memref<128x128xbf16, #tpu.memory_space<vmem>>, vector<128x128xbf16>
    %cst_90 = arith.constant dense<0.000000e+00> : vector<16x128xf32>
    %104 = tpu.matmul %102, %103, %cst_90 {dimension_numbers = #tpu.dot_dimension_numbers<[1], [0], [0], [1], [0, 0, 1, 1], [], []>} : vector<16x128xbf16>, vector<128x128xbf16>, vector<16x128xf32> -> vector<16x128xf32>
    %c0_91 = arith.constant 0 : index
    %c0_92 = arith.constant 0 : index
    %105 = vector.load %arg9[%c0_91, %c0_92] : memref<1x128xf32, #tpu.memory_space<vmem>>, vector<1x128xf32>
    %106 = vector.broadcast %105 : vector<1x128xf32> to vector<16x128xf32>
    %107 = arith.addf %104, %106 : vector<16x128xf32>
    %108 = tpu.iota {dimensions = array<i32: 1>} : vector<16x128xi32>
    %c10_i32 = arith.constant 10 : i32
    %109 = vector.broadcast %c10_i32 : i32 to vector<16x128xi32>
    %110 = arith.cmpi slt, %108, %109 : vector<16x128xi32>
    %cst_93 = arith.constant -1.000000e+30 : f32
    %111 = vector.broadcast %cst_93 : f32 to vector<16x128xf32>
    %112 = arith.select %110, %107, %111 : vector<16x128xi1>, vector<16x128xf32>
    %cst_94 = arith.constant dense<0xFF800000> : vector<16xf32>
    %113 = vector.multi_reduction <maximumf>, %112, %cst_94 [1] : vector<16x128xf32> to vector<16xf32>
    %114 = vector.shape_cast %113 : vector<16xf32> to vector<16x1xf32>
    %115 = vector.broadcast %114 : vector<16x1xf32> to vector<16x128xf32>
    %116 = arith.subf %112, %115 : vector<16x128xf32>
    %117 = math.exp %116 : vector<16x128xf32>
    %cst_95 = arith.constant dense<0.000000e+00> : vector<16xf32>
    %118 = vector.multi_reduction <add>, %117, %cst_95 [1] : vector<16x128xf32> to vector<16xf32>
    %119 = vector.shape_cast %118 : vector<16xf32> to vector<16x1xf32>
    %120 = math.log %119 : vector<16x1xf32>
    %121 = arith.addf %120, %114 : vector<16x1xf32>
    %122 = vector.broadcast %121 : vector<16x1xf32> to vector<16x128xf32>
    %123 = arith.subf %107, %122 : vector<16x128xf32>
    %c0_96 = arith.constant 0 : index
    %c0_97 = arith.constant 0 : index
    %124 = vector.load %arg10[%c0_96, %c0_97] : memref<16x128xf32, #tpu.memory_space<vmem>>, vector<16x128xf32>
    tpu.vector_store %arg10[%c0_96, %c0_97], %123 {strides = array<i32>} : memref<16x128xf32, #tpu.memory_space<vmem>>, vector<16x128xf32>,
    return
  }
  func.func @transform_0(%arg0: i32) -> (i32, i32) {
    %c0_i32 = arith.constant 0 : i32
    %c0_i32_0 = arith.constant 0 : i32
    return %arg0, %c0_i32 : i32, i32
  }
  func.func @transform_1(%arg0: i32) -> (i32, i32, i32) {
    %c0_i32 = arith.constant 0 : i32
    %c0_i32_0 = arith.constant 0 : i32
    %c0_i32_1 = arith.constant 0 : i32
    %c0_i32_2 = arith.constant 0 : i32
    return %c0_i32, %c0_i32_0, %c0_i32_1 : i32, i32, i32
  }
  func.func @transform_2(%arg0: i32) -> (i32, i32) {
    %c0_i32 = arith.constant 0 : i32
    %c0_i32_0 = arith.constant 0 : i32
    %c0_i32_1 = arith.constant 0 : i32
    return %c0_i32, %c0_i32_0 : i32, i32
  }
  func.func @transform_3(%arg0: i32) -> (i32, i32, i32, i32) {
    %c0_i32 = arith.constant 0 : i32
    %c0_i32_0 = arith.constant 0 : i32
    %c0_i32_1 = arith.constant 0 : i32
    %c0_i32_2 = arith.constant 0 : i32
    %c0_i32_3 = arith.constant 0 : i32
    return %c0_i32, %c0_i32_0, %c0_i32_1, %c0_i32_2 : i32, i32, i32, i32
  }
  func.func @transform_4(%arg0: i32) -> (i32, i32) {
    %c0_i32 = arith.constant 0 : i32
    %c0_i32_0 = arith.constant 0 : i32
    %c0_i32_1 = arith.constant 0 : i32
    return %c0_i32, %c0_i32_0 : i32, i32
  }
  func.func @transform_5(%arg0: i32) -> (i32, i32, i32) {
    %c0_i32 = arith.constant 0 : i32
    %c0_i32_0 = arith.constant 0 : i32
    %c0_i32_1 = arith.constant 0 : i32
    %c0_i32_2 = arith.constant 0 : i32
    return %c0_i32, %c0_i32_0, %c0_i32_1 : i32, i32, i32
  }
  func.func @transform_6(%arg0: i32) -> (i32, i32) {
    %c0_i32 = arith.constant 0 : i32
    %c0_i32_0 = arith.constant 0 : i32
    %c0_i32_1 = arith.constant 0 : i32
    return %c0_i32, %c0_i32_0 : i32, i32
  }
  func.func @transform_7(%arg0: i32) -> (i32, i32) {
    %c0_i32 = arith.constant 0 : i32
    %c0_i32_0 = arith.constant 0 : i32
    %c0_i32_1 = arith.constant 0 : i32
    return %c0_i32, %c0_i32_0 : i32, i32
  }
  func.func @transform_8(%arg0: i32) -> (i32, i32) {
    %c0_i32 = arith.constant 0 : i32
    %c0_i32_0 = arith.constant 0 : i32
    %c0_i32_1 = arith.constant 0 : i32
    return %c0_i32, %c0_i32_0 : i32, i32
  }
  func.func @transform_9(%arg0: i32) -> (i32, i32) {
    %c0_i32 = arith.constant 0 : i32
    %c0_i32_0 = arith.constant 0 : i32
    return %arg0, %c0_i32 : i32, i32
  }
}

</mosaic_0001>

<llo_original>
// kernel: net_forward.1
$region0: #{net_forward.1}
  #allocation0 [shape = 'u32[]', space=smem, size = 0x4, offset = 0x4, fixed_abs, tag = 'smem constant byte address 0x4 - core index']
  #allocation1 [shape = 'u32[144,128]{1,0:T(1,128)}', space=vmem, size = 0x12000, scoped, tag = 'internal scratch']
  %s0 = inlined_call_operand.vmem [shape: bf16[384,140], index: 0, kind: input, shape index: {}]
  %s1 = inlined_call_operand.vmem [shape: bf16[2,140,128], index: 1, kind: input, shape index: {}]
  %s2 = inlined_call_operand.vmem [shape: f32[1,128], index: 2, kind: input, shape index: {}]
  %s3 = inlined_call_operand.vmem [shape: bf16[5,2,128,128], index: 3, kind: input, shape index: {}]
  %s4 = inlined_call_operand.vmem [shape: f32[1,128], index: 4, kind: input, shape index: {}]
  %s5 = inlined_call_operand.vmem [shape: bf16[4,128,128], index: 5, kind: input, shape index: {}]
  %s6 = inlined_call_operand.vmem [shape: f32[1,128], index: 6, kind: input, shape index: {}]
  %s7 = inlined_call_operand.vmem [shape: bf16[128,128], index: 7, kind: input, shape index: {}]
  %s8 = inlined_call_operand.vmem [shape: f32[1,128], index: 8, kind: input, shape index: {}]
  %s9 = inlined_call_operand.vmem [shape: f32[16,128], index: 9, kind: output, shape index: {}]
  %s10 = sld [smem:[#allocation0]]
  $region46: #{net_forward.1} parent=0
    _
  %s12 = ssub.s32 1, %s10
  %s13 = scalar_select 0, %s12, %s10
  // Predicated region
  $region2: #{net_forward.1} parent=0 // pred_check
    _
  $region3: #{net_forward.1} parent=0 // pred_check_branch
    %15 = sbr.rel (0) target = $region5
  $region4: #{net_forward.1} parent=0 // pred_region
    _
  $region5: #{net_forward.1} parent=0 // pred_fallthru
    _
  // Predicated region
  $region6: #{net_forward.1} parent=0 // pred_check
    _
  $region7: #{net_forward.1} parent=0 // pred_check_branch
    %17 = sbr.rel (0) target = $region9
  $region8: #{net_forward.1} parent=0 // pred_region
    _
  $region9: #{net_forward.1} parent=0 // pred_fallthru
    _
  // Predicated region
  $region10: #{net_forward.1} parent=0 // pred_check
    _
  $region11: #{net_forward.1} parent=0 // pred_check_branch
    %19 = sbr.rel (0) target = $region13
  $region12: #{net_forward.1} parent=0 // pred_region
    _
  $region13: #{net_forward.1} parent=0 // pred_fallthru
    _
  // Predicated region
  $region14: #{net_forward.1} parent=0 // pred_check
    _
  $region15: #{net_forward.1} parent=0 // pred_check_branch
    %21 = sbr.rel (0) target = $region17
  $region16: #{net_forward.1} parent=0 // pred_region
    _
  $region17: #{net_forward.1} parent=0 // pred_fallthru
    _
  // Predicated region
  $region18: #{net_forward.1} parent=0 // pred_check
    _
  $region19: #{net_forward.1} parent=0 // pred_check_branch
    %23 = sbr.rel (0) target = $region21
  $region20: #{net_forward.1} parent=0 // pred_region
    _
  $region21: #{net_forward.1} parent=0 // pred_fallthru
    _
  // Predicated region
  $region22: #{net_forward.1} parent=0 // pred_check
    _
  $region23: #{net_forward.1} parent=0 // pred_check_branch
    %25 = sbr.rel (0) target = $region25
  $region24: #{net_forward.1} parent=0 // pred_region
    _
  $region25: #{net_forward.1} parent=0 // pred_fallthru
    _
  // Predicated region
  $region26: #{net_forward.1} parent=0 // pred_check
    _
  $region27: #{net_forward.1} parent=0 // pred_check_branch
    %27 = sbr.rel (0) target = $region29
  $region28: #{net_forward.1} parent=0 // pred_region
    _
  $region29: #{net_forward.1} parent=0 // pred_fallthru
    _
  // Predicated region
  $region30: #{net_forward.1} parent=0 // pred_check
    _
  $region31: #{net_forward.1} parent=0 // pred_check_branch
    %29 = sbr.rel (0) target = $region33
  $region32: #{net_forward.1} parent=0 // pred_region
    _
  $region33: #{net_forward.1} parent=0 // pred_fallthru
    _
  // Predicated region
  $region34: #{net_forward.1} parent=0 // pred_check
    _
  $region35: #{net_forward.1} parent=0 // pred_check_branch
    %31 = sbr.rel (0) target = $region37
  $region36: #{net_forward.1} parent=0 // pred_region
    _
  $region37: #{net_forward.1} parent=0 // pred_fallthru
    _
  %v33 = vld [vmem:[%s0] sm:$0xff]
  %v34 = vld [vmem:[%s0 + $0x8] sm:$0xff]
  %v35 = vld [vmem:[%s0 + $0x10] sm:$0xff]
  %v36 = vld [vmem:[%s0 + $0x18] sm:$0xff]
  %v37 = vld [vmem:[%s0 + $0x20] sm:$0xff]
  %v38 = vld [vmem:[%s0 + $0x28] sm:$0xff]
  %v39 = vld [vmem:[%s0 + $0x30] sm:$0xff]
  %v40 = vld [vmem:[%s0 + $0x38] sm:$0xff]
  %v41 = vld [vmem:[%s0 + $0x40] sm:$0xff]
  %v42 = vld [vmem:[%s0 + $0x48] sm:$0xff]
  %v43 = vld [vmem:[%s0 + $0x50] sm:$0xff]
  %v44 = vld [vmem:[%s0 + $0x58] sm:$0xff]
  %v45 = vld [vmem:[%s0 + $0x60] sm:$0xff]
  %v46 = vld [vmem:[%s0 + $0x68] sm:$0xff]
  %v47 = vld [vmem:[%s0 + $0x70] sm:$0xff]
  %v48 = vld [vmem:[%s0 + $0x78] sm:$0xff]
  %v49 = vld [vmem:[%s0 + $0x80] sm:$0xff]
  %v50 = vld [vmem:[%s0 + $0x88] sm:$0xff]
  %v51 = vld [vmem:[%s0 + $0x90] sm:$0xff]
  %v52 = vld [vmem:[%s0 + $0x98] sm:$0xff]
  %v53 = vld [vmem:[%s0 + $0xa0] sm:$0xff]
  %v54 = vld [vmem:[%s0 + $0xa8] sm:$0xff]
  %v55 = vld [vmem:[%s0 + $0xb0] sm:$0xff]
  %v56 = vld [vmem:[%s0 + $0xb8] sm:$0xff]
  %v57 = vld [vmem:[%s1] sm:$0xf]
  %v58 = vld [vmem:[%s1 + $0x4] sm:$0xf]
  %v59 = vld [vmem:[%s1 + $0x8] sm:$0xf]
  %v60 = vld [vmem:[%s1 + $0xc] sm:$0xf]
  %v61 = vld [vmem:[%s1 + $0x10] sm:$0xf]
  %v62 = vld [vmem:[%s1 + $0x14] sm:$0xf]
  %v63 = vld [vmem:[%s1 + $0x18] sm:$0xf]
  %v64 = vld [vmem:[%s1 + $0x1c] sm:$0xf]
  %v65 = vld [vmem:[%s1 + $0x20] sm:$0xf]
  %v66 = vld [vmem:[%s1 + $0x24] sm:$0xf]
  %v67 = vld [vmem:[%s1 + $0x28] sm:$0xf]
  %v68 = vld [vmem:[%s1 + $0x2c] sm:$0xf]
  %v69 = vld [vmem:[%s1 + $0x30] sm:$0xf]
  %v70 = vld [vmem:[%s1 + $0x34] sm:$0xf]
  %v71 = vld [vmem:[%s1 + $0x38] sm:$0xf]
  %v72 = vld [vmem:[%s1 + $0x3c] sm:$0xf]
  %v73 = vld [vmem:[%s1 + $0x40] sm:$0xf]
  %v74 = vld [vmem:[%s1 + $0x44] sm:$0x3]
  %v99 = vunpack.c.l.b16 %v33
  %v100 = vunpack.c.h.b16 %v33
  %v101 = vunpack.c.l.b16 %v34
  %v102 = vunpack.c.h.b16 %v34
  %v103 = vunpack.c.l.b16 %v35
  %v104 = vunpack.c.h.b16 %v35
  %v105 = vunpack.c.l.b16 %v36
  %v106 = vunpack.c.h.b16 %v36
  %v107 = vunpack.c.l.b16 %v37
  %v108 = vunpack.c.h.b16 %v37
  %v109 = vunpack.c.l.b16 %v38
  %v110 = vunpack.c.h.b16 %v38
  %v111 = vunpack.c.l.b16 %v39
  %v112 = vunpack.c.h.b16 %v39
  %v113 = vunpack.c.l.b16 %v40
  %v114 = vunpack.c.h.b16 %v40
  %v115 = vunpack.c.l.b16 %v41
  %v116 = vunpack.c.h.b16 %v41
  %v117 = vunpack.c.l.b16 %v42
  %v118 = vunpack.c.h.b16 %v42
  %v119 = vunpack.c.l.b16 %v43
  %v120 = vunpack.c.h.b16 %v43
  %v121 = vunpack.c.l.b16 %v44
  %v122 = vunpack.c.h.b16 %v44
  %v123 = vunpack.c.l.b16 %v45
  %v124 = vunpack.c.h.b16 %v45
  %v125 = vunpack.c.l.b16 %v46
  %v126 = vunpack.c.h.b16 %v46
  %v127 = vunpack.c.l.b16 %v47
  %v128 = vunpack.c.h.b16 %v47
  %v129 = vunpack.c.l.b16 %v48
  %v130 = vunpack.c.h.b16 %v48
  %v131 = vunpack.c.l.b16 %v49
  %v132 = vunpack.c.h.b16 %v49
  %v133 = vunpack.c.l.b16 %v50
  %v134 = vunpack.c.h.b16 %v50
  %v135 = vunpack.c.l.b16 %v51
  %v136 = vunpack.c.h.b16 %v51
  %v137 = vunpack.c.l.b16 %v52
  %v138 = vunpack.c.h.b16 %v52
  %v139 = vunpack.c.l.b16 %v53
  %v140 = vunpack.c.h.b16 %v53
  %v141 = vunpack.c.l.b16 %v54
  %v142 = vunpack.c.h.b16 %v54
  %v143 = vunpack.c.l.b16 %v55
  %v144 = vunpack.c.h.b16 %v55
  %v145 = vunpack.c.l.b16 %v56
  %v146 = vunpack.c.h.b16 %v56
  %v147 = vpack.c.b16 %v101, %v99
  %v148 = vpack.c.b16 %v102, %v100
  %v149 = vpack.c.b16 %v105, %v103
  %v150 = vpack.c.b16 %v106, %v104
  %v151 = vpack.c.b16 %v109, %v107
  %v152 = vpack.c.b16 %v110, %v108
  %v153 = vpack.c.b16 %v113, %v111
  %v154 = vpack.c.b16 %v114, %v112
  %v155 = vpack.c.b16 %v117, %v115
  %v156 = vpack.c.b16 %v118, %v116
  %v157 = vpack.c.b16 %v121, %v119
  %v158 = vpack.c.b16 %v122, %v120
  %v159 = vpack.c.b16 %v125, %v123
  %v160 = vpack.c.b16 %v126, %v124
  %v161 = vpack.c.b16 %v129, %v127
  %v162 = vpack.c.b16 %v130, %v128
  %v163 = vpack.c.b16 %v133, %v131
  %v164 = vpack.c.b16 %v134, %v132
  %v165 = vpack.c.b16 %v137, %v135
  %v166 = vpack.c.b16 %v138, %v136
  %v167 = vpack.c.b16 %v141, %v139
  %v168 = vpack.c.b16 %v142, %v140
  %v169 = vpack.c.b16 %v145, %v143
  %v170 = vpack.c.b16 %v146, %v144
  %v201 = vunpack.c.l.b16 %v57
  %v202 = vunpack.c.l.b16 %v58
  %v203 = vunpack.c.l.b16 %v59
  %v204 = vunpack.c.l.b16 %v60
  %v205 = vunpack.c.l.b16 %v61
  %v206 = vunpack.c.l.b16 %v62
  %v207 = vunpack.c.l.b16 %v63
  %v208 = vunpack.c.l.b16 %v64
  %v209 = vunpack.c.l.b16 %v65
  %v210 = vunpack.c.l.b16 %v66
  %v211 = vunpack.c.l.b16 %v67
  %v212 = vunpack.c.l.b16 %v68
  %v213 = vunpack.c.l.b16 %v69
  %v214 = vunpack.c.l.b16 %v70
  %v215 = vunpack.c.l.b16 %v71
  %v216 = vunpack.c.l.b16 %v72
  %v217 = vunpack.c.l.b16 %v73
  %v218 = vunpack.c.l.b16 %v74
  %v219 = vpack.c.b16 %v202, %v201
  %v220 = vpack.c.b16 %v204, %v203
  %v221 = vpack.c.b16 %v206, %v205
  %v222 = vpack.c.b16 %v208, %v207
  %v223 = vpack.c.b16 %v210, %v209
  %v224 = vpack.c.b16 %v212, %v211
  %v225 = vpack.c.b16 %v214, %v213
  %v226 = vpack.c.b16 %v216, %v215
  %v227 = vpack.c.b16 %v218, %v217
  %vm236 = vcmask 97280
  %v238 = vsel %vm236, %v148, 0
  %v241 = vsel %vm236, %v150, 0
  %v244 = vsel %vm236, %v152, 0
  %v247 = vsel %vm236, %v154, 0
  %v250 = vsel %vm236, %v156, 0
  %v253 = vsel %vm236, %v158, 0
  %v256 = vsel %vm236, %v160, 0
  %v259 = vsel %vm236, %v162, 0
  %v262 = vsel %vm236, %v164, 0
  %v265 = vsel %vm236, %v166, 0
  %v268 = vsel %vm236, %v168, 0
  %v271 = vsel %vm236, %v170, 0
  %vm273 = vcmask 1045504
  %v275 = vsel %vm273, %v227, 0
  %277 = vmatprep.subr.bf16.mxu0 0
  %278 = vmatpush1.bf16.msra.mxu0 %v226
  %279 = vmatprep.subr.bf16.mxu0 0
  %280 = vmatpush1.bf16.msra.mxu0 %v225
  %281 = vmatprep.subr.bf16.mxu0 0
  %282 = vmatpush1.bf16.msra.mxu0 %v224
  %283 = vmatprep.subr.bf16.mxu0 0
  %284 = vmatpush1.bf16.msra.mxu0 %v223
  %285 = vmatprep.subr.bf16.mxu0 0
  %286 = vmatpush1.bf16.msra.mxu0 %v222
  %287 = vmatprep.subr.bf16.mxu0 0
  %288 = vmatpush1.bf16.msra.mxu0 %v221
  %289 = vmatprep.subr.bf16.mxu0 0
  %290 = vmatpush1.bf16.msra.mxu0 %v220
  %291 = vmatprep.subr.bf16.mxu0 0
  %292 = vmatpush1.bf16.msra.mxu0 %v219
  %293 = vmatprep.subr.bf16.mxu0 0
  %294 = vmatpush2.bf16.msra.mxu0 0
  %295 = vmatprep.subr.bf16.mxu0 0
  %296 = vmatpush2.bf16.msra.mxu0 0
  %297 = vmatprep.subr.bf16.mxu0 0
  %298 = vmatpush2.bf16.msra.mxu0 0
  %299 = vmatprep.subr.bf16.mxu0 0
  %300 = vmatpush2.bf16.msra.mxu0 0
  %301 = vmatprep.subr.bf16.mxu0 0
  %302 = vmatpush2.bf16.msra.mxu0 0
  %303 = vmatprep.subr.bf16.mxu0 0
  %304 = vmatpush2.bf16.msra.mxu0 0
  %305 = vmatprep.subr.bf16.mxu0 0
  %306 = vmatpush2.bf16.msra.mxu0 0
  %307 = vmatprep.subr.bf16.mxu0 0
  %308 = vmatpush2.bf16.msra.mxu0 %v275
  %309 = vmatprep.mubr.bf16.mxu0 %v238
  %310 = vmatmul.mubr.bf16.gmra.mxu0 %v147
  %v311 = vpop.f32.mrf.mxu0
  %v312 = vadd.f32 0.0, %v311
  %v313 = vpop.f32.mrf.mxu0
  %v314 = vpop.f32.mrf.mxu0
  %v315 = vadd.f32 0.0, %v314
  %v316 = vpop.f32.mrf.mxu0
  %317 = vmatprep.mubr.bf16.mxu0 %v241
  %318 = vmatmul.mubr.bf16.gmra.mxu0 %v149
  %v319 = vpop.f32.mrf.mxu0
  %v320 = vadd.f32 0.0, %v319
  %v321 = vpop.f32.mrf.mxu0
  %v322 = vpop.f32.mrf.mxu0
  %v323 = vadd.f32 0.0, %v322
  %v324 = vpop.f32.mrf.mxu0
  %325 = vmatprep.mubr.bf16.mxu0 %v244
  %326 = vmatmul.mubr.bf16.gmra.mxu0 %v151
  %v327 = vpop.f32.mrf.mxu0
  %v328 = vadd.f32 0.0, %v327
  %v329 = vpop.f32.mrf.mxu0
  %v330 = vpop.f32.mrf.mxu0
  %v331 = vadd.f32 0.0, %v330
  %v332 = vpop.f32.mrf.mxu0
  %333 = vmatprep.mubr.bf16.mxu0 %v247
  %334 = vmatmul.mubr.bf16.gmra.mxu0 %v153
  %v335 = vpop.f32.mrf.mxu0
  %v336 = vadd.f32 0.0, %v335
  %v337 = vpop.f32.mrf.mxu0
  %v338 = vpop.f32.mrf.mxu0
  %v339 = vadd.f32 0.0, %v338
  %v340 = vpop.f32.mrf.mxu0
  %341 = vmatprep.mubr.bf16.mxu0 %v250
  %342 = vmatmul.mubr.bf16.gmra.mxu0 %v155
  %v343 = vpop.f32.mrf.mxu0
  %v344 = vadd.f32 0.0, %v343
  %v345 = vpop.f32.mrf.mxu0
  %v346 = vpop.f32.mrf.mxu0
  %v347 = vadd.f32 0.0, %v346
  %v348 = vpop.f32.mrf.mxu0
  %349 = vmatprep.mubr.bf16.mxu0 %v253
  %350 = vmatmul.mubr.bf16.gmra.mxu0 %v157
  %v351 = vpop.f32.mrf.mxu0
  %v352 = vadd.f32 0.0, %v351
  %v353 = vpop.f32.mrf.mxu0
  %v354 = vpop.f32.mrf.mxu0
  %v355 = vadd.f32 0.0, %v354
  %v356 = vpop.f32.mrf.mxu0
  %357 = vmatprep.mubr.bf16.mxu0 %v256
  %358 = vmatmul.mubr.bf16.gmra.mxu0 %v159
  %v359 = vpop.f32.mrf.mxu0
  %v360 = vadd.f32 0.0, %v359
  %v361 = vpop.f32.mrf.mxu0
  %v362 = vpop.f32.mrf.mxu0
  %v363 = vadd.f32 0.0, %v362
  %v364 = vpop.f32.mrf.mxu0
  %365 = vmatprep.mubr.bf16.mxu0 %v259
  %366 = vmatmul.mubr.bf16.gmra.mxu0 %v161
  %v367 = vpop.f32.mrf.mxu0
  %v368 = vadd.f32 0.0, %v367
  %v369 = vpop.f32.mrf.mxu0
  %v370 = vpop.f32.mrf.mxu0
  %v371 = vadd.f32 0.0, %v370
  %v372 = vpop.f32.mrf.mxu0
  %373 = vmatprep.mubr.bf16.mxu0 %v262
  %374 = vmatmul.mubr.bf16.gmra.mxu0 %v163
  %v375 = vpop.f32.mrf.mxu0
  %v376 = vadd.f32 0.0, %v375
  %v377 = vpop.f32.mrf.mxu0
  %v378 = vpop.f32.mrf.mxu0
  %v379 = vadd.f32 0.0, %v378
  %v380 = vpop.f32.mrf.mxu0
  %381 = vmatprep.mubr.bf16.mxu0 %v265
  %382 = vmatmul.mubr.bf16.gmra.mxu0 %v165
  %v383 = vpop.f32.mrf.mxu0
  %v384 = vadd.f32 0.0, %v383
  %v385 = vpop.f32.mrf.mxu0
  %v386 = vpop.f32.mrf.mxu0
  %v387 = vadd.f32 0.0, %v386
  %v388 = vpop.f32.mrf.mxu0
  %389 = vmatprep.mubr.bf16.mxu0 %v268
  %390 = vmatmul.mubr.bf16.gmra.mxu0 %v167
  %v391 = vpop.f32.mrf.mxu0
  %v392 = vadd.f32 0.0, %v391
  %v393 = vpop.f32.mrf.mxu0
  %v394 = vpop.f32.mrf.mxu0
  %v395 = vadd.f32 0.0, %v394
  %v396 = vpop.f32.mrf.mxu0
  %397 = vmatprep.mubr.bf16.mxu0 %v271
  %398 = vmatmul.mubr.bf16.gmra.mxu0 %v169
  %v399 = vpop.f32.mrf.mxu0
  %v400 = vadd.f32 0.0, %v399
  %v401 = vpop.f32.mrf.mxu0
  %v402 = vpop.f32.mrf.mxu0
  %v403 = vadd.f32 0.0, %v402
  %v404 = vpop.f32.mrf.mxu0
  %405 = vdwg.mxu0
  %s406 = scalar_lea.vmem %s1, 72
  %v407 = vld [vmem:[%s406] sm:$0xf]
  %v408 = vld [vmem:[%s406 + $0x4] sm:$0xf]
  %v409 = vld [vmem:[%s406 + $0x8] sm:$0xf]
  %v410 = vld [vmem:[%s406 + $0xc] sm:$0xf]
  %v411 = vld [vmem:[%s406 + $0x10] sm:$0xf]
  %v412 = vld [vmem:[%s406 + $0x14] sm:$0xf]
  %v413 = vld [vmem:[%s406 + $0x18] sm:$0xf]
  %v414 = vld [vmem:[%s406 + $0x1c] sm:$0xf]
  %v415 = vld [vmem:[%s406 + $0x20] sm:$0xf]
  %v416 = vld [vmem:[%s406 + $0x24] sm:$0xf]
  %v417 = vld [vmem:[%s406 + $0x28] sm:$0xf]
  %v418 = vld [vmem:[%s406 + $0x2c] sm:$0xf]
  %v419 = vld [vmem:[%s406 + $0x30] sm:$0xf]
  %v420 = vld [vmem:[%s406 + $0x34] sm:$0xf]
  %v421 = vld [vmem:[%s406 + $0x38] sm:$0xf]
  %v422 = vld [vmem:[%s406 + $0x3c] sm:$0xf]
  %v423 = vld [vmem:[%s406 + $0x40] sm:$0xf]
  %v424 = vld [vmem:[%s406 + $0x44] sm:$0x3]
  %v443 = vunpack.c.l.b16 %v407
  %v444 = vunpack.c.l.b16 %v408
  %v445 = vunpack.c.l.b16 %v409
  %v446 = vunpack.c.l.b16 %v410
  %v447 = vunpack.c.l.b16 %v411
  %v448 = vunpack.c.l.b16 %v412
  %v449 = vunpack.c.l.b16 %v413
  %v450 = vunpack.c.l.b16 %v414
  %v451 = vunpack.c.l.b16 %v415
  %v452 = vunpack.c.l.b16 %v416
  %v453 = vunpack.c.l.b16 %v417
  %v454 = vunpack.c.l.b16 %v418
  %v455 = vunpack.c.l.b16 %v419
  %v456 = vunpack.c.l.b16 %v420
  %v457 = vunpack.c.l.b16 %v421
  %v458 = vunpack.c.l.b16 %v422
  %v459 = vunpack.c.l.b16 %v423
  %v460 = vunpack.c.l.b16 %v424
  %v461 = vpack.c.b16 %v444, %v443
  %v462 = vpack.c.b16 %v446, %v445
  %v463 = vpack.c.b16 %v448, %v447
  %v464 = vpack.c.b16 %v450, %v449
  %v465 = vpack.c.b16 %v452, %v451
  %v466 = vpack.c.b16 %v454, %v453
  %v467 = vpack.c.b16 %v456, %v455
  %v468 = vpack.c.b16 %v458, %v457
  %v469 = vpack.c.b16 %v460, %v459
  %v479 = vsel %vm273, %v469, 0
  %481 = vmatprep.subr.bf16.mxu0 0
  %482 = vmatpush1.bf16.msra.mxu0 %v468
  %483 = vmatprep.subr.bf16.mxu0 0
  %484 = vmatpush1.bf16.msra.mxu0 %v467
  %485 = vmatprep.subr.bf16.mxu0 0
  %486 = vmatpush1.bf16.msra.mxu0 %v466
  %487 = vmatprep.subr.bf16.mxu0 0
  %488 = vmatpush1.bf16.msra.mxu0 %v465
  %489 = vmatprep.subr.bf16.mxu0 0
  %490 = vmatpush1.bf16.msra.mxu0 %v464
  %491 = vmatprep.subr.bf16.mxu0 0
  %492 = vmatpush1.bf16.msra.mxu0 %v463
  %493 = vmatprep.subr.bf16.mxu0 0
  %494 = vmatpush1.bf16.msra.mxu0 %v462
  %495 = vmatprep.subr.bf16.mxu0 0
  %496 = vmatpush1.bf16.msra.mxu0 %v461
  %497 = vmatprep.subr.bf16.mxu0 0
  %498 = vmatpush2.bf16.msra.mxu0 0
  %499 = vmatprep.subr.bf16.mxu0 0
  %500 = vmatpush2.bf16.msra.mxu0 0
  %501 = vmatprep.subr.bf16.mxu0 0
  %502 = vmatpush2.bf16.msra.mxu0 0
  %503 = vmatprep.subr.bf16.mxu0 0
  %504 = vmatpush2.bf16.msra.mxu0 0
  %505 = vmatprep.subr.bf16.mxu0 0
  %506 = vmatpush2.bf16.msra.mxu0 0
  %507 = vmatprep.subr.bf16.mxu0 0
  %508 = vmatpush2.bf16.msra.mxu0 0
  %509 = vmatprep.subr.bf16.mxu0 0
  %510 = vmatpush2.bf16.msra.mxu0 0
  %511 = vmatprep.subr.bf16.mxu0 0
  %512 = vmatpush2.bf16.msra.mxu0 %v479
  %513 = vmatprep.mubr.bf16.mxu0 %v238
  %514 = vmatmul.mubr.bf16.gmra.mxu0 %v147
  %v515 = vpop.f32.mrf.mxu0
  %v516 = vadd.f32 0.0, %v515
  %v517 = vpop.f32.mrf.mxu0
  %v518 = vpop.f32.mrf.mxu0
  %v519 = vadd.f32 0.0, %v518
  %v520 = vpop.f32.mrf.mxu0
  %521 = vmatprep.mubr.bf16.mxu0 %v241
  %522 = vmatmul.mubr.bf16.gmra.mxu0 %v149
  %v523 = vpop.f32.mrf.mxu0
  %v524 = vadd.f32 0.0, %v523
  %v525 = vpop.f32.mrf.mxu0
  %v526 = vpop.f32.mrf.mxu0
  %v527 = vadd.f32 0.0, %v526
  %v528 = vpop.f32.mrf.mxu0
  %529 = vmatprep.mubr.bf16.mxu0 %v244
  %530 = vmatmul.mubr.bf16.gmra.mxu0 %v151
  %v531 = vpop.f32.mrf.mxu0
  %v532 = vadd.f32 0.0, %v531
  %v533 = vpop.f32.mrf.mxu0
  %v534 = vpop.f32.mrf.mxu0
  %v535 = vadd.f32 0.0, %v534
  %v536 = vpop.f32.mrf.mxu0
  %537 = vmatprep.mubr.bf16.mxu0 %v247
  %538 = vmatmul.mubr.bf16.gmra.mxu0 %v153
  %v539 = vpop.f32.mrf.mxu0
  %v540 = vadd.f32 0.0, %v539
  %v541 = vpop.f32.mrf.mxu0
  %v542 = vpop.f32.mrf.mxu0
  %v543 = vadd.f32 0.0, %v542
  %v544 = vpop.f32.mrf.mxu0
  %545 = vmatprep.mubr.bf16.mxu0 %v250
  %546 = vmatmul.mubr.bf16.gmra.mxu0 %v155
  %v547 = vpop.f32.mrf.mxu0
  %v548 = vadd.f32 0.0, %v547
  %v549 = vpop.f32.mrf.mxu0
  %v550 = vpop.f32.mrf.mxu0
  %v551 = vadd.f32 0.0, %v550
  %v552 = vpop.f32.mrf.mxu0
  %553 = vmatprep.mubr.bf16.mxu0 %v253
  %554 = vmatmul.mubr.bf16.gmra.mxu0 %v157
  %v555 = vpop.f32.mrf.mxu0
  %v556 = vadd.f32 0.0, %v555
  %v557 = vpop.f32.mrf.mxu0
  %v558 = vpop.f32.mrf.mxu0
  %v559 = vadd.f32 0.0, %v558
  %v560 = vpop.f32.mrf.mxu0
  %561 = vmatprep.mubr.bf16.mxu0 %v256
  %562 = vmatmul.mubr.bf16.gmra.mxu0 %v159
  %v563 = vpop.f32.mrf.mxu0
  %v564 = vadd.f32 0.0, %v563
  %v565 = vpop.f32.mrf.mxu0
  %v566 = vpop.f32.mrf.mxu0
  %v567 = vadd.f32 0.0, %v566
  %v568 = vpop.f32.mrf.mxu0
  %569 = vmatprep.mubr.bf16.mxu0 %v259
  %570 = vmatmul.mubr.bf16.gmra.mxu0 %v161
  %v571 = vpop.f32.mrf.mxu0
  %v572 = vadd.f32 0.0, %v571
  %v573 = vpop.f32.mrf.mxu0
  %v574 = vpop.f32.mrf.mxu0
  %v575 = vadd.f32 0.0, %v574
  %v576 = vpop.f32.mrf.mxu0
  %577 = vmatprep.mubr.bf16.mxu0 %v262
  %578 = vmatmul.mubr.bf16.gmra.mxu0 %v163
  %v579 = vpop.f32.mrf.mxu0
  %v580 = vadd.f32 0.0, %v579
  %v581 = vpop.f32.mrf.mxu0
  %v582 = vpop.f32.mrf.mxu0
  %v583 = vadd.f32 0.0, %v582
  %v584 = vpop.f32.mrf.mxu0
  %585 = vmatprep.mubr.bf16.mxu0 %v265
  %586 = vmatmul.mubr.bf16.gmra.mxu0 %v165
  %v587 = vpop.f32.mrf.mxu0
  %v588 = vadd.f32 0.0, %v587
  %v589 = vpop.f32.mrf.mxu0
  %v590 = vpop.f32.mrf.mxu0
  %v591 = vadd.f32 0.0, %v590
  %v592 = vpop.f32.mrf.mxu0
  %593 = vmatprep.mubr.bf16.mxu0 %v268
  %594 = vmatmul.mubr.bf16.gmra.mxu0 %v167
  %v595 = vpop.f32.mrf.mxu0
  %v596 = vadd.f32 0.0, %v595
  %v597 = vpop.f32.mrf.mxu0
  %v598 = vpop.f32.mrf.mxu0
  %v599 = vadd.f32 0.0, %v598
  %v600 = vpop.f32.mrf.mxu0
  %601 = vmatprep.mubr.bf16.mxu0 %v271
  %602 = vmatmul.mubr.bf16.gmra.mxu0 %v169
  %v603 = vpop.f32.mrf.mxu0
  %v604 = vadd.f32 0.0, %v603
  %v605 = vpop.f32.mrf.mxu0
  %v606 = vpop.f32.mrf.mxu0
  %v607 = vadd.f32 0.0, %v606
  %v608 = vpop.f32.mrf.mxu0
  %609 = vdwg.mxu0
  %v610 = vmax.f32 %v312, %v516
  %v611 = vmax.f32 %v315, %v519
  %v612 = vmax.f32 %v320, %v524
  %v613 = vmax.f32 %v323, %v527
  %v614 = vmax.f32 %v328, %v532
  %v615 = vmax.f32 %v331, %v535
  %v616 = vmax.f32 %v336, %v540
  %v617 = vmax.f32 %v339, %v543
  %v618 = vmax.f32 %v344, %v548
  %v619 = vmax.f32 %v347, %v551
  %v620 = vmax.f32 %v352, %v556
  %v621 = vmax.f32 %v355, %v559
  %v622 = vmax.f32 %v360, %v564
  %v623 = vmax.f32 %v363, %v567
  %v624 = vmax.f32 %v368, %v572
  %v625 = vmax.f32 %v371, %v575
  %v626 = vmax.f32 %v376, %v580
  %v627 = vmax.f32 %v379, %v583
  %v628 = vmax.f32 %v384, %v588
  %v629 = vmax.f32 %v387, %v591
  %v630 = vmax.f32 %v392, %v596
  %v631 = vmax.f32 %v395, %v599
  %v632 = vmax.f32 %v400, %v604
  %v633 = vmax.f32 %v403, %v607
  %v634 = vld [vmem:[%s0 + $0xc0] sm:$0xff]
  %v635 = vld [vmem:[%s0 + $0xc8] sm:$0xff]
  %v636 = vld [vmem:[%s0 + $0xd0] sm:$0xff]
  %v637 = vld [vmem:[%s0 + $0xd8] sm:$0xff]
  %v638 = vld [vmem:[%s0 + $0xe0] sm:$0xff]
  %v639 = vld [vmem:[%s0 + $0xe8] sm:$0xff]
  %v640 = vld [vmem:[%s0 + $0xf0] sm:$0xff]
  %v641 = vld [vmem:[%s0 + $0xf8] sm:$0xff]
  %v642 = vld [vmem:[%s0 + $0x100] sm:$0xff]
  %v643 = vld [vmem:[%s0 + $0x108] sm:$0xff]
  %v644 = vld [vmem:[%s0 + $0x110] sm:$0xff]
  %v645 = vld [vmem:[%s0 + $0x118] sm:$0xff]
  %v646 = vld [vmem:[%s0 + $0x120] sm:$0xff]
  %v647 = vld [vmem:[%s0 + $0x128] sm:$0xff]
  %v648 = vld [vmem:[%s0 + $0x130] sm:$0xff]
  %v649 = vld [vmem:[%s0 + $0x138] sm:$0xff]
  %v650 = vld [vmem:[%s0 + $0x140] sm:$0xff]
  %v651 = vld [vmem:[%s0 + $0x148] sm:$0xff]
  %v652 = vld [vmem:[%s0 + $0x150] sm:$0xff]
  %v653 = vld [vmem:[%s0 + $0x158] sm:$0xff]
  %v654 = vld [vmem:[%s0 + $0x160] sm:$0xff]
  %v655 = vld [vmem:[%s0 + $0x168] sm:$0xff]
  %v656 = vld [vmem:[%s0 + $0x170] sm:$0xff]
  %v657 = vld [vmem:[%s0 + $0x178] sm:$0xff]
  %v682 = vunpack.c.l.b16 %v634
  %v683 = vunpack.c.h.b16 %v634
  %v684 = vunpack.c.l.b16 %v635
  %v685 = vunpack.c.h.b16 %v635
  %v686 = vunpack.c.l.b16 %v636
  %v687 = vunpack.c.h.b16 %v636
  %v688 = vunpack.c.l.b16 %v637
  %v689 = vunpack.c.h.b16 %v637
  %v690 = vunpack.c.l.b16 %v638
  %v691 = vunpack.c.h.b16 %v638
  %v692 = vunpack.c.l.b16 %v639
  %v693 = vunpack.c.h.b16 %v639
  %v694 = vunpack.c.l.b16 %v640
  %v695 = vunpack.c.h.b16 %v640
  %v696 = vunpack.c.l.b16 %v641
  %v697 = vunpack.c.h.b16 %v641
  %v698 = vunpack.c.l.b16 %v642
  %v699 = vunpack.c.h.b16 %v642
  %v700 = vunpack.c.l.b16 %v643
  %v701 = vunpack.c.h.b16 %v643
  %v702 = vunpack.c.l.b16 %v644
  %v703 = vunpack.c.h.b16 %v644
  %v704 = vunpack.c.l.b16 %v645
  %v705 = vunpack.c.h.b16 %v645
  %v706 = vunpack.c.l.b16 %v646
  %v707 = vunpack.c.h.b16 %v646
  %v708 = vunpack.c.l.b16 %v647
  %v709 = vunpack.c.h.b16 %v647
  %v710 = vunpack.c.l.b16 %v648
  %v711 = vunpack.c.h.b16 %v648
  %v712 = vunpack.c.l.b16 %v649
  %v713 = vunpack.c.h.b16 %v649
  %v714 = vunpack.c.l.b16 %v650
  %v715 = vunpack.c.h.b16 %v650
  %v716 = vunpack.c.l.b16 %v651
  %v717 = vunpack.c.h.b16 %v651
  %v718 = vunpack.c.l.b16 %v652
  %v719 = vunpack.c.h.b16 %v652
  %v720 = vunpack.c.l.b16 %v653
  %v721 = vunpack.c.h.b16 %v653
  %v722 = vunpack.c.l.b16 %v654
  %v723 = vunpack.c.h.b16 %v654
  %v724 = vunpack.c.l.b16 %v655
  %v725 = vunpack.c.h.b16 %v655
  %v726 = vunpack.c.l.b16 %v656
  %v727 = vunpack.c.h.b16 %v656
  %v728 = vunpack.c.l.b16 %v657
  %v729 = vunpack.c.h.b16 %v657
  %v730 = vpack.c.b16 %v684, %v682
  %v731 = vpack.c.b16 %v685, %v683
  %v732 = vpack.c.b16 %v688, %v686
  %v733 = vpack.c.b16 %v689, %v687
  %v734 = vpack.c.b16 %v692, %v690
  %v735 = vpack.c.b16 %v693, %v691
  %v736 = vpack.c.b16 %v696, %v694
  %v737 = vpack.c.b16 %v697, %v695
  %v738 = vpack.c.b16 %v700, %v698
  %v739 = vpack.c.b16 %v701, %v699
  %v740 = vpack.c.b16 %v704, %v702
  %v741 = vpack.c.b16 %v705, %v703
  %v742 = vpack.c.b16 %v708, %v706
  %v743 = vpack.c.b16 %v709, %v707
  %v744 = vpack.c.b16 %v712, %v710
  %v745 = vpack.c.b16 %v713, %v711
  %v746 = vpack.c.b16 %v716, %v714
  %v747 = vpack.c.b16 %v717, %v715
  %v748 = vpack.c.b16 %v720, %v718
  %v749 = vpack.c.b16 %v721, %v719
  %v750 = vpack.c.b16 %v724, %v722
  %v751 = vpack.c.b16 %v725, %v723
  %v752 = vpack.c.b16 %v728, %v726
  %v753 = vpack.c.b16 %v729, %v727
  %v767 = vsel %vm236, %v731, 0
  %v770 = vsel %vm236, %v733, 0
  %v773 = vsel %vm236, %v735, 0
  %v776 = vsel %vm236, %v737, 0
  %v779 = vsel %vm236, %v739, 0
  %v782 = vsel %vm236, %v741, 0
  %v785 = vsel %vm236, %v743, 0
  %v788 = vsel %vm236, %v745, 0
  %v791 = vsel %vm236, %v747, 0
  %v794 = vsel %vm236, %v749, 0
  %v797 = vsel %vm236, %v751, 0
  %v800 = vsel %vm236, %v753, 0
  %802 = vmatprep.subr.bf16.mxu0 0
  %803 = vmatpush1.bf16.msra.mxu0 %v226
  %804 = vmatprep.subr.bf16.mxu0 0
  %805 = vmatpush1.bf16.msra.mxu0 %v225
  %806 = vmatprep.subr.bf16.mxu0 0
  %807 = vmatpush1.bf16.msra.mxu0 %v224
  %808 = vmatprep.subr.bf16.mxu0 0
  %809 = vmatpush1.bf16.msra.mxu0 %v223
  %810 = vmatprep.subr.bf16.mxu0 0
  %811 = vmatpush1.bf16.msra.mxu0 %v222
  %812 = vmatprep.subr.bf16.mxu0 0
  %813 = vmatpush1.bf16.msra.mxu0 %v221
  %814 = vmatprep.subr.bf16.mxu0 0
  %815 = vmatpush1.bf16.msra.mxu0 %v220
  %816 = vmatprep.subr.bf16.mxu0 0
  %817 = vmatpush1.bf16.msra.mxu0 %v219
  %818 = vmatprep.subr.bf16.mxu0 0
  %819 = vmatpush2.bf16.msra.mxu0 0
  %820 = vmatprep.subr.bf16.mxu0 0
  %821 = vmatpush2.bf16.msra.mxu0 0
  %822 = vmatprep.subr.bf16.mxu0 0
  %823 = vmatpush2.bf16.msra.mxu0 0
  %824 = vmatprep.subr.bf16.mxu0 0
  %825 = vmatpush2.bf16.msra.mxu0 0
  %826 = vmatprep.subr.bf16.mxu0 0
  %827 = vmatpush2.bf16.msra.mxu0 0
  %828 = vmatprep.subr.bf16.mxu0 0
  %829 = vmatpush2.bf16.msra.mxu0 0
  %830 = vmatprep.subr.bf16.mxu0 0
  %831 = vmatpush2.bf16.msra.mxu0 0
  %832 = vmatprep.subr.bf16.mxu0 0
  %833 = vmatpush2.bf16.msra.mxu0 %v275
  %834 = vmatprep.mubr.bf16.mxu0 %v767
  %835 = vmatmul.mubr.bf16.gmra.mxu0 %v730
  %v836 = vpop.f32.mrf.mxu0
  %v837 = vadd.f32 0.0, %v836
  %v838 = vpop.f32.mrf.mxu0
  %v839 = vpop.f32.mrf.mxu0
  %v840 = vadd.f32 0.0, %v839
  %v841 = vpop.f32.mrf.mxu0
  %842 = vmatprep.mubr.bf16.mxu0 %v770
  %843 = vmatmul.mubr.bf16.gmra.mxu0 %v732
  %v844 = vpop.f32.mrf.mxu0
  %v845 = vadd.f32 0.0, %v844
  %v846 = vpop.f32.mrf.mxu0
  %v847 = vpop.f32.mrf.mxu0
  %v848 = vadd.f32 0.0, %v847
  %v849 = vpop.f32.mrf.mxu0
  %850 = vmatprep.mubr.bf16.mxu0 %v773
  %851 = vmatmul.mubr.bf16.gmra.mxu0 %v734
  %v852 = vpop.f32.mrf.mxu0
  %v853 = vadd.f32 0.0, %v852
  %v854 = vpop.f32.mrf.mxu0
  %v855 = vpop.f32.mrf.mxu0
  %v856 = vadd.f32 0.0, %v855
  %v857 = vpop.f32.mrf.mxu0
  %858 = vmatprep.mubr.bf16.mxu0 %v776
  %859 = vmatmul.mubr.bf16.gmra.mxu0 %v736
  %v860 = vpop.f32.mrf.mxu0
  %v861 = vadd.f32 0.0, %v860
  %v862 = vpop.f32.mrf.mxu0
  %v863 = vpop.f32.mrf.mxu0
  %v864 = vadd.f32 0.0, %v863
  %v865 = vpop.f32.mrf.mxu0
  %866 = vmatprep.mubr.bf16.mxu0 %v779
  %867 = vmatmul.mubr.bf16.gmra.mxu0 %v738
  %v868 = vpop.f32.mrf.mxu0
  %v869 = vadd.f32 0.0, %v868
  %v870 = vpop.f32.mrf.mxu0
  %v871 = vpop.f32.mrf.mxu0
  %v872 = vadd.f32 0.0, %v871
  %v873 = vpop.f32.mrf.mxu0
  %874 = vmatprep.mubr.bf16.mxu0 %v782
  %875 = vmatmul.mubr.bf16.gmra.mxu0 %v740
  %v876 = vpop.f32.mrf.mxu0
  %v877 = vadd.f32 0.0, %v876
  %v878 = vpop.f32.mrf.mxu0
  %v879 = vpop.f32.mrf.mxu0
  %v880 = vadd.f32 0.0, %v879
  %v881 = vpop.f32.mrf.mxu0
  %882 = vmatprep.mubr.bf16.mxu0 %v785
  %883 = vmatmul.mubr.bf16.gmra.mxu0 %v742
  %v884 = vpop.f32.mrf.mxu0
  %v885 = vadd.f32 0.0, %v884
  %v886 = vpop.f32.mrf.mxu0
  %v887 = vpop.f32.mrf.mxu0
  %v888 = vadd.f32 0.0, %v887
  %v889 = vpop.f32.mrf.mxu0
  %890 = vmatprep.mubr.bf16.mxu0 %v788
  %891 = vmatmul.mubr.bf16.gmra.mxu0 %v744
  %v892 = vpop.f32.mrf.mxu0
  %v893 = vadd.f32 0.0, %v892
  %v894 = vpop.f32.mrf.mxu0
  %v895 = vpop.f32.mrf.mxu0
  %v896 = vadd.f32 0.0, %v895
  %v897 = vpop.f32.mrf.mxu0
  %898 = vmatprep.mubr.bf16.mxu0 %v791
  %899 = vmatmul.mubr.bf16.gmra.mxu0 %v746
  %v900 = vpop.f32.mrf.mxu0
  %v901 = vadd.f32 0.0, %v900
  %v902 = vpop.f32.mrf.mxu0
  %v903 = vpop.f32.mrf.mxu0
  %v904 = vadd.f32 0.0, %v903
  %v905 = vpop.f32.mrf.mxu0
  %906 = vmatprep.mubr.bf16.mxu0 %v794
  %907 = vmatmul.mubr.bf16.gmra.mxu0 %v748
  %v908 = vpop.f32.mrf.mxu0
  %v909 = vadd.f32 0.0, %v908
  %v910 = vpop.f32.mrf.mxu0
  %v911 = vpop.f32.mrf.mxu0
  %v912 = vadd.f32 0.0, %v911
  %v913 = vpop.f32.mrf.mxu0
  %914 = vmatprep.mubr.bf16.mxu0 %v797
  %915 = vmatmul.mubr.bf16.gmra.mxu0 %v750
  %v916 = vpop.f32.mrf.mxu0
  %v917 = vadd.f32 0.0, %v916
  %v918 = vpop.f32.mrf.mxu0
  %v919 = vpop.f32.mrf.mxu0
  %v920 = vadd.f32 0.0, %v919
  %v921 = vpop.f32.mrf.mxu0
  %922 = vmatprep.mubr.bf16.mxu0 %v800
  %923 = vmatmul.mubr.bf16.gmra.mxu0 %v752
  %v924 = vpop.f32.mrf.mxu0
  %v925 = vadd.f32 0.0, %v924
  %v926 = vpop.f32.mrf.mxu0
  %v927 = vpop.f32.mrf.mxu0
  %v928 = vadd.f32 0.0, %v927
  %v929 = vpop.f32.mrf.mxu0
  %930 = vdwg.mxu0
  %v931 = vmax.f32 %v610, %v837
  %v932 = vmax.f32 %v611, %v840
  %v933 = vmax.f32 %v612, %v845
  %v934 = vmax.f32 %v613, %v848
  %v935 = vmax.f32 %v614, %v853
  %v936 = vmax.f32 %v615, %v856
  %v937 = vmax.f32 %v616, %v861
  %v938 = vmax.f32 %v617, %v864
  %v939 = vmax.f32 %v618, %v869
  %v940 = vmax.f32 %v619, %v872
  %v941 = vmax.f32 %v620, %v877
  %v942 = vmax.f32 %v621, %v880
  %v943 = vmax.f32 %v622, %v885
  %v944 = vmax.f32 %v623, %v888
  %v945 = vmax.f32 %v624, %v893
  %v946 = vmax.f32 %v625, %v896
  %v947 = vmax.f32 %v626, %v901
  %v948 = vmax.f32 %v627, %v904
  %v949 = vmax.f32 %v628, %v909
  %v950 = vmax.f32 %v629, %v912
  %v951 = vmax.f32 %v630, %v917
  %v952 = vmax.f32 %v631, %v920
  %v953 = vmax.f32 %v632, %v925
  %v954 = vmax.f32 %v633, %v928
  %955 = vmatprep.subr.bf16.mxu0 0
  %956 = vmatpush1.bf16.msra.mxu0 %v468
  %957 = vmatprep.subr.bf16.mxu0 0
  %958 = vmatpush1.bf16.msra.mxu0 %v467
  %959 = vmatprep.subr.bf16.mxu0 0
  %960 = vmatpush1.bf16.msra.mxu0 %v466
  %961 = vmatprep.subr.bf16.mxu0 0
  %962 = vmatpush1.bf16.msra.mxu0 %v465
  %963 = vmatprep.subr.bf16.mxu0 0
  %964 = vmatpush1.bf16.msra.mxu0 %v464
  %965 = vmatprep.subr.bf16.mxu0 0
  %966 = vmatpush1.bf16.msra.mxu0 %v463
  %967 = vmatprep.subr.bf16.mxu0 0
  %968 = vmatpush1.bf16.msra.mxu0 %v462
  %969 = vmatprep.subr.bf16.mxu0 0
  %970 = vmatpush1.bf16.msra.mxu0 %v461
  %971 = vmatprep.subr.bf16.mxu0 0
  %972 = vmatpush2.bf16.msra.mxu0 0
  %973 = vmatprep.subr.bf16.mxu0 0
  %974 = vmatpush2.bf16.msra.mxu0 0
  %975 = vmatprep.subr.bf16.mxu0 0
  %976 = vmatpush2.bf16.msra.mxu0 0
  %977 = vmatprep.subr.bf16.mxu0 0
  %978 = vmatpush2.bf16.msra.mxu0 0
  %979 = vmatprep.subr.bf16.mxu0 0
  %980 = vmatpush2.bf16.msra.mxu0 0
  %981 = vmatprep.subr.bf16.mxu0 0
  %982 = vmatpush2.bf16.msra.mxu0 0
  %983 = vmatprep.subr.bf16.mxu0 0
  %984 = vmatpush2.bf16.msra.mxu0 0
  %985 = vmatprep.subr.bf16.mxu0 0
  %986 = vmatpush2.bf16.msra.mxu0 %v479
  %987 = vmatprep.mubr.bf16.mxu0 %v767
  %988 = vmatmul.mubr.bf16.gmra.mxu0 %v730
  %v989 = vpop.f32.mrf.mxu0
  %v990 = vadd.f32 0.0, %v989
  %v991 = vpop.f32.mrf.mxu0
  %v992 = vpop.f32.mrf.mxu0
  %v993 = vadd.f32 0.0, %v992
  %v994 = vpop.f32.mrf.mxu0
  %995 = vmatprep.mubr.bf16.mxu0 %v770
  %996 = vmatmul.mubr.bf16.gmra.mxu0 %v732
  %v997 = vpop.f32.mrf.mxu0
  %v998 = vadd.f32 0.0, %v997
  %v999 = vpop.f32.mrf.mxu0
  %v1000 = vpop.f32.mrf.mxu0
  %v1001 = vadd.f32 0.0, %v1000
  %v1002 = vpop.f32.mrf.mxu0
  %1003 = vmatprep.mubr.bf16.mxu0 %v773
  %1004 = vmatmul.mubr.bf16.gmra.mxu0 %v734
  %v1005 = vpop.f32.mrf.mxu0
  %v1006 = vadd.f32 0.0, %v1005
  %v1007 = vpop.f32.mrf.mxu0
  %v1008 = vpop.f32.mrf.mxu0
  %v1009 = vadd.f32 0.0, %v1008
  %v1010 = vpop.f32.mrf.mxu0
  %1011 = vmatprep.mubr.bf16.mxu0 %v776
  %1012 = vmatmul.mubr.bf16.gmra.mxu0 %v736
  %v1013 = vpop.f32.mrf.mxu0
  %v1014 = vadd.f32 0.0, %v1013
  %v1015 = vpop.f32.mrf.mxu0
  %v1016 = vpop.f32.mrf.mxu0
  %v1017 = vadd.f32 0.0, %v1016
  %v1018 = vpop.f32.mrf.mxu0
  %1019 = vmatprep.mubr.bf16.mxu0 %v779
  %1020 = vmatmul.mubr.bf16.gmra.mxu0 %v738
  %v1021 = vpop.f32.mrf.mxu0
  %v1022 = vadd.f32 0.0, %v1021
  %v1023 = vpop.f32.mrf.mxu0
  %v1024 = vpop.f32.mrf.mxu0
  %v1025 = vadd.f32 0.0, %v1024
  %v1026 = vpop.f32.mrf.mxu0
  %1027 = vmatprep.mubr.bf16.mxu0 %v782
  %1028 = vmatmul.mubr.bf16.gmra.mxu0 %v740
  %v1029 = vpop.f32.mrf.mxu0
  %v1030 = vadd.f32 0.0, %v1029
  %v1031 = vpop.f32.mrf.mxu0
  %v1032 = vpop.f32.mrf.mxu0
  %v1033 = vadd.f32 0.0, %v1032
  %v1034 = vpop.f32.mrf.mxu0
  %1035 = vmatprep.mubr.bf16.mxu0 %v785
  %1036 = vmatmul.mubr.bf16.gmra.mxu0 %v742
  %v1037 = vpop.f32.mrf.mxu0
  %v1038 = vadd.f32 0.0, %v1037
  %v1039 = vpop.f32.mrf.mxu0
  %v1040 = vpop.f32.mrf.mxu0
  %v1041 = vadd.f32 0.0, %v1040
  %v1042 = vpop.f32.mrf.mxu0
  %1043 = vmatprep.mubr.bf16.mxu0 %v788
  %1044 = vmatmul.mubr.bf16.gmra.mxu0 %v744
  %v1045 = vpop.f32.mrf.mxu0
  %v1046 = vadd.f32 0.0, %v1045
  %v1047 = vpop.f32.mrf.mxu0
  %v1048 = vpop.f32.mrf.mxu0
  %v1049 = vadd.f32 0.0, %v1048
  %v1050 = vpop.f32.mrf.mxu0
  %1051 = vmatprep.mubr.bf16.mxu0 %v791
  %1052 = vmatmul.mubr.bf16.gmra.mxu0 %v746
  %v1053 = vpop.f32.mrf.mxu0
  %v1054 = vadd.f32 0.0, %v1053
  %v1055 = vpop.f32.mrf.mxu0
  %v1056 = vpop.f32.mrf.mxu0
  %v1057 = vadd.f32 0.0, %v1056
  %v1058 = vpop.f32.mrf.mxu0
  %1059 = vmatprep.mubr.bf16.mxu0 %v794
  %1060 = vmatmul.mubr.bf16.gmra.mxu0 %v748
  %v1061 = vpop.f32.mrf.mxu0
  %v1062 = vadd.f32 0.0, %v1061
  %v1063 = vpop.f32.mrf.mxu0
  %v1064 = vpop.f32.mrf.mxu0
  %v1065 = vadd.f32 0.0, %v1064
  %v1066 = vpop.f32.mrf.mxu0
  %1067 = vmatprep.mubr.bf16.mxu0 %v797
  %1068 = vmatmul.mubr.bf16.gmra.mxu0 %v750
  %v1069 = vpop.f32.mrf.mxu0
  %v1070 = vadd.f32 0.0, %v1069
  %v1071 = vpop.f32.mrf.mxu0
  %v1072 = vpop.f32.mrf.mxu0
  %v1073 = vadd.f32 0.0, %v1072
  %v1074 = vpop.f32.mrf.mxu0
  %1075 = vmatprep.mubr.bf16.mxu0 %v800
  %1076 = vmatmul.mubr.bf16.gmra.mxu0 %v752
  %v1077 = vpop.f32.mrf.mxu0
  %v1078 = vadd.f32 0.0, %v1077
  %v1079 = vpop.f32.mrf.mxu0
  %v1080 = vpop.f32.mrf.mxu0
  %v1081 = vadd.f32 0.0, %v1080
  %v1082 = vpop.f32.mrf.mxu0
  %1083 = vdwg.mxu0
  %v1084 = vmax.f32 %v931, %v990
  %v1085 = vmax.f32 %v932, %v993
  %v1086 = vmax.f32 %v933, %v998
  %v1087 = vmax.f32 %v934, %v1001
  %v1088 = vmax.f32 %v935, %v1006
  %v1089 = vmax.f32 %v936, %v1009
  %v1090 = vmax.f32 %v937, %v1014
  %v1091 = vmax.f32 %v938, %v1017
  %v1092 = vmax.f32 %v939, %v1022
  %v1093 = vmax.f32 %v940, %v1025
  %v1094 = vmax.f32 %v941, %v1030
  %v1095 = vmax.f32 %v942, %v1033
  %v1096 = vmax.f32 %v943, %v1038
  %v1097 = vmax.f32 %v944, %v1041
  %v1098 = vmax.f32 %v945, %v1046
  %v1099 = vmax.f32 %v946, %v1049
  %v1100 = vmax.f32 %v947, %v1054
  %v1101 = vmax.f32 %v948, %v1057
  %v1102 = vmax.f32 %v949, %v1062
  %v1103 = vmax.f32 %v950, %v1065
  %v1104 = vmax.f32 %v951, %v1070
  %v1105 = vmax.f32 %v952, %v1073
  %v1106 = vmax.f32 %v953, %v1078
  %v1107 = vmax.f32 %v954, %v1081
  %v1108 = vld [vmem:[%s2] sm:$0x1]
  %v1110 = vlaneseq
  %v1111 = vshrl.u32 %v1110, 7
  %v1112 = vsub.s32 0, %v1111
  %v1113 = vrot.slane %v1108, %v1112
  %v1115 = vadd.f32 %v1084, %v1113
  %v1116 = vadd.f32 %v1085, %v1113
  %v1117 = vadd.f32 %v1086, %v1113
  %v1118 = vadd.f32 %v1087, %v1113
  %v1119 = vadd.f32 %v1088, %v1113
  %v1120 = vadd.f32 %v1089, %v1113
  %v1121 = vadd.f32 %v1090, %v1113
  %v1122 = vadd.f32 %v1091, %v1113
  %v1123 = vadd.f32 %v1092, %v1113
  %v1124 = vadd.f32 %v1093, %v1113
  %v1125 = vadd.f32 %v1094, %v1113
  %v1126 = vadd.f32 %v1095, %v1113
  %v1127 = vadd.f32 %v1096, %v1113
  %v1128 = vadd.f32 %v1097, %v1113
  %v1129 = vadd.f32 %v1098, %v1113
  %v1130 = vadd.f32 %v1099, %v1113
  %v1131 = vadd.f32 %v1100, %v1113
  %v1132 = vadd.f32 %v1101, %v1113
  %v1133 = vadd.f32 %v1102, %v1113
  %v1134 = vadd.f32 %v1103, %v1113
  %v1135 = vadd.f32 %v1104, %v1113
  %v1136 = vadd.f32 %v1105, %v1113
  %v1137 = vadd.f32 %v1106, %v1113
  %v1138 = vadd.f32 %v1107, %v1113
  %v1139 = vmax.f32 %v1115, 0.0
  %v1140 = vmax.f32 %v1116, 0.0
  %v1141 = vmax.f32 %v1117, 0.0
  %v1142 = vmax.f32 %v1118, 0.0
  %v1143 = vmax.f32 %v1119, 0.0
  %v1144 = vmax.f32 %v1120, 0.0
  %v1145 = vmax.f32 %v1121, 0.0
  %v1146 = vmax.f32 %v1122, 0.0
  %v1147 = vmax.f32 %v1123, 0.0
  %v1148 = vmax.f32 %v1124, 0.0
  %v1149 = vmax.f32 %v1125, 0.0
  %v1150 = vmax.f32 %v1126, 0.0
  %v1151 = vmax.f32 %v1127, 0.0
  %v1152 = vmax.f32 %v1128, 0.0
  %v1153 = vmax.f32 %v1129, 0.0
  %v1154 = vmax.f32 %v1130, 0.0
  %v1155 = vmax.f32 %v1131, 0.0
  %v1156 = vmax.f32 %v1132, 0.0
  %v1157 = vmax.f32 %v1133, 0.0
  %v1158 = vmax.f32 %v1134, 0.0
  %v1159 = vmax.f32 %v1135, 0.0
  %v1160 = vmax.f32 %v1136, 0.0
  %v1161 = vmax.f32 %v1137, 0.0
  %v1162 = vmax.f32 %v1138, 0.0
  %v1163 = vpack.c.bf16 %v1140, %v1139
  %v1164 = vpack.c.bf16 %v1142, %v1141
  %v1165 = vpack.c.bf16 %v1144, %v1143
  %v1166 = vpack.c.bf16 %v1146, %v1145
  %v1167 = vpack.c.bf16 %v1148, %v1147
  %v1168 = vpack.c.bf16 %v1150, %v1149
  %v1169 = vpack.c.bf16 %v1152, %v1151
  %v1170 = vpack.c.bf16 %v1154, %v1153
  %v1171 = vpack.c.bf16 %v1156, %v1155
  %v1172 = vpack.c.bf16 %v1158, %v1157
  %v1173 = vpack.c.bf16 %v1160, %v1159
  %v1174 = vpack.c.bf16 %v1162, %v1161
  %v1175 = vld [vmem:[%s3] sm:$0xf]
  %v1176 = vld [vmem:[%s3 + $0x4] sm:$0xf]
  %v1177 = vld [vmem:[%s3 + $0x8] sm:$0xf]
  %v1178 = vld [vmem:[%s3 + $0xc] sm:$0xf]
  %v1179 = vld [vmem:[%s3 + $0x10] sm:$0xf]
  %v1180 = vld [vmem:[%s3 + $0x14] sm:$0xf]
  %v1181 = vld [vmem:[%s3 + $0x18] sm:$0xf]
  %v1182 = vld [vmem:[%s3 + $0x1c] sm:$0xf]
  %v1183 = vld [vmem:[%s3 + $0x20] sm:$0xf]
  %v1184 = vld [vmem:[%s3 + $0x24] sm:$0xf]
  %v1185 = vld [vmem:[%s3 + $0x28] sm:$0xf]
  %v1186 = vld [vmem:[%s3 + $0x2c] sm:$0xf]
  %v1187 = vld [vmem:[%s3 + $0x30] sm:$0xf]
  %v1188 = vld [vmem:[%s3 + $0x34] sm:$0xf]
  %v1189 = vld [vmem:[%s3 + $0x38] sm:$0xf]
  %v1190 = vld [vmem:[%s3 + $0x3c] sm:$0xf]
  %s1191 = scalar_lea.vmem %s3, 64
  %v1192 = vld [vmem:[%s1191] sm:$0xf]
  %v1193 = vld [vmem:[%s1191 + $0x4] sm:$0xf]
  %v1194 = vld [vmem:[%s1191 + $0x8] sm:$0xf]
  %v1195 = vld [vmem:[%s1191 + $0xc] sm:$0xf]
  %v1196 = vld [vmem:[%s1191 + $0x10] sm:$0xf]
  %v1197 = vld [vmem:[%s1191 + $0x14] sm:$0xf]
  %v1198 = vld [vmem:[%s1191 + $0x18] sm:$0xf]
  %v1199 = vld [vmem:[%s1191 + $0x1c] sm:$0xf]
  %v1200 = vld [vmem:[%s1191 + $0x20] sm:$0xf]
  %v1201 = vld [vmem:[%s1191 + $0x24] sm:$0xf]
  %v1202 = vld [vmem:[%s1191 + $0x28] sm:$0xf]
  %v1203 = vld [vmem:[%s1191 + $0x2c] sm:$0xf]
  %v1204 = vld [vmem:[%s1191 + $0x30] sm:$0xf]
  %v1205 = vld [vmem:[%s1191 + $0x34] sm:$0xf]
  %v1206 = vld [vmem:[%s1191 + $0x38] sm:$0xf]
  %v1207 = vld [vmem:[%s1191 + $0x3c] sm:$0xf]
  %s1208 = scalar_lea.vmem %s3, 128
  %v1209 = vld [vmem:[%s1208] sm:$0xf]
  %v1210 = vld [vmem:[%s1208 + $0x4] sm:$0xf]
  %v1211 = vld [vmem:[%s1208 + $0x8] sm:$0xf]
  %v1212 = vld [vmem:[%s1208 + $0xc] sm:$0xf]
  %v1213 = vld [vmem:[%s1208 + $0x10] sm:$0xf]
  %v1214 = vld [vmem:[%s1208 + $0x14] sm:$0xf]
  %v1215 = vld [vmem:[%s1208 + $0x18] sm:$0xf]
  %v1216 = vld [vmem:[%s1208 + $0x1c] sm:$0xf]
  %v1217 = vld [vmem:[%s1208 + $0x20] sm:$0xf]
  %v1218 = vld [vmem:[%s1208 + $0x24] sm:$0xf]
  %v1219 = vld [vmem:[%s1208 + $0x28] sm:$0xf]
  %v1220 = vld [vmem:[%s1208 + $0x2c] sm:$0xf]
  %v1221 = vld [vmem:[%s1208 + $0x30] sm:$0xf]
  %v1222 = vld [vmem:[%s1208 + $0x34] sm:$0xf]
  %v1223 = vld [vmem:[%s1208 + $0x38] sm:$0xf]
  %v1224 = vld [vmem:[%s1208 + $0x3c] sm:$0xf]
  %v1241 = vunpack.c.l.b16 %v1209
  %v1242 = vunpack.c.l.b16 %v1210
  %v1243 = vunpack.c.l.b16 %v1211
  %v1244 = vunpack.c.l.b16 %v1212
  %v1245 = vunpack.c.l.b16 %v1213
  %v1246 = vunpack.c.l.b16 %v1214
  %v1247 = vunpack.c.l.b16 %v1215
  %v1248 = vunpack.c.l.b16 %v1216
  %v1249 = vunpack.c.l.b16 %v1217
  %v1250 = vunpack.c.l.b16 %v1218
  %v1251 = vunpack.c.l.b16 %v1219
  %v1252 = vunpack.c.l.b16 %v1220
  %v1253 = vunpack.c.l.b16 %v1221
  %v1254 = vunpack.c.l.b16 %v1222
  %v1255 = vunpack.c.l.b16 %v1223
  %v1256 = vunpack.c.l.b16 %v1224
  %v1257 = vpack.c.b16 %v1242, %v1241
  %v1258 = vpack.c.b16 %v1244, %v1243
  %v1259 = vpack.c.b16 %v1246, %v1245
  %v1260 = vpack.c.b16 %v1248, %v1247
  %v1261 = vpack.c.b16 %v1250, %v1249
  %v1262 = vpack.c.b16 %v1252, %v1251
  %v1263 = vpack.c.b16 %v1254, %v1253
  %v1264 = vpack.c.b16 %v1256, %v1255
  %1273 = vmatprep.subr.bf16.mxu0 0
  %1274 = vmatpush1.bf16.msra.mxu0 %v1264
  %1275 = vmatprep.subr.bf16.mxu0 0
  %1276 = vmatpush1.bf16.msra.mxu0 %v1263
  %1277 = vmatprep.subr.bf16.mxu0 0
  %1278 = vmatpush1.bf16.msra.mxu0 %v1262
  %1279 = vmatprep.subr.bf16.mxu0 0
  %1280 = vmatpush1.bf16.msra.mxu0 %v1261
  %1281 = vmatprep.subr.bf16.mxu0 0
  %1282 = vmatpush1.bf16.msra.mxu0 %v1260
  %1283 = vmatprep.subr.bf16.mxu0 0
  %1284 = vmatpush1.bf16.msra.mxu0 %v1259
  %1285 = vmatprep.subr.bf16.mxu0 0
  %1286 = vmatpush1.bf16.msra.mxu0 %v1258
  %1287 = vmatprep.subr.bf16.mxu0 0
  %1288 = vmatpush1.bf16.msra.mxu0 %v1257
  %1289 = vmatprep.subr.bf16.mxu0 0
  %1290 = vmatpush2.bf16.msra.mxu0 0
  %1291 = vmatprep.subr.bf16.mxu0 0
  %1292 = vmatpush2.bf16.msra.mxu0 0
  %1293 = vmatprep.subr.bf16.mxu0 0
  %1294 = vmatpush2.bf16.msra.mxu0 0
  %1295 = vmatprep.subr.bf16.mxu0 0
  %1296 = vmatpush2.bf16.msra.mxu0 0
  %1297 = vmatprep.subr.bf16.mxu0 0
  %1298 = vmatpush2.bf16.msra.mxu0 0
  %1299 = vmatprep.subr.bf16.mxu0 0
  %1300 = vmatpush2.bf16.msra.mxu0 0
  %1301 = vmatprep.subr.bf16.mxu0 0
  %1302 = vmatpush2.bf16.msra.mxu0 0
  %1303 = vmatprep.subr.bf16.mxu0 0
  %1304 = vmatpush2.bf16.msra.mxu0 0
  %1305 = vmatprep.mubr.bf16.mxu0 0
  %1306 = vmatmul.mubr.bf16.gmra.mxu0 %v1164
  %v1307 = vpop.f32.mrf.mxu0
  %v1308 = vadd.f32 0.0, %v1307
  %v1309 = vpop.f32.mrf.mxu0
  %v1310 = vpop.f32.mrf.mxu0
  %v1311 = vadd.f32 0.0, %v1310
  %v1312 = vpop.f32.mrf.mxu0
  %1313 = vmatprep.mubr.bf16.mxu0 0
  %1314 = vmatmul.mubr.bf16.gmra.mxu0 %v1165
  %v1315 = vpop.f32.mrf.mxu0
  %v1316 = vadd.f32 0.0, %v1315
  %v1317 = vpop.f32.mrf.mxu0
  %v1318 = vpop.f32.mrf.mxu0
  %v1319 = vadd.f32 0.0, %v1318
  %v1320 = vpop.f32.mrf.mxu0
  %1321 = vmatprep.mubr.bf16.mxu0 0
  %1322 = vmatmul.mubr.bf16.gmra.mxu0 %v1166
  %v1323 = vpop.f32.mrf.mxu0
  %v1324 = vadd.f32 0.0, %v1323
  %v1325 = vpop.f32.mrf.mxu0
  %v1326 = vpop.f32.mrf.mxu0
  %v1327 = vadd.f32 0.0, %v1326
  %v1328 = vpop.f32.mrf.mxu0
  %1329 = vmatprep.mubr.bf16.mxu0 0
  %1330 = vmatmul.mubr.bf16.gmra.mxu0 %v1167
  %v1331 = vpop.f32.mrf.mxu0
  %v1332 = vadd.f32 0.0, %v1331
  %v1333 = vpop.f32.mrf.mxu0
  %v1334 = vpop.f32.mrf.mxu0
  %v1335 = vadd.f32 0.0, %v1334
  %v1336 = vpop.f32.mrf.mxu0
  %1337 = vmatprep.mubr.bf16.mxu0 0
  %1338 = vmatmul.mubr.bf16.gmra.mxu0 %v1168
  %v1339 = vpop.f32.mrf.mxu0
  %v1340 = vadd.f32 0.0, %v1339
  %v1341 = vpop.f32.mrf.mxu0
  %v1342 = vpop.f32.mrf.mxu0
  %v1343 = vadd.f32 0.0, %v1342
  %v1344 = vpop.f32.mrf.mxu0
  %1345 = vmatprep.mubr.bf16.mxu0 0
  %1346 = vmatmul.mubr.bf16.gmra.mxu0 %v1169
  %v1347 = vpop.f32.mrf.mxu0
  %v1348 = vadd.f32 0.0, %v1347
  %v1349 = vpop.f32.mrf.mxu0
  %v1350 = vpop.f32.mrf.mxu0
  %v1351 = vadd.f32 0.0, %v1350
  %v1352 = vpop.f32.mrf.mxu0
  %1353 = vmatprep.mubr.bf16.mxu0 0
  %1354 = vmatmul.mubr.bf16.gmra.mxu0 %v1170
  %v1355 = vpop.f32.mrf.mxu0
  %v1356 = vadd.f32 0.0, %v1355
  %v1357 = vpop.f32.mrf.mxu0
  %v1358 = vpop.f32.mrf.mxu0
  %v1359 = vadd.f32 0.0, %v1358
  %v1360 = vpop.f32.mrf.mxu0
  %1361 = vmatprep.mubr.bf16.mxu0 0
  %1362 = vmatmul.mubr.bf16.gmra.mxu0 %v1171
  %v1363 = vpop.f32.mrf.mxu0
  %v1364 = vadd.f32 0.0, %v1363
  %v1365 = vpop.f32.mrf.mxu0
  %v1366 = vpop.f32.mrf.mxu0
  %v1367 = vadd.f32 0.0, %v1366
  %v1368 = vpop.f32.mrf.mxu0
  %1369 = vdwg.mxu0
  %v1386 = vunpack.c.l.b16 %v1175
  %v1387 = vunpack.c.l.b16 %v1176
  %v1388 = vunpack.c.l.b16 %v1177
  %v1389 = vunpack.c.l.b16 %v1178
  %v1390 = vunpack.c.l.b16 %v1179
  %v1391 = vunpack.c.l.b16 %v1180
  %v1392 = vunpack.c.l.b16 %v1181
  %v1393 = vunpack.c.l.b16 %v1182
  %v1394 = vunpack.c.l.b16 %v1183
  %v1395 = vunpack.c.l.b16 %v1184
  %v1396 = vunpack.c.l.b16 %v1185
  %v1397 = vunpack.c.l.b16 %v1186
  %v1398 = vunpack.c.l.b16 %v1187
  %v1399 = vunpack.c.l.b16 %v1188
  %v1400 = vunpack.c.l.b16 %v1189
  %v1401 = vunpack.c.l.b16 %v1190
  %v1402 = vpack.c.b16 %v1387, %v1386
  %v1403 = vpack.c.b16 %v1389, %v1388
  %v1404 = vpack.c.b16 %v1391, %v1390
  %v1405 = vpack.c.b16 %v1393, %v1392
  %v1406 = vpack.c.b16 %v1395, %v1394
  %v1407 = vpack.c.b16 %v1397, %v1396
  %v1408 = vpack.c.b16 %v1399, %v1398
  %v1409 = vpack.c.b16 %v1401, %v1400
  %1418 = vmatprep.subr.bf16.mxu0 0
  %1419 = vmatpush1.bf16.msra.mxu0 %v1409
  %1420 = vmatprep.subr.bf16.mxu0 0
  %1421 = vmatpush1.bf16.msra.mxu0 %v1408
  %1422 = vmatprep.subr.bf16.mxu0 0
  %1423 = vmatpush1.bf16.msra.mxu0 %v1407
  %1424 = vmatprep.subr.bf16.mxu0 0
  %1425 = vmatpush1.bf16.msra.mxu0 %v1406
  %1426 = vmatprep.subr.bf16.mxu0 0
  %1427 = vmatpush1.bf16.msra.mxu0 %v1405
  %1428 = vmatprep.subr.bf16.mxu0 0
  %1429 = vmatpush1.bf16.msra.mxu0 %v1404
  %1430 = vmatprep.subr.bf16.mxu0 0
  %1431 = vmatpush1.bf16.msra.mxu0 %v1403
  %1432 = vmatprep.subr.bf16.mxu0 0
  %1433 = vmatpush1.bf16.msra.mxu0 %v1402
  %1434 = vmatprep.subr.bf16.mxu0 0
  %1435 = vmatpush2.bf16.msra.mxu0 0
  %1436 = vmatprep.subr.bf16.mxu0 0
  %1437 = vmatpush2.bf16.msra.mxu0 0
  %1438 = vmatprep.subr.bf16.mxu0 0
  %1439 = vmatpush2.bf16.msra.mxu0 0
  %1440 = vmatprep.subr.bf16.mxu0 0
  %1441 = vmatpush2.bf16.msra.mxu0 0
  %1442 = vmatprep.subr.bf16.mxu0 0
  %1443 = vmatpush2.bf16.msra.mxu0 0
  %1444 = vmatprep.subr.bf16.mxu0 0
  %1445 = vmatpush2.bf16.msra.mxu0 0
  %1446 = vmatprep.subr.bf16.mxu0 0
  %1447 = vmatpush2.bf16.msra.mxu0 0
  %1448 = vmatprep.subr.bf16.mxu0 0
  %1449 = vmatpush2.bf16.msra.mxu0 0
  %1450 = vmatprep.mubr.bf16.mxu0 0
  %1451 = vmatmul.mubr.bf16.gmra.mxu0 %v1163
  %v1452 = vpop.f32.mrf.mxu0
  %v1453 = vadd.f32 %v1308, %v1452
  %v1454 = vpop.f32.mrf.mxu0
  %v1455 = vpop.f32.mrf.mxu0
  %v1456 = vadd.f32 %v1311, %v1455
  %v1457 = vpop.f32.mrf.mxu0
  %1458 = vmatprep.mubr.bf16.mxu0 0
  %1459 = vmatmul.mubr.bf16.gmra.mxu0 %v1164
  %v1460 = vpop.f32.mrf.mxu0
  %v1461 = vadd.f32 %v1316, %v1460
  %v1462 = vpop.f32.mrf.mxu0
  %v1463 = vpop.f32.mrf.mxu0
  %v1464 = vadd.f32 %v1319, %v1463
  %v1465 = vpop.f32.mrf.mxu0
  %1466 = vmatprep.mubr.bf16.mxu0 0
  %1467 = vmatmul.mubr.bf16.gmra.mxu0 %v1165
  %v1468 = vpop.f32.mrf.mxu0
  %v1469 = vadd.f32 %v1324, %v1468
  %v1470 = vpop.f32.mrf.mxu0
  %v1471 = vpop.f32.mrf.mxu0
  %v1472 = vadd.f32 %v1327, %v1471
  %v1473 = vpop.f32.mrf.mxu0
  %1474 = vmatprep.mubr.bf16.mxu0 0
  %1475 = vmatmul.mubr.bf16.gmra.mxu0 %v1166
  %v1476 = vpop.f32.mrf.mxu0
  %v1477 = vadd.f32 %v1332, %v1476
  %v1478 = vpop.f32.mrf.mxu0
  %v1479 = vpop.f32.mrf.mxu0
  %v1480 = vadd.f32 %v1335, %v1479
  %v1481 = vpop.f32.mrf.mxu0
  %1482 = vmatprep.mubr.bf16.mxu0 0
  %1483 = vmatmul.mubr.bf16.gmra.mxu0 %v1167
  %v1484 = vpop.f32.mrf.mxu0
  %v1485 = vadd.f32 %v1340, %v1484
  %v1486 = vpop.f32.mrf.mxu0
  %v1487 = vpop.f32.mrf.mxu0
  %v1488 = vadd.f32 %v1343, %v1487
  %v1489 = vpop.f32.mrf.mxu0
  %1490 = vmatprep.mubr.bf16.mxu0 0
  %1491 = vmatmul.mubr.bf16.gmra.mxu0 %v1168
  %v1492 = vpop.f32.mrf.mxu0
  %v1493 = vadd.f32 %v1348, %v1492
  %v1494 = vpop.f32.mrf.mxu0
  %v1495 = vpop.f32.mrf.mxu0
  %v1496 = vadd.f32 %v1351, %v1495
  %v1497 = vpop.f32.mrf.mxu0
  %1498 = vmatprep.mubr.bf16.mxu0 0
  %1499 = vmatmul.mubr.bf16.gmra.mxu0 %v1169
  %v1500 = vpop.f32.mrf.mxu0
  %v1501 = vadd.f32 %v1356, %v1500
  %v1502 = vpop.f32.mrf.mxu0
  %v1503 = vpop.f32.mrf.mxu0
  %v1504 = vadd.f32 %v1359, %v1503
  %v1505 = vpop.f32.mrf.mxu0
  %1506 = vmatprep.mubr.bf16.mxu0 0
  %1507 = vmatmul.mubr.bf16.gmra.mxu0 %v1170
  %v1508 = vpop.f32.mrf.mxu0
  %v1509 = vadd.f32 %v1364, %v1508
  %v1510 = vpop.f32.mrf.mxu0
  %v1511 = vpop.f32.mrf.mxu0
  %v1512 = vadd.f32 %v1367, %v1511
  %v1513 = vpop.f32.mrf.mxu0
  %1514 = vdwg.mxu0
  %s1515 = scalar_lea.vmem %s3, 192
  %v1516 = vld [vmem:[%s1515] sm:$0xf]
  %v1517 = vld [vmem:[%s1515 + $0x4] sm:$0xf]
  %v1518 = vld [vmem:[%s1515 + $0x8] sm:$0xf]
  %v1519 = vld [vmem:[%s1515 + $0xc] sm:$0xf]
  %v1520 = vld [vmem:[%s1515 + $0x10] sm:$0xf]
  %v1521 = vld [vmem:[%s1515 + $0x14] sm:$0xf]
  %v1522 = vld [vmem:[%s1515 + $0x18] sm:$0xf]
  %v1523 = vld [vmem:[%s1515 + $0x1c] sm:$0xf]
  %v1524 = vld [vmem:[%s1515 + $0x20] sm:$0xf]
  %v1525 = vld [vmem:[%s1515 + $0x24] sm:$0xf]
  %v1526 = vld [vmem:[%s1515 + $0x28] sm:$0xf]
  %v1527 = vld [vmem:[%s1515 + $0x2c] sm:$0xf]
  %v1528 = vld [vmem:[%s1515 + $0x30] sm:$0xf]
  %v1529 = vld [vmem:[%s1515 + $0x34] sm:$0xf]
  %v1530 = vld [vmem:[%s1515 + $0x38] sm:$0xf]
  %v1531 = vld [vmem:[%s1515 + $0x3c] sm:$0xf]
  %v1548 = vunpack.c.l.b16 %v1516
  %v1549 = vunpack.c.l.b16 %v1517
  %v1550 = vunpack.c.l.b16 %v1518
  %v1551 = vunpack.c.l.b16 %v1519
  %v1552 = vunpack.c.l.b16 %v1520
  %v1553 = vunpack.c.l.b16 %v1521
  %v1554 = vunpack.c.l.b16 %v1522
  %v1555 = vunpack.c.l.b16 %v1523
  %v1556 = vunpack.c.l.b16 %v1524
  %v1557 = vunpack.c.l.b16 %v1525
  %v1558 = vunpack.c.l.b16 %v1526
  %v1559 = vunpack.c.l.b16 %v1527
  %v1560 = vunpack.c.l.b16 %v1528
  %v1561 = vunpack.c.l.b16 %v1529
  %v1562 = vunpack.c.l.b16 %v1530
  %v1563 = vunpack.c.l.b16 %v1531
  %v1564 = vpack.c.b16 %v1549, %v1548
  %v1565 = vpack.c.b16 %v1551, %v1550
  %v1566 = vpack.c.b16 %v1553, %v1552
  %v1567 = vpack.c.b16 %v1555, %v1554
  %v1568 = vpack.c.b16 %v1557, %v1556
  %v1569 = vpack.c.b16 %v1559, %v1558
  %v1570 = vpack.c.b16 %v1561, %v1560
  %v1571 = vpack.c.b16 %v1563, %v1562
  %1580 = vmatprep.subr.bf16.mxu0 0
  %1581 = vmatpush1.bf16.msra.mxu0 %v1571
  %1582 = vmatprep.subr.bf16.mxu0 0
  %1583 = vmatpush1.bf16.msra.mxu0 %v1570
  %1584 = vmatprep.subr.bf16.mxu0 0
  %1585 = vmatpush1.bf16.msra.mxu0 %v1569
  %1586 = vmatprep.subr.bf16.mxu0 0
  %1587 = vmatpush1.bf16.msra.mxu0 %v1568
  %1588 = vmatprep.subr.bf16.mxu0 0
  %1589 = vmatpush1.bf16.msra.mxu0 %v1567
  %1590 = vmatprep.subr.bf16.mxu0 0
  %1591 = vmatpush1.bf16.msra.mxu0 %v1566
  %1592 = vmatprep.subr.bf16.mxu0 0
  %1593 = vmatpush1.bf16.msra.mxu0 %v1565
  %1594 = vmatprep.subr.bf16.mxu0 0
  %1595 = vmatpush1.bf16.msra.mxu0 %v1564
  %1596 = vmatprep.subr.bf16.mxu0 0
  %1597 = vmatpush2.bf16.msra.mxu0 0
  %1598 = vmatprep.subr.bf16.mxu0 0
  %1599 = vmatpush2.bf16.msra.mxu0 0
  %1600 = vmatprep.subr.bf16.mxu0 0
  %1601 = vmatpush2.bf16.msra.mxu0 0
  %1602 = vmatprep.subr.bf16.mxu0 0
  %1603 = vmatpush2.bf16.msra.mxu0 0
  %1604 = vmatprep.subr.bf16.mxu0 0
  %1605 = vmatpush2.bf16.msra.mxu0 0
  %1606 = vmatprep.subr.bf16.mxu0 0
  %1607 = vmatpush2.bf16.msra.mxu0 0
  %1608 = vmatprep.subr.bf16.mxu0 0
  %1609 = vmatpush2.bf16.msra.mxu0 0
  %1610 = vmatprep.subr.bf16.mxu0 0
  %1611 = vmatpush2.bf16.msra.mxu0 0
  %1612 = vmatprep.mubr.bf16.mxu0 0
  %1613 = vmatmul.mubr.bf16.gmra.mxu0 %v1164
  %v1614 = vpop.f32.mrf.mxu0
  %v1615 = vadd.f32 0.0, %v1614
  %v1616 = vpop.f32.mrf.mxu0
  %v1617 = vpop.f32.mrf.mxu0
  %v1618 = vadd.f32 0.0, %v1617
  %v1619 = vpop.f32.mrf.mxu0
  %1620 = vmatprep.mubr.bf16.mxu0 0
  %1621 = vmatmul.mubr.bf16.gmra.mxu0 %v1165
  %v1622 = vpop.f32.mrf.mxu0
  %v1623 = vadd.f32 0.0, %v1622
  %v1624 = vpop.f32.mrf.mxu0
  %v1625 = vpop.f32.mrf.mxu0
  %v1626 = vadd.f32 0.0, %v1625
  %v1627 = vpop.f32.mrf.mxu0
  %1628 = vmatprep.mubr.bf16.mxu0 0
  %1629 = vmatmul.mubr.bf16.gmra.mxu0 %v1166
  %v1630 = vpop.f32.mrf.mxu0
  %v1631 = vadd.f32 0.0, %v1630
  %v1632 = vpop.f32.mrf.mxu0
  %v1633 = vpop.f32.mrf.mxu0
  %v1634 = vadd.f32 0.0, %v1633
  %v1635 = vpop.f32.mrf.mxu0
  %1636 = vmatprep.mubr.bf16.mxu0 0
  %1637 = vmatmul.mubr.bf16.gmra.mxu0 %v1167
  %v1638 = vpop.f32.mrf.mxu0
  %v1639 = vadd.f32 0.0, %v1638
  %v1640 = vpop.f32.mrf.mxu0
  %v1641 = vpop.f32.mrf.mxu0
  %v1642 = vadd.f32 0.0, %v1641
  %v1643 = vpop.f32.mrf.mxu0
  %1644 = vmatprep.mubr.bf16.mxu0 0
  %1645 = vmatmul.mubr.bf16.gmra.mxu0 %v1168
  %v1646 = vpop.f32.mrf.mxu0
  %v1647 = vadd.f32 0.0, %v1646
  %v1648 = vpop.f32.mrf.mxu0
  %v1649 = vpop.f32.mrf.mxu0
  %v1650 = vadd.f32 0.0, %v1649
  %v1651 = vpop.f32.mrf.mxu0
  %1652 = vmatprep.mubr.bf16.mxu0 0
  %1653 = vmatmul.mubr.bf16.gmra.mxu0 %v1169
  %v1654 = vpop.f32.mrf.mxu0
  %v1655 = vadd.f32 0.0, %v1654
  %v1656 = vpop.f32.mrf.mxu0
  %v1657 = vpop.f32.mrf.mxu0
  %v1658 = vadd.f32 0.0, %v1657
  %v1659 = vpop.f32.mrf.mxu0
  %1660 = vmatprep.mubr.bf16.mxu0 0
  %1661 = vmatmul.mubr.bf16.gmra.mxu0 %v1170
  %v1662 = vpop.f32.mrf.mxu0
  %v1663 = vadd.f32 0.0, %v1662
  %v1664 = vpop.f32.mrf.mxu0
  %v1665 = vpop.f32.mrf.mxu0
  %v1666 = vadd.f32 0.0, %v1665
  %v1667 = vpop.f32.mrf.mxu0
  %1668 = vmatprep.mubr.bf16.mxu0 0
  %1669 = vmatmul.mubr.bf16.gmra.mxu0 %v1171
  %v1670 = vpop.f32.mrf.mxu0
  %v1671 = vadd.f32 0.0, %v1670
  %v1672 = vpop.f32.mrf.mxu0
  %v1673 = vpop.f32.mrf.mxu0
  %v1674 = vadd.f32 0.0, %v1673
  %v1675 = vpop.f32.mrf.mxu0
  %1676 = vdwg.mxu0
  %v1693 = vunpack.c.l.b16 %v1192
  %v1694 = vunpack.c.l.b16 %v1193
  %v1695 = vunpack.c.l.b16 %v1194
  %v1696 = vunpack.c.l.b16 %v1195
  %v1697 = vunpack.c.l.b16 %v1196
  %v1698 = vunpack.c.l.b16 %v1197
  %v1699 = vunpack.c.l.b16 %v1198
  %v1700 = vunpack.c.l.b16 %v1199
  %v1701 = vunpack.c.l.b16 %v1200
  %v1702 = vunpack.c.l.b16 %v1201
  %v1703 = vunpack.c.l.b16 %v1202
  %v1704 = vunpack.c.l.b16 %v1203
  %v1705 = vunpack.c.l.b16 %v1204
  %v1706 = vunpack.c.l.b16 %v1205
  %v1707 = vunpack.c.l.b16 %v1206
  %v1708 = vunpack.c.l.b16 %v1207
  %v1709 = vpack.c.b16 %v1694, %v1693
  %v1710 = vpack.c.b16 %v1696, %v1695
  %v1711 = vpack.c.b16 %v1698, %v1697
  %v1712 = vpack.c.b16 %v1700, %v1699
  %v1713 = vpack.c.b16 %v1702, %v1701
  %v1714 = vpack.c.b16 %v1704, %v1703
  %v1715 = vpack.c.b16 %v1706, %v1705
  %v1716 = vpack.c.b16 %v1708, %v1707
  %1725 = vmatprep.subr.bf16.mxu0 0
  %1726 = vmatpush1.bf16.msra.mxu0 %v1716
  %1727 = vmatprep.subr.bf16.mxu0 0
  %1728 = vmatpush1.bf16.msra.mxu0 %v1715
  %1729 = vmatprep.subr.bf16.mxu0 0
  %1730 = vmatpush1.bf16.msra.mxu0 %v1714
  %1731 = vmatprep.subr.bf16.mxu0 0
  %1732 = vmatpush1.bf16.msra.mxu0 %v1713
  %1733 = vmatprep.subr.bf16.mxu0 0
  %1734 = vmatpush1.bf16.msra.mxu0 %v1712
  %1735 = vmatprep.subr.bf16.mxu0 0
  %1736 = vmatpush1.bf16.msra.mxu0 %v1711
  %1737 = vmatprep.subr.bf16.mxu0 0
  %1738 = vmatpush1.bf16.msra.mxu0 %v1710
  %1739 = vmatprep.subr.bf16.mxu0 0
  %1740 = vmatpush1.bf16.msra.mxu0 %v1709
  %1741 = vmatprep.subr.bf16.mxu0 0
  %1742 = vmatpush2.bf16.msra.mxu0 0
  %1743 = vmatprep.subr.bf16.mxu0 0
  %1744 = vmatpush2.bf16.msra.mxu0 0
  %1745 = vmatprep.subr.bf16.mxu0 0
  %1746 = vmatpush2.bf16.msra.mxu0 0
  %1747 = vmatprep.subr.bf16.mxu0 0
  %1748 = vmatpush2.bf16.msra.mxu0 0
  %1749 = vmatprep.subr.bf16.mxu0 0
  %1750 = vmatpush2.bf16.msra.mxu0 0
  %1751 = vmatprep.subr.bf16.mxu0 0
  %1752 = vmatpush2.bf16.msra.mxu0 0
  %1753 = vmatprep.subr.bf16.mxu0 0
  %1754 = vmatpush2.bf16.msra.mxu0 0
  %1755 = vmatprep.subr.bf16.mxu0 0
  %1756 = vmatpush2.bf16.msra.mxu0 0
  %1757 = vmatprep.mubr.bf16.mxu0 0
  %1758 = vmatmul.mubr.bf16.gmra.mxu0 %v1163
  %v1759 = vpop.f32.mrf.mxu0
  %v1760 = vadd.f32 %v1615, %v1759
  %v1761 = vpop.f32.mrf.mxu0
  %v1762 = vpop.f32.mrf.mxu0
  %v1763 = vadd.f32 %v1618, %v1762
  %v1764 = vpop.f32.mrf.mxu0
  %1765 = vmatprep.mubr.bf16.mxu0 0
  %1766 = vmatmul.mubr.bf16.gmra.mxu0 %v1164
  %v1767 = vpop.f32.mrf.mxu0
  %v1768 = vadd.f32 %v1623, %v1767
  %v1769 = vpop.f32.mrf.mxu0
  %v1770 = vpop.f32.mrf.mxu0
  %v1771 = vadd.f32 %v1626, %v1770
  %v1772 = vpop.f32.mrf.mxu0
  %1773 = vmatprep.mubr.bf16.mxu0 0
  %1774 = vmatmul.mubr.bf16.gmra.mxu0 %v1165
  %v1775 = vpop.f32.mrf.mxu0
  %v1776 = vadd.f32 %v1631, %v1775
  %v1777 = vpop.f32.mrf.mxu0
  %v1778 = vpop.f32.mrf.mxu0
  %v1779 = vadd.f32 %v1634, %v1778
  %v1780 = vpop.f32.mrf.mxu0
  %1781 = vmatprep.mubr.bf16.mxu0 0
  %1782 = vmatmul.mubr.bf16.gmra.mxu0 %v1166
  %v1783 = vpop.f32.mrf.mxu0
  %v1784 = vadd.f32 %v1639, %v1783
  %v1785 = vpop.f32.mrf.mxu0
  %v1786 = vpop.f32.mrf.mxu0
  %v1787 = vadd.f32 %v1642, %v1786
  %v1788 = vpop.f32.mrf.mxu0
  %1789 = vmatprep.mubr.bf16.mxu0 0
  %1790 = vmatmul.mubr.bf16.gmra.mxu0 %v1167
  %v1791 = vpop.f32.mrf.mxu0
  %v1792 = vadd.f32 %v1647, %v1791
  %v1793 = vpop.f32.mrf.mxu0
  %v1794 = vpop.f32.mrf.mxu0
  %v1795 = vadd.f32 %v1650, %v1794
  %v1796 = vpop.f32.mrf.mxu0
  %1797 = vmatprep.mubr.bf16.mxu0 0
  %1798 = vmatmul.mubr.bf16.gmra.mxu0 %v1168
  %v1799 = vpop.f32.mrf.mxu0
  %v1800 = vadd.f32 %v1655, %v1799
  %v1801 = vpop.f32.mrf.mxu0
  %v1802 = vpop.f32.mrf.mxu0
  %v1803 = vadd.f32 %v1658, %v1802
  %v1804 = vpop.f32.mrf.mxu0
  %1805 = vmatprep.mubr.bf16.mxu0 0
  %1806 = vmatmul.mubr.bf16.gmra.mxu0 %v1169
  %v1807 = vpop.f32.mrf.mxu0
  %v1808 = vadd.f32 %v1663, %v1807
  %v1809 = vpop.f32.mrf.mxu0
  %v1810 = vpop.f32.mrf.mxu0
  %v1811 = vadd.f32 %v1666, %v1810
  %v1812 = vpop.f32.mrf.mxu0
  %1813 = vmatprep.mubr.bf16.mxu0 0
  %1814 = vmatmul.mubr.bf16.gmra.mxu0 %v1170
  %v1815 = vpop.f32.mrf.mxu0
  %v1816 = vadd.f32 %v1671, %v1815
  %v1817 = vpop.f32.mrf.mxu0
  %v1818 = vpop.f32.mrf.mxu0
  %v1819 = vadd.f32 %v1674, %v1818
  %v1820 = vpop.f32.mrf.mxu0
  %1821 = vdwg.mxu0
  %s1822 = scalar_lea.vmem %s3, 256
  %v1823 = vld [vmem:[%s1822] sm:$0xf]
  %v1824 = vld [vmem:[%s1822 + $0x4] sm:$0xf]
  %v1825 = vld [vmem:[%s1822 + $0x8] sm:$0xf]
  %v1826 = vld [vmem:[%s1822 + $0xc] sm:$0xf]
  %v1827 = vld [vmem:[%s1822 + $0x10] sm:$0xf]
  %v1828 = vld [vmem:[%s1822 + $0x14] sm:$0xf]
  %v1829 = vld [vmem:[%s1822 + $0x18] sm:$0xf]
  %v1830 = vld [vmem:[%s1822 + $0x1c] sm:$0xf]
  %v1831 = vld [vmem:[%s1822 + $0x20] sm:$0xf]
  %v1832 = vld [vmem:[%s1822 + $0x24] sm:$0xf]
  %v1833 = vld [vmem:[%s1822 + $0x28] sm:$0xf]
  %v1834 = vld [vmem:[%s1822 + $0x2c] sm:$0xf]
  %v1835 = vld [vmem:[%s1822 + $0x30] sm:$0xf]
  %v1836 = vld [vmem:[%s1822 + $0x34] sm:$0xf]
  %v1837 = vld [vmem:[%s1822 + $0x38] sm:$0xf]
  %v1838 = vld [vmem:[%s1822 + $0x3c] sm:$0xf]
  %v1855 = vunpack.c.l.b16 %v1823
  %v1856 = vunpack.c.l.b16 %v1824
  %v1857 = vunpack.c.l.b16 %v1825
  %v1858 = vunpack.c.l.b16 %v1826
  %v1859 = vunpack.c.l.b16 %v1827
  %v1860 = vunpack.c.l.b16 %v1828
  %v1861 = vunpack.c.l.b16 %v1829
  %v1862 = vunpack.c.l.b16 %v1830
  %v1863 = vunpack.c.l.b16 %v1831
  %v1864 = vunpack.c.l.b16 %v1832
  %v1865 = vunpack.c.l.b16 %v1833
  %v1866 = vunpack.c.l.b16 %v1834
  %v1867 = vunpack.c.l.b16 %v1835
  %v1868 = vunpack.c.l.b16 %v1836
  %v1869 = vunpack.c.l.b16 %v1837
  %v1870 = vunpack.c.l.b16 %v1838
  %v1871 = vpack.c.b16 %v1856, %v1855
  %v1872 = vpack.c.b16 %v1858, %v1857
  %v1873 = vpack.c.b16 %v1860, %v1859
  %v1874 = vpack.c.b16 %v1862, %v1861
  %v1875 = vpack.c.b16 %v1864, %v1863
  %v1876 = vpack.c.b16 %v1866, %v1865
  %v1877 = vpack.c.b16 %v1868, %v1867
  %v1878 = vpack.c.b16 %v1870, %v1869
  %1887 = vmatprep.subr.bf16.mxu0 0
  %1888 = vmatpush1.bf16.msra.mxu0 %v1878
  %1889 = vmatprep.subr.bf16.mxu0 0
  %1890 = vmatpush1.bf16.msra.mxu0 %v1877
  %1891 = vmatprep.subr.bf16.mxu0 0
  %1892 = vmatpush1.bf16.msra.mxu0 %v1876
  %1893 = vmatprep.subr.bf16.mxu0 0
  %1894 = vmatpush1.bf16.msra.mxu0 %v1875
  %1895 = vmatprep.subr.bf16.mxu0 0
  %1896 = vmatpush1.bf16.msra.mxu0 %v1874
  %1897 = vmatprep.subr.bf16.mxu0 0
  %1898 = vmatpush1.bf16.msra.mxu0 %v1873
  %1899 = vmatprep.subr.bf16.mxu0 0
  %1900 = vmatpush1.bf16.msra.mxu0 %v1872
  %1901 = vmatprep.subr.bf16.mxu0 0
  %1902 = vmatpush1.bf16.msra.mxu0 %v1871
  %1903 = vmatprep.subr.bf16.mxu0 0
  %1904 = vmatpush2.bf16.msra.mxu0 0
  %1905 = vmatprep.subr.bf16.mxu0 0
  %1906 = vmatpush2.bf16.msra.mxu0 0
  %1907 = vmatprep.subr.bf16.mxu0 0
  %1908 = vmatpush2.bf16.msra.mxu0 0
  %1909 = vmatprep.subr.bf16.mxu0 0
  %1910 = vmatpush2.bf16.msra.mxu0 0
  %1911 = vmatprep.subr.bf16.mxu0 0
  %1912 = vmatpush2.bf16.msra.mxu0 0
  %1913 = vmatprep.subr.bf16.mxu0 0
  %1914 = vmatpush2.bf16.msra.mxu0 0
  %1915 = vmatprep.subr.bf16.mxu0 0
  %1916 = vmatpush2.bf16.msra.mxu0 0
  %1917 = vmatprep.subr.bf16.mxu0 0
  %1918 = vmatpush2.bf16.msra.mxu0 0
  %1919 = vmatprep.mubr.bf16.mxu0 0
  %1920 = vmatmul.mubr.bf16.gmra.mxu0 %v1165
  %v1921 = vpop.f32.mrf.mxu0
  %v1922 = vadd.f32 0.0, %v1921
  %v1923 = vpop.f32.mrf.mxu0
  %v1924 = vpop.f32.mrf.mxu0
  %v1925 = vadd.f32 0.0, %v1924
  %v1926 = vpop.f32.mrf.mxu0
  %1927 = vmatprep.mubr.bf16.mxu0 0
  %1928 = vmatmul.mubr.bf16.gmra.mxu0 %v1166
  %v1929 = vpop.f32.mrf.mxu0
  %v1930 = vadd.f32 0.0, %v1929
  %v1931 = vpop.f32.mrf.mxu0
  %v1932 = vpop.f32.mrf.mxu0
  %v1933 = vadd.f32 0.0, %v1932
  %v1934 = vpop.f32.mrf.mxu0
  %1935 = vmatprep.mubr.bf16.mxu0 0
  %1936 = vmatmul.mubr.bf16.gmra.mxu0 %v1167
  %v1937 = vpop.f32.mrf.mxu0
  %v1938 = vadd.f32 0.0, %v1937
  %v1939 = vpop.f32.mrf.mxu0
  %v1940 = vpop.f32.mrf.mxu0
  %v1941 = vadd.f32 0.0, %v1940
  %v1942 = vpop.f32.mrf.mxu0
  %1943 = vmatprep.mubr.bf16.mxu0 0
  %1944 = vmatmul.mubr.bf16.gmra.mxu0 %v1168
  %v1945 = vpop.f32.mrf.mxu0
  %v1946 = vadd.f32 0.0, %v1945
  %v1947 = vpop.f32.mrf.mxu0
  %v1948 = vpop.f32.mrf.mxu0
  %v1949 = vadd.f32 0.0, %v1948
  %v1950 = vpop.f32.mrf.mxu0
  %1951 = vmatprep.mubr.bf16.mxu0 0
  %1952 = vmatmul.mubr.bf16.gmra.mxu0 %v1169
  %v1953 = vpop.f32.mrf.mxu0
  %v1954 = vadd.f32 0.0, %v1953
  %v1955 = vpop.f32.mrf.mxu0
  %v1956 = vpop.f32.mrf.mxu0
  %v1957 = vadd.f32 0.0, %v1956
  %v1958 = vpop.f32.mrf.mxu0
  %1959 = vmatprep.mubr.bf16.mxu0 0
  %1960 = vmatmul.mubr.bf16.gmra.mxu0 %v1170
  %v1961 = vpop.f32.mrf.mxu0
  %v1962 = vadd.f32 0.0, %v1961
  %v1963 = vpop.f32.mrf.mxu0
  %v1964 = vpop.f32.mrf.mxu0
  %v1965 = vadd.f32 0.0, %v1964
  %v1966 = vpop.f32.mrf.mxu0
  %1967 = vmatprep.mubr.bf16.mxu0 0
  %1968 = vmatmul.mubr.bf16.gmra.mxu0 %v1171
  %v1969 = vpop.f32.mrf.mxu0
  %v1970 = vadd.f32 0.0, %v1969
  %v1971 = vpop.f32.mrf.mxu0
  %v1972 = vpop.f32.mrf.mxu0
  %v1973 = vadd.f32 0.0, %v1972
  %v1974 = vpop.f32.mrf.mxu0
  %1975 = vmatprep.mubr.bf16.mxu0 0
  %1976 = vmatmul.mubr.bf16.gmra.mxu0 %v1172
  %v1977 = vpop.f32.mrf.mxu0
  %v1978 = vadd.f32 0.0, %v1977
  %v1979 = vpop.f32.mrf.mxu0
  %v1980 = vpop.f32.mrf.mxu0
  %v1981 = vadd.f32 0.0, %v1980
  %v1982 = vpop.f32.mrf.mxu0
  %1983 = vdwg.mxu0
  %v1984 = vadd.f32 %v1453, %v1922
  %v1985 = vadd.f32 %v1456, %v1925
  %v1986 = vadd.f32 %v1461, %v1930
  %v1987 = vadd.f32 %v1464, %v1933
  %v1988 = vadd.f32 %v1469, %v1938
  %v1989 = vadd.f32 %v1472, %v1941
  %v1990 = vadd.f32 %v1477, %v1946
  %v1991 = vadd.f32 %v1480, %v1949
  %v1992 = vadd.f32 %v1485, %v1954
  %v1993 = vadd.f32 %v1488, %v1957
  %v1994 = vadd.f32 %v1493, %v1962
  %v1995 = vadd.f32 %v1496, %v1965
  %v1996 = vadd.f32 %v1501, %v1970
  %v1997 = vadd.f32 %v1504, %v1973
  %v1998 = vadd.f32 %v1509, %v1978
  %v1999 = vadd.f32 %v1512, %v1981
  %s2000 = scalar_lea.vmem %s3, 320
  %v2001 = vld [vmem:[%s2000] sm:$0xf]
  %v2002 = vld [vmem:[%s2000 + $0x4] sm:$0xf]
  %v2003 = vld [vmem:[%s2000 + $0x8] sm:$0xf]
  %v2004 = vld [vmem:[%s2000 + $0xc] sm:$0xf]
  %v2005 = vld [vmem:[%s2000 + $0x10] sm:$0xf]
  %v2006 = vld [vmem:[%s2000 + $0x14] sm:$0xf]
  %v2007 = vld [vmem:[%s2000 + $0x18] sm:$0xf]
  %v2008 = vld [vmem:[%s2000 + $0x1c] sm:$0xf]
  %v2009 = vld [vmem:[%s2000 + $0x20] sm:$0xf]
  %v2010 = vld [vmem:[%s2000 + $0x24] sm:$0xf]
  %v2011 = vld [vmem:[%s2000 + $0x28] sm:$0xf]
  %v2012 = vld [vmem:[%s2000 + $0x2c] sm:$0xf]
  %v2013 = vld [vmem:[%s2000 + $0x30] sm:$0xf]
  %v2014 = vld [vmem:[%s2000 + $0x34] sm:$0xf]
  %v2015 = vld [vmem:[%s2000 + $0x38] sm:$0xf]
  %v2016 = vld [vmem:[%s2000 + $0x3c] sm:$0xf]
  %v2033 = vunpack.c.l.b16 %v2001
  %v2034 = vunpack.c.l.b16 %v2002
  %v2035 = vunpack.c.l.b16 %v2003
  %v2036 = vunpack.c.l.b16 %v2004
  %v2037 = vunpack.c.l.b16 %v2005
  %v2038 = vunpack.c.l.b16 %v2006
  %v2039 = vunpack.c.l.b16 %v2007
  %v2040 = vunpack.c.l.b16 %v2008
  %v2041 = vunpack.c.l.b16 %v2009
  %v2042 = vunpack.c.l.b16 %v2010
  %v2043 = vunpack.c.l.b16 %v2011
  %v2044 = vunpack.c.l.b16 %v2012
  %v2045 = vunpack.c.l.b16 %v2013
  %v2046 = vunpack.c.l.b16 %v2014
  %v2047 = vunpack.c.l.b16 %v2015
  %v2048 = vunpack.c.l.b16 %v2016
  %v2049 = vpack.c.b16 %v2034, %v2033
  %v2050 = vpack.c.b16 %v2036, %v2035
  %v2051 = vpack.c.b16 %v2038, %v2037
  %v2052 = vpack.c.b16 %v2040, %v2039
  %v2053 = vpack.c.b16 %v2042, %v2041
  %v2054 = vpack.c.b16 %v2044, %v2043
  %v2055 = vpack.c.b16 %v2046, %v2045
  %v2056 = vpack.c.b16 %v2048, %v2047
  %2065 = vmatprep.subr.bf16.mxu0 0
  %2066 = vmatpush1.bf16.msra.mxu0 %v2056
  %2067 = vmatprep.subr.bf16.mxu0 0
  %2068 = vmatpush1.bf16.msra.mxu0 %v2055
  %2069 = vmatprep.subr.bf16.mxu0 0
  %2070 = vmatpush1.bf16.msra.mxu0 %v2054
  %2071 = vmatprep.subr.bf16.mxu0 0
  %2072 = vmatpush1.bf16.msra.mxu0 %v2053
  %2073 = vmatprep.subr.bf16.mxu0 0
  %2074 = vmatpush1.bf16.msra.mxu0 %v2052
  %2075 = vmatprep.subr.bf16.mxu0 0
  %2076 = vmatpush1.bf16.msra.mxu0 %v2051
  %2077 = vmatprep.subr.bf16.mxu0 0
  %2078 = vmatpush1.bf16.msra.mxu0 %v2050
  %2079 = vmatprep.subr.bf16.mxu0 0
  %2080 = vmatpush1.bf16.msra.mxu0 %v2049
  %2081 = vmatprep.subr.bf16.mxu0 0
  %2082 = vmatpush2.bf16.msra.mxu0 0
  %2083 = vmatprep.subr.bf16.mxu0 0
  %2084 = vmatpush2.bf16.msra.mxu0 0
  %2085 = vmatprep.subr.bf16.mxu0 0
  %2086 = vmatpush2.bf16.msra.mxu0 0
  %2087 = vmatprep.subr.bf16.mxu0 0
  %2088 = vmatpush2.bf16.msra.mxu0 0
  %2089 = vmatprep.subr.bf16.mxu0 0
  %2090 = vmatpush2.bf16.msra.mxu0 0
  %2091 = vmatprep.subr.bf16.mxu0 0
  %2092 = vmatpush2.bf16.msra.mxu0 0
  %2093 = vmatprep.subr.bf16.mxu0 0
  %2094 = vmatpush2.bf16.msra.mxu0 0
  %2095 = vmatprep.subr.bf16.mxu0 0
  %2096 = vmatpush2.bf16.msra.mxu0 0
  %2097 = vmatprep.mubr.bf16.mxu0 0
  %2098 = vmatmul.mubr.bf16.gmra.mxu0 %v1165
  %v2099 = vpop.f32.mrf.mxu0
  %v2100 = vadd.f32 0.0, %v2099
  %v2101 = vpop.f32.mrf.mxu0
  %v2102 = vpop.f32.mrf.mxu0
  %v2103 = vadd.f32 0.0, %v2102
  %v2104 = vpop.f32.mrf.mxu0
  %2105 = vmatprep.mubr.bf16.mxu0 0
  %2106 = vmatmul.mubr.bf16.gmra.mxu0 %v1166
  %v2107 = vpop.f32.mrf.mxu0
  %v2108 = vadd.f32 0.0, %v2107
  %v2109 = vpop.f32.mrf.mxu0
  %v2110 = vpop.f32.mrf.mxu0
  %v2111 = vadd.f32 0.0, %v2110
  %v2112 = vpop.f32.mrf.mxu0
  %2113 = vmatprep.mubr.bf16.mxu0 0
  %2114 = vmatmul.mubr.bf16.gmra.mxu0 %v1167
  %v2115 = vpop.f32.mrf.mxu0
  %v2116 = vadd.f32 0.0, %v2115
  %v2117 = vpop.f32.mrf.mxu0
  %v2118 = vpop.f32.mrf.mxu0
  %v2119 = vadd.f32 0.0, %v2118
  %v2120 = vpop.f32.mrf.mxu0
  %2121 = vmatprep.mubr.bf16.mxu0 0
  %2122 = vmatmul.mubr.bf16.gmra.mxu0 %v1168
  %v2123 = vpop.f32.mrf.mxu0
  %v2124 = vadd.f32 0.0, %v2123
  %v2125 = vpop.f32.mrf.mxu0
  %v2126 = vpop.f32.mrf.mxu0
  %v2127 = vadd.f32 0.0, %v2126
  %v2128 = vpop.f32.mrf.mxu0
  %2129 = vmatprep.mubr.bf16.mxu0 0
  %2130 = vmatmul.mubr.bf16.gmra.mxu0 %v1169
  %v2131 = vpop.f32.mrf.mxu0
  %v2132 = vadd.f32 0.0, %v2131
  %v2133 = vpop.f32.mrf.mxu0
  %v2134 = vpop.f32.mrf.mxu0
  %v2135 = vadd.f32 0.0, %v2134
  %v2136 = vpop.f32.mrf.mxu0
  %2137 = vmatprep.mubr.bf16.mxu0 0
  %2138 = vmatmul.mubr.bf16.gmra.mxu0 %v1170
  %v2139 = vpop.f32.mrf.mxu0
  %v2140 = vadd.f32 0.0, %v2139
  %v2141 = vpop.f32.mrf.mxu0
  %v2142 = vpop.f32.mrf.mxu0
  %v2143 = vadd.f32 0.0, %v2142
  %v2144 = vpop.f32.mrf.mxu0
  %2145 = vmatprep.mubr.bf16.mxu0 0
  %2146 = vmatmul.mubr.bf16.gmra.mxu0 %v1171
  %v2147 = vpop.f32.mrf.mxu0
  %v2148 = vadd.f32 0.0, %v2147
  %v2149 = vpop.f32.mrf.mxu0
  %v2150 = vpop.f32.mrf.mxu0
  %v2151 = vadd.f32 0.0, %v2150
  %v2152 = vpop.f32.mrf.mxu0
  %2153 = vmatprep.mubr.bf16.mxu0 0
  %2154 = vmatmul.mubr.bf16.gmra.mxu0 %v1172
  %v2155 = vpop.f32.mrf.mxu0
  %v2156 = vadd.f32 0.0, %v2155
  %v2157 = vpop.f32.mrf.mxu0
  %v2158 = vpop.f32.mrf.mxu0
  %v2159 = vadd.f32 0.0, %v2158
  %v2160 = vpop.f32.mrf.mxu0
  %2161 = vdwg.mxu0
  %v2162 = vadd.f32 %v1760, %v2100
  %v2163 = vadd.f32 %v1763, %v2103
  %v2164 = vadd.f32 %v1768, %v2108
  %v2165 = vadd.f32 %v1771, %v2111
  %v2166 = vadd.f32 %v1776, %v2116
  %v2167 = vadd.f32 %v1779, %v2119
  %v2168 = vadd.f32 %v1784, %v2124
  %v2169 = vadd.f32 %v1787, %v2127
  %v2170 = vadd.f32 %v1792, %v2132
  %v2171 = vadd.f32 %v1795, %v2135
  %v2172 = vadd.f32 %v1800, %v2140
  %v2173 = vadd.f32 %v1803, %v2143
  %v2174 = vadd.f32 %v1808, %v2148
  %v2175 = vadd.f32 %v1811, %v2151
  %v2176 = vadd.f32 %v1816, %v2156
  %v2177 = vadd.f32 %v1819, %v2159
  %s2178 = scalar_lea.vmem %s3, 384
  %v2179 = vld [vmem:[%s2178] sm:$0xf]
  %v2180 = vld [vmem:[%s2178 + $0x4] sm:$0xf]
  %v2181 = vld [vmem:[%s2178 + $0x8] sm:$0xf]
  %v2182 = vld [vmem:[%s2178 + $0xc] sm:$0xf]
  %v2183 = vld [vmem:[%s2178 + $0x10] sm:$0xf]
  %v2184 = vld [vmem:[%s2178 + $0x14] sm:$0xf]
  %v2185 = vld [vmem:[%s2178 + $0x18] sm:$0xf]
  %v2186 = vld [vmem:[%s2178 + $0x1c] sm:$0xf]
  %v2187 = vld [vmem:[%s2178 + $0x20] sm:$0xf]
  %v2188 = vld [vmem:[%s2178 + $0x24] sm:$0xf]
  %v2189 = vld [vmem:[%s2178 + $0x28] sm:$0xf]
  %v2190 = vld [vmem:[%s2178 + $0x2c] sm:$0xf]
  %v2191 = vld [vmem:[%s2178 + $0x30] sm:$0xf]
  %v2192 = vld [vmem:[%s2178 + $0x34] sm:$0xf]
  %v2193 = vld [vmem:[%s2178 + $0x38] sm:$0xf]
  %v2194 = vld [vmem:[%s2178 + $0x3c] sm:$0xf]
  %v2211 = vunpack.c.l.b16 %v2179
  %v2212 = vunpack.c.l.b16 %v2180
  %v2213 = vunpack.c.l.b16 %v2181
  %v2214 = vunpack.c.l.b16 %v2182
  %v2215 = vunpack.c.l.b16 %v2183
  %v2216 = vunpack.c.l.b16 %v2184
  %v2217 = vunpack.c.l.b16 %v2185
  %v2218 = vunpack.c.l.b16 %v2186
  %v2219 = vunpack.c.l.b16 %v2187
  %v2220 = vunpack.c.l.b16 %v2188
  %v2221 = vunpack.c.l.b16 %v2189
  %v2222 = vunpack.c.l.b16 %v2190
  %v2223 = vunpack.c.l.b16 %v2191
  %v2224 = vunpack.c.l.b16 %v2192
  %v2225 = vunpack.c.l.b16 %v2193
  %v2226 = vunpack.c.l.b16 %v2194
  %v2227 = vpack.c.b16 %v2212, %v2211
  %v2228 = vpack.c.b16 %v2214, %v2213
  %v2229 = vpack.c.b16 %v2216, %v2215
  %v2230 = vpack.c.b16 %v2218, %v2217
  %v2231 = vpack.c.b16 %v2220, %v2219
  %v2232 = vpack.c.b16 %v2222, %v2221
  %v2233 = vpack.c.b16 %v2224, %v2223
  %v2234 = vpack.c.b16 %v2226, %v2225
  %2243 = vmatprep.subr.bf16.mxu0 0
  %2244 = vmatpush1.bf16.msra.mxu0 %v2234
  %2245 = vmatprep.subr.bf16.mxu0 0
  %2246 = vmatpush1.bf16.msra.mxu0 %v2233
  %2247 = vmatprep.subr.bf16.mxu0 0
  %2248 = vmatpush1.bf16.msra.mxu0 %v2232
  %2249 = vmatprep.subr.bf16.mxu0 0
  %2250 = vmatpush1.bf16.msra.mxu0 %v2231
  %2251 = vmatprep.subr.bf16.mxu0 0
  %2252 = vmatpush1.bf16.msra.mxu0 %v2230
  %2253 = vmatprep.subr.bf16.mxu0 0
  %2254 = vmatpush1.bf16.msra.mxu0 %v2229
  %2255 = vmatprep.subr.bf16.mxu0 0
  %2256 = vmatpush1.bf16.msra.mxu0 %v2228
  %2257 = vmatprep.subr.bf16.mxu0 0
  %2258 = vmatpush1.bf16.msra.mxu0 %v2227
  %2259 = vmatprep.subr.bf16.mxu0 0
  %2260 = vmatpush2.bf16.msra.mxu0 0
  %2261 = vmatprep.subr.bf16.mxu0 0
  %2262 = vmatpush2.bf16.msra.mxu0 0
  %2263 = vmatprep.subr.bf16.mxu0 0
  %2264 = vmatpush2.bf16.msra.mxu0 0
  %2265 = vmatprep.subr.bf16.mxu0 0
  %2266 = vmatpush2.bf16.msra.mxu0 0
  %2267 = vmatprep.subr.bf16.mxu0 0
  %2268 = vmatpush2.bf16.msra.mxu0 0
  %2269 = vmatprep.subr.bf16.mxu0 0
  %2270 = vmatpush2.bf16.msra.mxu0 0
  %2271 = vmatprep.subr.bf16.mxu0 0
  %2272 = vmatpush2.bf16.msra.mxu0 0
  %2273 = vmatprep.subr.bf16.mxu0 0
  %2274 = vmatpush2.bf16.msra.mxu0 0
  %2275 = vmatprep.mubr.bf16.mxu0 0
  %2276 = vmatmul.mubr.bf16.gmra.mxu0 %v1166
  %v2277 = vpop.f32.mrf.mxu0
  %v2278 = vadd.f32 0.0, %v2277
  %v2279 = vpop.f32.mrf.mxu0
  %v2280 = vpop.f32.mrf.mxu0
  %v2281 = vadd.f32 0.0, %v2280
  %v2282 = vpop.f32.mrf.mxu0
  %2283 = vmatprep.mubr.bf16.mxu0 0
  %2284 = vmatmul.mubr.bf16.gmra.mxu0 %v1167
  %v2285 = vpop.f32.mrf.mxu0
  %v2286 = vadd.f32 0.0, %v2285
  %v2287 = vpop.f32.mrf.mxu0
  %v2288 = vpop.f32.mrf.mxu0
  %v2289 = vadd.f32 0.0, %v2288
  %v2290 = vpop.f32.mrf.mxu0
  %2291 = vmatprep.mubr.bf16.mxu0 0
  %2292 = vmatmul.mubr.bf16.gmra.mxu0 %v1168
  %v2293 = vpop.f32.mrf.mxu0
  %v2294 = vadd.f32 0.0, %v2293
  %v2295 = vpop.f32.mrf.mxu0
  %v2296 = vpop.f32.mrf.mxu0
  %v2297 = vadd.f32 0.0, %v2296
  %v2298 = vpop.f32.mrf.mxu0
  %2299 = vmatprep.mubr.bf16.mxu0 0
  %2300 = vmatmul.mubr.bf16.gmra.mxu0 %v1169
  %v2301 = vpop.f32.mrf.mxu0
  %v2302 = vadd.f32 0.0, %v2301
  %v2303 = vpop.f32.mrf.mxu0
  %v2304 = vpop.f32.mrf.mxu0
  %v2305 = vadd.f32 0.0, %v2304
  %v2306 = vpop.f32.mrf.mxu0
  %2307 = vmatprep.mubr.bf16.mxu0 0
  %2308 = vmatmul.mubr.bf16.gmra.mxu0 %v1170
  %v2309 = vpop.f32.mrf.mxu0
  %v2310 = vadd.f32 0.0, %v2309
  %v2311 = vpop.f32.mrf.mxu0
  %v2312 = vpop.f32.mrf.mxu0
  %v2313 = vadd.f32 0.0, %v2312
  %v2314 = vpop.f32.mrf.mxu0
  %2315 = vmatprep.mubr.bf16.mxu0 0
  %2316 = vmatmul.mubr.bf16.gmra.mxu0 %v1171
  %v2317 = vpop.f32.mrf.mxu0
  %v2318 = vadd.f32 0.0, %v2317
  %v2319 = vpop.f32.mrf.mxu0
  %v2320 = vpop.f32.mrf.mxu0
  %v2321 = vadd.f32 0.0, %v2320
  %v2322 = vpop.f32.mrf.mxu0
  %2323 = vmatprep.mubr.bf16.mxu0 0
  %2324 = vmatmul.mubr.bf16.gmra.mxu0 %v1172
  %v2325 = vpop.f32.mrf.mxu0
  %v2326 = vadd.f32 0.0, %v2325
  %v2327 = vpop.f32.mrf.mxu0
  %v2328 = vpop.f32.mrf.mxu0
  %v2329 = vadd.f32 0.0, %v2328
  %v2330 = vpop.f32.mrf.mxu0
  %2331 = vmatprep.mubr.bf16.mxu0 0
  %2332 = vmatmul.mubr.bf16.gmra.mxu0 %v1173
  %v2333 = vpop.f32.mrf.mxu0
  %v2334 = vadd.f32 0.0, %v2333
  %v2335 = vpop.f32.mrf.mxu0
  %v2336 = vpop.f32.mrf.mxu0
  %v2337 = vadd.f32 0.0, %v2336
  %v2338 = vpop.f32.mrf.mxu0
  %2339 = vdwg.mxu0
  %v2340 = vadd.f32 %v1984, %v2278
  %v2341 = vadd.f32 %v1985, %v2281
  %v2342 = vadd.f32 %v1986, %v2286
  %v2343 = vadd.f32 %v1987, %v2289
  %v2344 = vadd.f32 %v1988, %v2294
  %v2345 = vadd.f32 %v1989, %v2297
  %v2346 = vadd.f32 %v1990, %v2302
  %v2347 = vadd.f32 %v1991, %v2305
  %v2348 = vadd.f32 %v1992, %v2310
  %v2349 = vadd.f32 %v1993, %v2313
  %v2350 = vadd.f32 %v1994, %v2318
  %v2351 = vadd.f32 %v1995, %v2321
  %v2352 = vadd.f32 %v1996, %v2326
  %v2353 = vadd.f32 %v1997, %v2329
  %v2354 = vadd.f32 %v1998, %v2334
  %v2355 = vadd.f32 %v1999, %v2337
  %s2356 = scalar_lea.vmem %s3, 448
  %v2357 = vld [vmem:[%s2356] sm:$0xf]
  %v2358 = vld [vmem:[%s2356 + $0x4] sm:$0xf]
  %v2359 = vld [vmem:[%s2356 + $0x8] sm:$0xf]
  %v2360 = vld [vmem:[%s2356 + $0xc] sm:$0xf]
  %v2361 = vld [vmem:[%s2356 + $0x10] sm:$0xf]
  %v2362 = vld [vmem:[%s2356 + $0x14] sm:$0xf]
  %v2363 = vld [vmem:[%s2356 + $0x18] sm:$0xf]
  %v2364 = vld [vmem:[%s2356 + $0x1c] sm:$0xf]
  %v2365 = vld [vmem:[%s2356 + $0x20] sm:$0xf]
  %v2366 = vld [vmem:[%s2356 + $0x24] sm:$0xf]
  %v2367 = vld [vmem:[%s2356 + $0x28] sm:$0xf]
  %v2368 = vld [vmem:[%s2356 + $0x2c] sm:$0xf]
  %v2369 = vld [vmem:[%s2356 + $0x30] sm:$0xf]
  %v2370 = vld [vmem:[%s2356 + $0x34] sm:$0xf]
  %v2371 = vld [vmem:[%s2356 + $0x38] sm:$0xf]
  %v2372 = vld [vmem:[%s2356 + $0x3c] sm:$0xf]
  %v2389 = vunpack.c.l.b16 %v2357
  %v2390 = vunpack.c.l.b16 %v2358
  %v2391 = vunpack.c.l.b16 %v2359
  %v2392 = vunpack.c.l.b16 %v2360
  %v2393 = vunpack.c.l.b16 %v2361
  %v2394 = vunpack.c.l.b16 %v2362
  %v2395 = vunpack.c.l.b16 %v2363
  %v2396 = vunpack.c.l.b16 %v2364
  %v2397 = vunpack.c.l.b16 %v2365
  %v2398 = vunpack.c.l.b16 %v2366
  %v2399 = vunpack.c.l.b16 %v2367
  %v2400 = vunpack.c.l.b16 %v2368
  %v2401 = vunpack.c.l.b16 %v2369
  %v2402 = vunpack.c.l.b16 %v2370
  %v2403 = vunpack.c.l.b16 %v2371
  %v2404 = vunpack.c.l.b16 %v2372
  %v2405 = vpack.c.b16 %v2390, %v2389
  %v2406 = vpack.c.b16 %v2392, %v2391
  %v2407 = vpack.c.b16 %v2394, %v2393
  %v2408 = vpack.c.b16 %v2396, %v2395
  %v2409 = vpack.c.b16 %v2398, %v2397
  %v2410 = vpack.c.b16 %v2400, %v2399
  %v2411 = vpack.c.b16 %v2402, %v2401
  %v2412 = vpack.c.b16 %v2404, %v2403
  %2421 = vmatprep.subr.bf16.mxu0 0
  %2422 = vmatpush1.bf16.msra.mxu0 %v2412
  %2423 = vmatprep.subr.bf16.mxu0 0
  %2424 = vmatpush1.bf16.msra.mxu0 %v2411
  %2425 = vmatprep.subr.bf16.mxu0 0
  %2426 = vmatpush1.bf16.msra.mxu0 %v2410
  %2427 = vmatprep.subr.bf16.mxu0 0
  %2428 = vmatpush1.bf16.msra.mxu0 %v2409
  %2429 = vmatprep.subr.bf16.mxu0 0
  %2430 = vmatpush1.bf16.msra.mxu0 %v2408
  %2431 = vmatprep.subr.bf16.mxu0 0
  %2432 = vmatpush1.bf16.msra.mxu0 %v2407
  %2433 = vmatprep.subr.bf16.mxu0 0
  %2434 = vmatpush1.bf16.msra.mxu0 %v2406
  %2435 = vmatprep.subr.bf16.mxu0 0
  %2436 = vmatpush1.bf16.msra.mxu0 %v2405
  %2437 = vmatprep.subr.bf16.mxu0 0
  %2438 = vmatpush2.bf16.msra.mxu0 0
  %2439 = vmatprep.subr.bf16.mxu0 0
  %2440 = vmatpush2.bf16.msra.mxu0 0
  %2441 = vmatprep.subr.bf16.mxu0 0
  %2442 = vmatpush2.bf16.msra.mxu0 0
  %2443 = vmatprep.subr.bf16.mxu0 0
  %2444 = vmatpush2.bf16.msra.mxu0 0
  %2445 = vmatprep.subr.bf16.mxu0 0
  %2446 = vmatpush2.bf16.msra.mxu0 0
  %2447 = vmatprep.subr.bf16.mxu0 0
  %2448 = vmatpush2.bf16.msra.mxu0 0
  %2449 = vmatprep.subr.bf16.mxu0 0
  %2450 = vmatpush2.bf16.msra.mxu0 0
  %2451 = vmatprep.subr.bf16.mxu0 0
  %2452 = vmatpush2.bf16.msra.mxu0 0
  %2453 = vmatprep.mubr.bf16.mxu0 0
  %2454 = vmatmul.mubr.bf16.gmra.mxu0 %v1166
  %v2455 = vpop.f32.mrf.mxu0
  %v2456 = vadd.f32 0.0, %v2455
  %v2457 = vpop.f32.mrf.mxu0
  %v2458 = vpop.f32.mrf.mxu0
  %v2459 = vadd.f32 0.0, %v2458
  %v2460 = vpop.f32.mrf.mxu0
  %2461 = vmatprep.mubr.bf16.mxu0 0
  %2462 = vmatmul.mubr.bf16.gmra.mxu0 %v1167
  %v2463 = vpop.f32.mrf.mxu0
  %v2464 = vadd.f32 0.0, %v2463
  %v2465 = vpop.f32.mrf.mxu0
  %v2466 = vpop.f32.mrf.mxu0
  %v2467 = vadd.f32 0.0, %v2466
  %v2468 = vpop.f32.mrf.mxu0
  %2469 = vmatprep.mubr.bf16.mxu0 0
  %2470 = vmatmul.mubr.bf16.gmra.mxu0 %v1168
  %v2471 = vpop.f32.mrf.mxu0
  %v2472 = vadd.f32 0.0, %v2471
  %v2473 = vpop.f32.mrf.mxu0
  %v2474 = vpop.f32.mrf.mxu0
  %v2475 = vadd.f32 0.0, %v2474
  %v2476 = vpop.f32.mrf.mxu0
  %2477 = vmatprep.mubr.bf16.mxu0 0
  %2478 = vmatmul.mubr.bf16.gmra.mxu0 %v1169
  %v2479 = vpop.f32.mrf.mxu0
  %v2480 = vadd.f32 0.0, %v2479
  %v2481 = vpop.f32.mrf.mxu0
  %v2482 = vpop.f32.mrf.mxu0
  %v2483 = vadd.f32 0.0, %v2482
  %v2484 = vpop.f32.mrf.mxu0
  %2485 = vmatprep.mubr.bf16.mxu0 0
  %2486 = vmatmul.mubr.bf16.gmra.mxu0 %v1170
  %v2487 = vpop.f32.mrf.mxu0
  %v2488 = vadd.f32 0.0, %v2487
  %v2489 = vpop.f32.mrf.mxu0
  %v2490 = vpop.f32.mrf.mxu0
  %v2491 = vadd.f32 0.0, %v2490
  %v2492 = vpop.f32.mrf.mxu0
  %2493 = vmatprep.mubr.bf16.mxu0 0
  %2494 = vmatmul.mubr.bf16.gmra.mxu0 %v1171
  %v2495 = vpop.f32.mrf.mxu0
  %v2496 = vadd.f32 0.0, %v2495
  %v2497 = vpop.f32.mrf.mxu0
  %v2498 = vpop.f32.mrf.mxu0
  %v2499 = vadd.f32 0.0, %v2498
  %v2500 = vpop.f32.mrf.mxu0
  %2501 = vmatprep.mubr.bf16.mxu0 0
  %2502 = vmatmul.mubr.bf16.gmra.mxu0 %v1172
  %v2503 = vpop.f32.mrf.mxu0
  %v2504 = vadd.f32 0.0, %v2503
  %v2505 = vpop.f32.mrf.mxu0
  %v2506 = vpop.f32.mrf.mxu0
  %v2507 = vadd.f32 0.0, %v2506
  %v2508 = vpop.f32.mrf.mxu0
  %2509 = vmatprep.mubr.bf16.mxu0 0
  %2510 = vmatmul.mubr.bf16.gmra.mxu0 %v1173
  %v2511 = vpop.f32.mrf.mxu0
  %v2512 = vadd.f32 0.0, %v2511
  %v2513 = vpop.f32.mrf.mxu0
  %v2514 = vpop.f32.mrf.mxu0
  %v2515 = vadd.f32 0.0, %v2514
  %v2516 = vpop.f32.mrf.mxu0
  %2517 = vdwg.mxu0
  %v2518 = vadd.f32 %v2162, %v2456
  %v2519 = vadd.f32 %v2163, %v2459
  %v2520 = vadd.f32 %v2164, %v2464
  %v2521 = vadd.f32 %v2165, %v2467
  %v2522 = vadd.f32 %v2166, %v2472
  %v2523 = vadd.f32 %v2167, %v2475
  %v2524 = vadd.f32 %v2168, %v2480
  %v2525 = vadd.f32 %v2169, %v2483
  %v2526 = vadd.f32 %v2170, %v2488
  %v2527 = vadd.f32 %v2171, %v2491
  %v2528 = vadd.f32 %v2172, %v2496
  %v2529 = vadd.f32 %v2173, %v2499
  %v2530 = vadd.f32 %v2174, %v2504
  %v2531 = vadd.f32 %v2175, %v2507
  %v2532 = vadd.f32 %v2176, %v2512
  %v2533 = vadd.f32 %v2177, %v2515
  %s2534 = scalar_lea.vmem %s3, 512
  %v2535 = vld [vmem:[%s2534] sm:$0xf]
  %v2536 = vld [vmem:[%s2534 + $0x4] sm:$0xf]
  %v2537 = vld [vmem:[%s2534 + $0x8] sm:$0xf]
  %v2538 = vld [vmem:[%s2534 + $0xc] sm:$0xf]
  %v2539 = vld [vmem:[%s2534 + $0x10] sm:$0xf]
  %v2540 = vld [vmem:[%s2534 + $0x14] sm:$0xf]
  %v2541 = vld [vmem:[%s2534 + $0x18] sm:$0xf]
  %v2542 = vld [vmem:[%s2534 + $0x1c] sm:$0xf]
  %v2543 = vld [vmem:[%s2534 + $0x20] sm:$0xf]
  %v2544 = vld [vmem:[%s2534 + $0x24] sm:$0xf]
  %v2545 = vld [vmem:[%s2534 + $0x28] sm:$0xf]
  %v2546 = vld [vmem:[%s2534 + $0x2c] sm:$0xf]
  %v2547 = vld [vmem:[%s2534 + $0x30] sm:$0xf]
  %v2548 = vld [vmem:[%s2534 + $0x34] sm:$0xf]
  %v2549 = vld [vmem:[%s2534 + $0x38] sm:$0xf]
  %v2550 = vld [vmem:[%s2534 + $0x3c] sm:$0xf]
  %v2567 = vunpack.c.l.b16 %v2535
  %v2568 = vunpack.c.l.b16 %v2536
  %v2569 = vunpack.c.l.b16 %v2537
  %v2570 = vunpack.c.l.b16 %v2538
  %v2571 = vunpack.c.l.b16 %v2539
  %v2572 = vunpack.c.l.b16 %v2540
  %v2573 = vunpack.c.l.b16 %v2541
  %v2574 = vunpack.c.l.b16 %v2542
  %v2575 = vunpack.c.l.b16 %v2543
  %v2576 = vunpack.c.l.b16 %v2544
  %v2577 = vunpack.c.l.b16 %v2545
  %v2578 = vunpack.c.l.b16 %v2546
  %v2579 = vunpack.c.l.b16 %v2547
  %v2580 = vunpack.c.l.b16 %v2548
  %v2581 = vunpack.c.l.b16 %v2549
  %v2582 = vunpack.c.l.b16 %v2550
  %v2583 = vpack.c.b16 %v2568, %v2567
  %v2584 = vpack.c.b16 %v2570, %v2569
  %v2585 = vpack.c.b16 %v2572, %v2571
  %v2586 = vpack.c.b16 %v2574, %v2573
  %v2587 = vpack.c.b16 %v2576, %v2575
  %v2588 = vpack.c.b16 %v2578, %v2577
  %v2589 = vpack.c.b16 %v2580, %v2579
  %v2590 = vpack.c.b16 %v2582, %v2581
  %2599 = vmatprep.subr.bf16.mxu0 0
  %2600 = vmatpush1.bf16.msra.mxu0 %v2590
  %2601 = vmatprep.subr.bf16.mxu0 0
  %2602 = vmatpush1.bf16.msra.mxu0 %v2589
  %2603 = vmatprep.subr.bf16.mxu0 0
  %2604 = vmatpush1.bf16.msra.mxu0 %v2588
  %2605 = vmatprep.subr.bf16.mxu0 0
  %2606 = vmatpush1.bf16.msra.mxu0 %v2587
  %2607 = vmatprep.subr.bf16.mxu0 0
  %2608 = vmatpush1.bf16.msra.mxu0 %v2586
  %2609 = vmatprep.subr.bf16.mxu0 0
  %2610 = vmatpush1.bf16.msra.mxu0 %v2585
  %2611 = vmatprep.subr.bf16.mxu0 0
  %2612 = vmatpush1.bf16.msra.mxu0 %v2584
  %2613 = vmatprep.subr.bf16.mxu0 0
  %2614 = vmatpush1.bf16.msra.mxu0 %v2583
  %2615 = vmatprep.subr.bf16.mxu0 0
  %2616 = vmatpush2.bf16.msra.mxu0 0
  %2617 = vmatprep.subr.bf16.mxu0 0
  %2618 = vmatpush2.bf16.msra.mxu0 0
  %2619 = vmatprep.subr.bf16.mxu0 0
  %2620 = vmatpush2.bf16.msra.mxu0 0
  %2621 = vmatprep.subr.bf16.mxu0 0
  %2622 = vmatpush2.bf16.msra.mxu0 0
  %2623 = vmatprep.subr.bf16.mxu0 0
  %2624 = vmatpush2.bf16.msra.mxu0 0
  %2625 = vmatprep.subr.bf16.mxu0 0
  %2626 = vmatpush2.bf16.msra.mxu0 0
  %2627 = vmatprep.subr.bf16.mxu0 0
  %2628 = vmatpush2.bf16.msra.mxu0 0
  %2629 = vmatprep.subr.bf16.mxu0 0
  %2630 = vmatpush2.bf16.msra.mxu0 0
  %2631 = vmatprep.mubr.bf16.mxu0 0
  %2632 = vmatmul.mubr.bf16.gmra.mxu0 %v1167
  %v2633 = vpop.f32.mrf.mxu0
  %v2634 = vadd.f32 0.0, %v2633
  %v2635 = vpop.f32.mrf.mxu0
  %v2636 = vpop.f32.mrf.mxu0
  %v2637 = vadd.f32 0.0, %v2636
  %v2638 = vpop.f32.mrf.mxu0
  %2639 = vmatprep.mubr.bf16.mxu0 0
  %2640 = vmatmul.mubr.bf16.gmra.mxu0 %v1168
  %v2641 = vpop.f32.mrf.mxu0
  %v2642 = vadd.f32 0.0, %v2641
  %v2643 = vpop.f32.mrf.mxu0
  %v2644 = vpop.f32.mrf.mxu0
  %v2645 = vadd.f32 0.0, %v2644
  %v2646 = vpop.f32.mrf.mxu0
  %2647 = vmatprep.mubr.bf16.mxu0 0
  %2648 = vmatmul.mubr.bf16.gmra.mxu0 %v1169
  %v2649 = vpop.f32.mrf.mxu0
  %v2650 = vadd.f32 0.0, %v2649
  %v2651 = vpop.f32.mrf.mxu0
  %v2652 = vpop.f32.mrf.mxu0
  %v2653 = vadd.f32 0.0, %v2652
  %v2654 = vpop.f32.mrf.mxu0
  %2655 = vmatprep.mubr.bf16.mxu0 0
  %2656 = vmatmul.mubr.bf16.gmra.mxu0 %v1170
  %v2657 = vpop.f32.mrf.mxu0
  %v2658 = vadd.f32 0.0, %v2657
  %v2659 = vpop.f32.mrf.mxu0
  %v2660 = vpop.f32.mrf.mxu0
  %v2661 = vadd.f32 0.0, %v2660
  %v2662 = vpop.f32.mrf.mxu0
  %2663 = vmatprep.mubr.bf16.mxu0 0
  %2664 = vmatmul.mubr.bf16.gmra.mxu0 %v1171
  %v2665 = vpop.f32.mrf.mxu0
  %v2666 = vadd.f32 0.0, %v2665
  %v2667 = vpop.f32.mrf.mxu0
  %v2668 = vpop.f32.mrf.mxu0
  %v2669 = vadd.f32 0.0, %v2668
  %v2670 = vpop.f32.mrf.mxu0
  %2671 = vmatprep.mubr.bf16.mxu0 0
  %2672 = vmatmul.mubr.bf16.gmra.mxu0 %v1172
  %v2673 = vpop.f32.mrf.mxu0
  %v2674 = vadd.f32 0.0, %v2673
  %v2675 = vpop.f32.mrf.mxu0
  %v2676 = vpop.f32.mrf.mxu0
  %v2677 = vadd.f32 0.0, %v2676
  %v2678 = vpop.f32.mrf.mxu0
  %2679 = vmatprep.mubr.bf16.mxu0 0
  %2680 = vmatmul.mubr.bf16.gmra.mxu0 %v1173
  %v2681 = vpop.f32.mrf.mxu0
  %v2682 = vadd.f32 0.0, %v2681
  %v2683 = vpop.f32.mrf.mxu0
  %v2684 = vpop.f32.mrf.mxu0
  %v2685 = vadd.f32 0.0, %v2684
  %v2686 = vpop.f32.mrf.mxu0
  %2687 = vmatprep.mubr.bf16.mxu0 0
  %2688 = vmatmul.mubr.bf16.gmra.mxu0 %v1174
  %v2689 = vpop.f32.mrf.mxu0
  %v2690 = vadd.f32 0.0, %v2689
  %v2691 = vpop.f32.mrf.mxu0
  %v2692 = vpop.f32.mrf.mxu0
  %v2693 = vadd.f32 0.0, %v2692
  %v2694 = vpop.f32.mrf.mxu0
  %2695 = vdwg.mxu0
  %v2696 = vadd.f32 %v2340, %v2634
  %v2697 = vadd.f32 %v2341, %v2637
  %v2698 = vadd.f32 %v2342, %v2642
  %v2699 = vadd.f32 %v2343, %v2645
  %v2700 = vadd.f32 %v2344, %v2650
  %v2701 = vadd.f32 %v2345, %v2653
  %v2702 = vadd.f32 %v2346, %v2658
  %v2703 = vadd.f32 %v2347, %v2661
  %v2704 = vadd.f32 %v2348, %v2666
  %v2705 = vadd.f32 %v2349, %v2669
  %v2706 = vadd.f32 %v2350, %v2674
  %v2707 = vadd.f32 %v2351, %v2677
  %v2708 = vadd.f32 %v2352, %v2682
  %v2709 = vadd.f32 %v2353, %v2685
  %v2710 = vadd.f32 %v2354, %v2690
  %v2711 = vadd.f32 %v2355, %v2693
  %s2712 = scalar_lea.vmem %s3, 576
  %v2713 = vld [vmem:[%s2712] sm:$0xf]
  %v2714 = vld [vmem:[%s2712 + $0x4] sm:$0xf]
  %v2715 = vld [vmem:[%s2712 + $0x8] sm:$0xf]
  %v2716 = vld [vmem:[%s2712 + $0xc] sm:$0xf]
  %v2717 = vld [vmem:[%s2712 + $0x10] sm:$0xf]
  %v2718 = vld [vmem:[%s2712 + $0x14] sm:$0xf]
  %v2719 = vld [vmem:[%s2712 + $0x18] sm:$0xf]
  %v2720 = vld [vmem:[%s2712 + $0x1c] sm:$0xf]
  %v2721 = vld [vmem:[%s2712 + $0x20] sm:$0xf]
  %v2722 = vld [vmem:[%s2712 + $0x24] sm:$0xf]
  %v2723 = vld [vmem:[%s2712 + $0x28] sm:$0xf]
  %v2724 = vld [vmem:[%s2712 + $0x2c] sm:$0xf]
  %v2725 = vld [vmem:[%s2712 + $0x30] sm:$0xf]
  %v2726 = vld [vmem:[%s2712 + $0x34] sm:$0xf]
  %v2727 = vld [vmem:[%s2712 + $0x38] sm:$0xf]
  %v2728 = vld [vmem:[%s2712 + $0x3c] sm:$0xf]
  %v2745 = vunpack.c.l.b16 %v2713
  %v2746 = vunpack.c.l.b16 %v2714
  %v2747 = vunpack.c.l.b16 %v2715
  %v2748 = vunpack.c.l.b16 %v2716
  %v2749 = vunpack.c.l.b16 %v2717
  %v2750 = vunpack.c.l.b16 %v2718
  %v2751 = vunpack.c.l.b16 %v2719
  %v2752 = vunpack.c.l.b16 %v2720
  %v2753 = vunpack.c.l.b16 %v2721
  %v2754 = vunpack.c.l.b16 %v2722
  %v2755 = vunpack.c.l.b16 %v2723
  %v2756 = vunpack.c.l.b16 %v2724
  %v2757 = vunpack.c.l.b16 %v2725
  %v2758 = vunpack.c.l.b16 %v2726
  %v2759 = vunpack.c.l.b16 %v2727
  %v2760 = vunpack.c.l.b16 %v2728
  %v2761 = vpack.c.b16 %v2746, %v2745
  %v2762 = vpack.c.b16 %v2748, %v2747
  %v2763 = vpack.c.b16 %v2750, %v2749
  %v2764 = vpack.c.b16 %v2752, %v2751
  %v2765 = vpack.c.b16 %v2754, %v2753
  %v2766 = vpack.c.b16 %v2756, %v2755
  %v2767 = vpack.c.b16 %v2758, %v2757
  %v2768 = vpack.c.b16 %v2760, %v2759
  %2777 = vmatprep.subr.bf16.mxu0 0
  %2778 = vmatpush1.bf16.msra.mxu0 %v2768
  %2779 = vmatprep.subr.bf16.mxu0 0
  %2780 = vmatpush1.bf16.msra.mxu0 %v2767
  %2781 = vmatprep.subr.bf16.mxu0 0
  %2782 = vmatpush1.bf16.msra.mxu0 %v2766
  %2783 = vmatprep.subr.bf16.mxu0 0
  %2784 = vmatpush1.bf16.msra.mxu0 %v2765
  %2785 = vmatprep.subr.bf16.mxu0 0
  %2786 = vmatpush1.bf16.msra.mxu0 %v2764
  %2787 = vmatprep.subr.bf16.mxu0 0
  %2788 = vmatpush1.bf16.msra.mxu0 %v2763
  %2789 = vmatprep.subr.bf16.mxu0 0
  %2790 = vmatpush1.bf16.msra.mxu0 %v2762
  %2791 = vmatprep.subr.bf16.mxu0 0
  %2792 = vmatpush1.bf16.msra.mxu0 %v2761
  %2793 = vmatprep.subr.bf16.mxu0 0
  %2794 = vmatpush2.bf16.msra.mxu0 0
  %2795 = vmatprep.subr.bf16.mxu0 0
  %2796 = vmatpush2.bf16.msra.mxu0 0
  %2797 = vmatprep.subr.bf16.mxu0 0
  %2798 = vmatpush2.bf16.msra.mxu0 0
  %2799 = vmatprep.subr.bf16.mxu0 0
  %2800 = vmatpush2.bf16.msra.mxu0 0
  %2801 = vmatprep.subr.bf16.mxu0 0
  %2802 = vmatpush2.bf16.msra.mxu0 0
  %2803 = vmatprep.subr.bf16.mxu0 0
  %2804 = vmatpush2.bf16.msra.mxu0 0
  %2805 = vmatprep.subr.bf16.mxu0 0
  %2806 = vmatpush2.bf16.msra.mxu0 0
  %2807 = vmatprep.subr.bf16.mxu0 0
  %2808 = vmatpush2.bf16.msra.mxu0 0
  %2809 = vmatprep.mubr.bf16.mxu0 0
  %2810 = vmatmul.mubr.bf16.gmra.mxu0 %v1167
  %v2811 = vpop.f32.mrf.mxu0
  %v2812 = vadd.f32 0.0, %v2811
  %v2813 = vpop.f32.mrf.mxu0
  %v2814 = vpop.f32.mrf.mxu0
  %v2815 = vadd.f32 0.0, %v2814
  %v2816 = vpop.f32.mrf.mxu0
  %2817 = vmatprep.mubr.bf16.mxu0 0
  %2818 = vmatmul.mubr.bf16.gmra.mxu0 %v1168
  %v2819 = vpop.f32.mrf.mxu0
  %v2820 = vadd.f32 0.0, %v2819
  %v2821 = vpop.f32.mrf.mxu0
  %v2822 = vpop.f32.mrf.mxu0
  %v2823 = vadd.f32 0.0, %v2822
  %v2824 = vpop.f32.mrf.mxu0
  %2825 = vmatprep.mubr.bf16.mxu0 0
  %2826 = vmatmul.mubr.bf16.gmra.mxu0 %v1169
  %v2827 = vpop.f32.mrf.mxu0
  %v2828 = vadd.f32 0.0, %v2827
  %v2829 = vpop.f32.mrf.mxu0
  %v2830 = vpop.f32.mrf.mxu0
  %v2831 = vadd.f32 0.0, %v2830
  %v2832 = vpop.f32.mrf.mxu0
  %2833 = vmatprep.mubr.bf16.mxu0 0
  %2834 = vmatmul.mubr.bf16.gmra.mxu0 %v1170
  %v2835 = vpop.f32.mrf.mxu0
  %v2836 = vadd.f32 0.0, %v2835
  %v2837 = vpop.f32.mrf.mxu0
  %v2838 = vpop.f32.mrf.mxu0
  %v2839 = vadd.f32 0.0, %v2838
  %v2840 = vpop.f32.mrf.mxu0
  %2841 = vmatprep.mubr.bf16.mxu0 0
  %2842 = vmatmul.mubr.bf16.gmra.mxu0 %v1171
  %v2843 = vpop.f32.mrf.mxu0
  %v2844 = vadd.f32 0.0, %v2843
  %v2845 = vpop.f32.mrf.mxu0
  %v2846 = vpop.f32.mrf.mxu0
  %v2847 = vadd.f32 0.0, %v2846
  %v2848 = vpop.f32.mrf.mxu0
  %2849 = vmatprep.mubr.bf16.mxu0 0
  %2850 = vmatmul.mubr.bf16.gmra.mxu0 %v1172
  %v2851 = vpop.f32.mrf.mxu0
  %v2852 = vadd.f32 0.0, %v2851
  %v2853 = vpop.f32.mrf.mxu0
  %v2854 = vpop.f32.mrf.mxu0
  %v2855 = vadd.f32 0.0, %v2854
  %v2856 = vpop.f32.mrf.mxu0
  %2857 = vmatprep.mubr.bf16.mxu0 0
  %2858 = vmatmul.mubr.bf16.gmra.mxu0 %v1173
  %v2859 = vpop.f32.mrf.mxu0
  %v2860 = vadd.f32 0.0, %v2859
  %v2861 = vpop.f32.mrf.mxu0
  %v2862 = vpop.f32.mrf.mxu0
  %v2863 = vadd.f32 0.0, %v2862
  %v2864 = vpop.f32.mrf.mxu0
  %2865 = vmatprep.mubr.bf16.mxu0 0
  %2866 = vmatmul.mubr.bf16.gmra.mxu0 %v1174
  %v2867 = vpop.f32.mrf.mxu0
  %v2868 = vadd.f32 0.0, %v2867
  %v2869 = vpop.f32.mrf.mxu0
  %v2870 = vpop.f32.mrf.mxu0
  %v2871 = vadd.f32 0.0, %v2870
  %v2872 = vpop.f32.mrf.mxu0
  %2873 = vdwg.mxu0
  %v2874 = vadd.f32 %v2518, %v2812
  %v2875 = vadd.f32 %v2519, %v2815
  %v2876 = vadd.f32 %v2520, %v2820
  %v2877 = vadd.f32 %v2521, %v2823
  %v2878 = vadd.f32 %v2522, %v2828
  %v2879 = vadd.f32 %v2523, %v2831
  %v2880 = vadd.f32 %v2524, %v2836
  %v2881 = vadd.f32 %v2525, %v2839
  %v2882 = vadd.f32 %v2526, %v2844
  %v2883 = vadd.f32 %v2527, %v2847
  %v2884 = vadd.f32 %v2528, %v2852
  %v2885 = vadd.f32 %v2529, %v2855
  %v2886 = vadd.f32 %v2530, %v2860
  %v2887 = vadd.f32 %v2531, %v2863
  %v2888 = vadd.f32 %v2532, %v2868
  %v2889 = vadd.f32 %v2533, %v2871
  %v2890 = vmax.f32 %v2696, %v2874
  %v2891 = vmax.f32 %v2697, %v2875
  %v2892 = vmax.f32 %v2698, %v2876
  %v2893 = vmax.f32 %v2699, %v2877
  %v2894 = vmax.f32 %v2700, %v2878
  %v2895 = vmax.f32 %v2701, %v2879
  %v2896 = vmax.f32 %v2702, %v2880
  %v2897 = vmax.f32 %v2703, %v2881
  %v2898 = vmax.f32 %v2704, %v2882
  %v2899 = vmax.f32 %v2705, %v2883
  %v2900 = vmax.f32 %v2706, %v2884
  %v2901 = vmax.f32 %v2707, %v2885
  %v2902 = vmax.f32 %v2708, %v2886
  %v2903 = vmax.f32 %v2709, %v2887
  %v2904 = vmax.f32 %v2710, %v2888
  %v2905 = vmax.f32 %v2711, %v2889
  %v2906 = vmax.f32 %v2890, %v2892
  %v2907 = vmax.f32 %v2891, %v2893
  %v2908 = vmax.f32 %v2894, %v2896
  %v2909 = vmax.f32 %v2895, %v2897
  %v2910 = vmax.f32 %v2898, %v2900
  %v2911 = vmax.f32 %v2899, %v2901
  %v2912 = vmax.f32 %v2902, %v2904
  %v2913 = vmax.f32 %v2903, %v2905
  %v2914 = vld [vmem:[%s4] sm:$0x1]
  %v2916 = vlaneseq
  %v2917 = vshrl.u32 %v2916, 7
  %v2918 = vsub.s32 0, %v2917
  %v2919 = vrot.slane %v2914, %v2918
  %v2921 = vadd.f32 %v2906, %v2919
  %v2922 = vadd.f32 %v2907, %v2919
  %v2923 = vadd.f32 %v2908, %v2919
  %v2924 = vadd.f32 %v2909, %v2919
  %v2925 = vadd.f32 %v2910, %v2919
  %v2926 = vadd.f32 %v2911, %v2919
  %v2927 = vadd.f32 %v2912, %v2919
  %v2928 = vadd.f32 %v2913, %v2919
  %v2929 = vmax.f32 %v2921, 0.0
  %v2930 = vmax.f32 %v2922, 0.0
  %v2931 = vmax.f32 %v2923, 0.0
  %v2932 = vmax.f32 %v2924, 0.0
  %v2933 = vmax.f32 %v2925, 0.0
  %v2934 = vmax.f32 %v2926, 0.0
  %v2935 = vmax.f32 %v2927, 0.0
  %v2936 = vmax.f32 %v2928, 0.0
  %v2937 = vpack.c.bf16 %v2930, %v2929
  %v2938 = vpack.c.bf16 %v2932, %v2931
  %v2939 = vpack.c.bf16 %v2934, %v2933
  %v2940 = vpack.c.bf16 %v2936, %v2935
  %v2941 = vld [vmem:[%s5] sm:$0xf]
  %v2942 = vld [vmem:[%s5 + $0x4] sm:$0xf]
  %v2943 = vld [vmem:[%s5 + $0x8] sm:$0xf]
  %v2944 = vld [vmem:[%s5 + $0xc] sm:$0xf]
  %v2945 = vld [vmem:[%s5 + $0x10] sm:$0xf]
  %v2946 = vld [vmem:[%s5 + $0x14] sm:$0xf]
  %v2947 = vld [vmem:[%s5 + $0x18] sm:$0xf]
  %v2948 = vld [vmem:[%s5 + $0x1c] sm:$0xf]
  %v2949 = vld [vmem:[%s5 + $0x20] sm:$0xf]
  %v2950 = vld [vmem:[%s5 + $0x24] sm:$0xf]
  %v2951 = vld [vmem:[%s5 + $0x28] sm:$0xf]
  %v2952 = vld [vmem:[%s5 + $0x2c] sm:$0xf]
  %v2953 = vld [vmem:[%s5 + $0x30] sm:$0xf]
  %v2954 = vld [vmem:[%s5 + $0x34] sm:$0xf]
  %v2955 = vld [vmem:[%s5 + $0x38] sm:$0xf]
  %v2956 = vld [vmem:[%s5 + $0x3c] sm:$0xf]
  %s2957 = scalar_lea.vmem %s5, 64
  %v2958 = vld [vmem:[%s2957] sm:$0xf]
  %v2959 = vld [vmem:[%s2957 + $0x4] sm:$0xf]
  %v2960 = vld [vmem:[%s2957 + $0x8] sm:$0xf]
  %v2961 = vld [vmem:[%s2957 + $0xc] sm:$0xf]
  %v2962 = vld [vmem:[%s2957 + $0x10] sm:$0xf]
  %v2963 = vld [vmem:[%s2957 + $0x14] sm:$0xf]
  %v2964 = vld [vmem:[%s2957 + $0x18] sm:$0xf]
  %v2965 = vld [vmem:[%s2957 + $0x1c] sm:$0xf]
  %v2966 = vld [vmem:[%s2957 + $0x20] sm:$0xf]
  %v2967 = vld [vmem:[%s2957 + $0x24] sm:$0xf]
  %v2968 = vld [vmem:[%s2957 + $0x28] sm:$0xf]
  %v2969 = vld [vmem:[%s2957 + $0x2c] sm:$0xf]
  %v2970 = vld [vmem:[%s2957 + $0x30] sm:$0xf]
  %v2971 = vld [vmem:[%s2957 + $0x34] sm:$0xf]
  %v2972 = vld [vmem:[%s2957 + $0x38] sm:$0xf]
  %v2973 = vld [vmem:[%s2957 + $0x3c] sm:$0xf]
  %v2990 = vunpack.c.l.b16 %v2958
  %v2991 = vunpack.c.l.b16 %v2959
  %v2992 = vunpack.c.l.b16 %v2960
  %v2993 = vunpack.c.l.b16 %v2961
  %v2994 = vunpack.c.l.b16 %v2962
  %v2995 = vunpack.c.l.b16 %v2963
  %v2996 = vunpack.c.l.b16 %v2964
  %v2997 = vunpack.c.l.b16 %v2965
  %v2998 = vunpack.c.l.b16 %v2966
  %v2999 = vunpack.c.l.b16 %v2967
  %v3000 = vunpack.c.l.b16 %v2968
  %v3001 = vunpack.c.l.b16 %v2969
  %v3002 = vunpack.c.l.b16 %v2970
  %v3003 = vunpack.c.l.b16 %v2971
  %v3004 = vunpack.c.l.b16 %v2972
  %v3005 = vunpack.c.l.b16 %v2973
  %v3006 = vpack.c.b16 %v2991, %v2990
  %v3007 = vpack.c.b16 %v2993, %v2992
  %v3008 = vpack.c.b16 %v2995, %v2994
  %v3009 = vpack.c.b16 %v2997, %v2996
  %v3010 = vpack.c.b16 %v2999, %v2998
  %v3011 = vpack.c.b16 %v3001, %v3000
  %v3012 = vpack.c.b16 %v3003, %v3002
  %v3013 = vpack.c.b16 %v3005, %v3004
  %3022 = vmatprep.subr.bf16.mxu0 0
  %3023 = vmatpush1.bf16.msra.mxu0 %v3013
  %3024 = vmatprep.subr.bf16.mxu0 0
  %3025 = vmatpush1.bf16.msra.mxu0 %v3012
  %3026 = vmatprep.subr.bf16.mxu0 0
  %3027 = vmatpush1.bf16.msra.mxu0 %v3011
  %3028 = vmatprep.subr.bf16.mxu0 0
  %3029 = vmatpush1.bf16.msra.mxu0 %v3010
  %3030 = vmatprep.subr.bf16.mxu0 0
  %3031 = vmatpush1.bf16.msra.mxu0 %v3009
  %3032 = vmatprep.subr.bf16.mxu0 0
  %3033 = vmatpush1.bf16.msra.mxu0 %v3008
  %3034 = vmatprep.subr.bf16.mxu0 0
  %3035 = vmatpush1.bf16.msra.mxu0 %v3007
  %3036 = vmatprep.subr.bf16.mxu0 0
  %3037 = vmatpush1.bf16.msra.mxu0 %v3006
  %3038 = vmatprep.subr.bf16.mxu0 0
  %3039 = vmatpush2.bf16.msra.mxu0 0
  %3040 = vmatprep.subr.bf16.mxu0 0
  %3041 = vmatpush2.bf16.msra.mxu0 0
  %3042 = vmatprep.subr.bf16.mxu0 0
  %3043 = vmatpush2.bf16.msra.mxu0 0
  %3044 = vmatprep.subr.bf16.mxu0 0
  %3045 = vmatpush2.bf16.msra.mxu0 0
  %3046 = vmatprep.subr.bf16.mxu0 0
  %3047 = vmatpush2.bf16.msra.mxu0 0
  %3048 = vmatprep.subr.bf16.mxu0 0
  %3049 = vmatpush2.bf16.msra.mxu0 0
  %3050 = vmatprep.subr.bf16.mxu0 0
  %3051 = vmatpush2.bf16.msra.mxu0 0
  %3052 = vmatprep.subr.bf16.mxu0 0
  %3053 = vmatpush2.bf16.msra.mxu0 0
  %3054 = vmatprep.mubr.bf16.mxu0 0
  %3055 = vmatmul.mubr.bf16.gmra.mxu0 %v2938
  %v3056 = vpop.f32.mrf.mxu0
  %v3057 = vadd.f32 0.0, %v3056
  %v3058 = vpop.f32.mrf.mxu0
  %v3059 = vpop.f32.mrf.mxu0
  %v3060 = vadd.f32 0.0, %v3059
  %v3061 = vpop.f32.mrf.mxu0
  %3062 = vdwg.mxu0
  %v3079 = vunpack.c.l.b16 %v2941
  %v3080 = vunpack.c.l.b16 %v2942
  %v3081 = vunpack.c.l.b16 %v2943
  %v3082 = vunpack.c.l.b16 %v2944
  %v3083 = vunpack.c.l.b16 %v2945
  %v3084 = vunpack.c.l.b16 %v2946
  %v3085 = vunpack.c.l.b16 %v2947
  %v3086 = vunpack.c.l.b16 %v2948
  %v3087 = vunpack.c.l.b16 %v2949
  %v3088 = vunpack.c.l.b16 %v2950
  %v3089 = vunpack.c.l.b16 %v2951
  %v3090 = vunpack.c.l.b16 %v2952
  %v3091 = vunpack.c.l.b16 %v2953
  %v3092 = vunpack.c.l.b16 %v2954
  %v3093 = vunpack.c.l.b16 %v2955
  %v3094 = vunpack.c.l.b16 %v2956
  %v3095 = vpack.c.b16 %v3080, %v3079
  %v3096 = vpack.c.b16 %v3082, %v3081
  %v3097 = vpack.c.b16 %v3084, %v3083
  %v3098 = vpack.c.b16 %v3086, %v3085
  %v3099 = vpack.c.b16 %v3088, %v3087
  %v3100 = vpack.c.b16 %v3090, %v3089
  %v3101 = vpack.c.b16 %v3092, %v3091
  %v3102 = vpack.c.b16 %v3094, %v3093
  %3111 = vmatprep.subr.bf16.mxu0 0
  %3112 = vmatpush1.bf16.msra.mxu0 %v3102
  %3113 = vmatprep.subr.bf16.mxu0 0
  %3114 = vmatpush1.bf16.msra.mxu0 %v3101
  %3115 = vmatprep.subr.bf16.mxu0 0
  %3116 = vmatpush1.bf16.msra.mxu0 %v3100
  %3117 = vmatprep.subr.bf16.mxu0 0
  %3118 = vmatpush1.bf16.msra.mxu0 %v3099
  %3119 = vmatprep.subr.bf16.mxu0 0
  %3120 = vmatpush1.bf16.msra.mxu0 %v3098
  %3121 = vmatprep.subr.bf16.mxu0 0
  %3122 = vmatpush1.bf16.msra.mxu0 %v3097
  %3123 = vmatprep.subr.bf16.mxu0 0
  %3124 = vmatpush1.bf16.msra.mxu0 %v3096
  %3125 = vmatprep.subr.bf16.mxu0 0
  %3126 = vmatpush1.bf16.msra.mxu0 %v3095
  %3127 = vmatprep.subr.bf16.mxu0 0
  %3128 = vmatpush2.bf16.msra.mxu0 0
  %3129 = vmatprep.subr.bf16.mxu0 0
  %3130 = vmatpush2.bf16.msra.mxu0 0
  %3131 = vmatprep.subr.bf16.mxu0 0
  %3132 = vmatpush2.bf16.msra.mxu0 0
  %3133 = vmatprep.subr.bf16.mxu0 0
  %3134 = vmatpush2.bf16.msra.mxu0 0
  %3135 = vmatprep.subr.bf16.mxu0 0
  %3136 = vmatpush2.bf16.msra.mxu0 0
  %3137 = vmatprep.subr.bf16.mxu0 0
  %3138 = vmatpush2.bf16.msra.mxu0 0
  %3139 = vmatprep.subr.bf16.mxu0 0
  %3140 = vmatpush2.bf16.msra.mxu0 0
  %3141 = vmatprep.subr.bf16.mxu0 0
  %3142 = vmatpush2.bf16.msra.mxu0 0
  %3143 = vmatprep.mubr.bf16.mxu0 0
  %3144 = vmatmul.mubr.bf16.gmra.mxu0 %v2937
  %v3145 = vpop.f32.mrf.mxu0
  %v3146 = vadd.f32 %v3057, %v3145
  %v3147 = vpop.f32.mrf.mxu0
  %v3148 = vpop.f32.mrf.mxu0
  %v3149 = vadd.f32 %v3060, %v3148
  %v3150 = vpop.f32.mrf.mxu0
  %3151 = vdwg.mxu0
  %s3152 = scalar_lea.vmem %s5, 128
  %v3153 = vld [vmem:[%s3152] sm:$0xf]
  %v3154 = vld [vmem:[%s3152 + $0x4] sm:$0xf]
  %v3155 = vld [vmem:[%s3152 + $0x8] sm:$0xf]
  %v3156 = vld [vmem:[%s3152 + $0xc] sm:$0xf]
  %v3157 = vld [vmem:[%s3152 + $0x10] sm:$0xf]
  %v3158 = vld [vmem:[%s3152 + $0x14] sm:$0xf]
  %v3159 = vld [vmem:[%s3152 + $0x18] sm:$0xf]
  %v3160 = vld [vmem:[%s3152 + $0x1c] sm:$0xf]
  %v3161 = vld [vmem:[%s3152 + $0x20] sm:$0xf]
  %v3162 = vld [vmem:[%s3152 + $0x24] sm:$0xf]
  %v3163 = vld [vmem:[%s3152 + $0x28] sm:$0xf]
  %v3164 = vld [vmem:[%s3152 + $0x2c] sm:$0xf]
  %v3165 = vld [vmem:[%s3152 + $0x30] sm:$0xf]
  %v3166 = vld [vmem:[%s3152 + $0x34] sm:$0xf]
  %v3167 = vld [vmem:[%s3152 + $0x38] sm:$0xf]
  %v3168 = vld [vmem:[%s3152 + $0x3c] sm:$0xf]
  %v3185 = vunpack.c.l.b16 %v3153
  %v3186 = vunpack.c.l.b16 %v3154
  %v3187 = vunpack.c.l.b16 %v3155
  %v3188 = vunpack.c.l.b16 %v3156
  %v3189 = vunpack.c.l.b16 %v3157
  %v3190 = vunpack.c.l.b16 %v3158
  %v3191 = vunpack.c.l.b16 %v3159
  %v3192 = vunpack.c.l.b16 %v3160
  %v3193 = vunpack.c.l.b16 %v3161
  %v3194 = vunpack.c.l.b16 %v3162
  %v3195 = vunpack.c.l.b16 %v3163
  %v3196 = vunpack.c.l.b16 %v3164
  %v3197 = vunpack.c.l.b16 %v3165
  %v3198 = vunpack.c.l.b16 %v3166
  %v3199 = vunpack.c.l.b16 %v3167
  %v3200 = vunpack.c.l.b16 %v3168
  %v3201 = vpack.c.b16 %v3186, %v3185
  %v3202 = vpack.c.b16 %v3188, %v3187
  %v3203 = vpack.c.b16 %v3190, %v3189
  %v3204 = vpack.c.b16 %v3192, %v3191
  %v3205 = vpack.c.b16 %v3194, %v3193
  %v3206 = vpack.c.b16 %v3196, %v3195
  %v3207 = vpack.c.b16 %v3198, %v3197
  %v3208 = vpack.c.b16 %v3200, %v3199
  %3217 = vmatprep.subr.bf16.mxu0 0
  %3218 = vmatpush1.bf16.msra.mxu0 %v3208
  %3219 = vmatprep.subr.bf16.mxu0 0
  %3220 = vmatpush1.bf16.msra.mxu0 %v3207
  %3221 = vmatprep.subr.bf16.mxu0 0
  %3222 = vmatpush1.bf16.msra.mxu0 %v3206
  %3223 = vmatprep.subr.bf16.mxu0 0
  %3224 = vmatpush1.bf16.msra.mxu0 %v3205
  %3225 = vmatprep.subr.bf16.mxu0 0
  %3226 = vmatpush1.bf16.msra.mxu0 %v3204
  %3227 = vmatprep.subr.bf16.mxu0 0
  %3228 = vmatpush1.bf16.msra.mxu0 %v3203
  %3229 = vmatprep.subr.bf16.mxu0 0
  %3230 = vmatpush1.bf16.msra.mxu0 %v3202
  %3231 = vmatprep.subr.bf16.mxu0 0
  %3232 = vmatpush1.bf16.msra.mxu0 %v3201
  %3233 = vmatprep.subr.bf16.mxu0 0
  %3234 = vmatpush2.bf16.msra.mxu0 0
  %3235 = vmatprep.subr.bf16.mxu0 0
  %3236 = vmatpush2.bf16.msra.mxu0 0
  %3237 = vmatprep.subr.bf16.mxu0 0
  %3238 = vmatpush2.bf16.msra.mxu0 0
  %3239 = vmatprep.subr.bf16.mxu0 0
  %3240 = vmatpush2.bf16.msra.mxu0 0
  %3241 = vmatprep.subr.bf16.mxu0 0
  %3242 = vmatpush2.bf16.msra.mxu0 0
  %3243 = vmatprep.subr.bf16.mxu0 0
  %3244 = vmatpush2.bf16.msra.mxu0 0
  %3245 = vmatprep.subr.bf16.mxu0 0
  %3246 = vmatpush2.bf16.msra.mxu0 0
  %3247 = vmatprep.subr.bf16.mxu0 0
  %3248 = vmatpush2.bf16.msra.mxu0 0
  %3249 = vmatprep.mubr.bf16.mxu0 0
  %3250 = vmatmul.mubr.bf16.gmra.mxu0 %v2939
  %v3251 = vpop.f32.mrf.mxu0
  %v3252 = vadd.f32 0.0, %v3251
  %v3253 = vpop.f32.mrf.mxu0
  %v3254 = vpop.f32.mrf.mxu0
  %v3255 = vadd.f32 0.0, %v3254
  %v3256 = vpop.f32.mrf.mxu0
  %3257 = vdwg.mxu0
  %v3258 = vadd.f32 %v3146, %v3252
  %v3259 = vadd.f32 %v3149, %v3255
  %s3260 = scalar_lea.vmem %s5, 192
  %v3261 = vld [vmem:[%s3260] sm:$0xf]
  %v3262 = vld [vmem:[%s3260 + $0x4] sm:$0xf]
  %v3263 = vld [vmem:[%s3260 + $0x8] sm:$0xf]
  %v3264 = vld [vmem:[%s3260 + $0xc] sm:$0xf]
  %v3265 = vld [vmem:[%s3260 + $0x10] sm:$0xf]
  %v3266 = vld [vmem:[%s3260 + $0x14] sm:$0xf]
  %v3267 = vld [vmem:[%s3260 + $0x18] sm:$0xf]
  %v3268 = vld [vmem:[%s3260 + $0x1c] sm:$0xf]
  %v3269 = vld [vmem:[%s3260 + $0x20] sm:$0xf]
  %v3270 = vld [vmem:[%s3260 + $0x24] sm:$0xf]
  %v3271 = vld [vmem:[%s3260 + $0x28] sm:$0xf]
  %v3272 = vld [vmem:[%s3260 + $0x2c] sm:$0xf]
  %v3273 = vld [vmem:[%s3260 + $0x30] sm:$0xf]
  %v3274 = vld [vmem:[%s3260 + $0x34] sm:$0xf]
  %v3275 = vld [vmem:[%s3260 + $0x38] sm:$0xf]
  %v3276 = vld [vmem:[%s3260 + $0x3c] sm:$0xf]
  %v3293 = vunpack.c.l.b16 %v3261
  %v3294 = vunpack.c.l.b16 %v3262
  %v3295 = vunpack.c.l.b16 %v3263
  %v3296 = vunpack.c.l.b16 %v3264
  %v3297 = vunpack.c.l.b16 %v3265
  %v3298 = vunpack.c.l.b16 %v3266
  %v3299 = vunpack.c.l.b16 %v3267
  %v3300 = vunpack.c.l.b16 %v3268
  %v3301 = vunpack.c.l.b16 %v3269
  %v3302 = vunpack.c.l.b16 %v3270
  %v3303 = vunpack.c.l.b16 %v3271
  %v3304 = vunpack.c.l.b16 %v3272
  %v3305 = vunpack.c.l.b16 %v3273
  %v3306 = vunpack.c.l.b16 %v3274
  %v3307 = vunpack.c.l.b16 %v3275
  %v3308 = vunpack.c.l.b16 %v3276
  %v3309 = vpack.c.b16 %v3294, %v3293
  %v3310 = vpack.c.b16 %v3296, %v3295
  %v3311 = vpack.c.b16 %v3298, %v3297
  %v3312 = vpack.c.b16 %v3300, %v3299
  %v3313 = vpack.c.b16 %v3302, %v3301
  %v3314 = vpack.c.b16 %v3304, %v3303
  %v3315 = vpack.c.b16 %v3306, %v3305
  %v3316 = vpack.c.b16 %v3308, %v3307
  %3325 = vmatprep.subr.bf16.mxu0 0
  %3326 = vmatpush1.bf16.msra.mxu0 %v3316
  %3327 = vmatprep.subr.bf16.mxu0 0
  %3328 = vmatpush1.bf16.msra.mxu0 %v3315
  %3329 = vmatprep.subr.bf16.mxu0 0
  %3330 = vmatpush1.bf16.msra.mxu0 %v3314
  %3331 = vmatprep.subr.bf16.mxu0 0
  %3332 = vmatpush1.bf16.msra.mxu0 %v3313
  %3333 = vmatprep.subr.bf16.mxu0 0
  %3334 = vmatpush1.bf16.msra.mxu0 %v3312
  %3335 = vmatprep.subr.bf16.mxu0 0
  %3336 = vmatpush1.bf16.msra.mxu0 %v3311
  %3337 = vmatprep.subr.bf16.mxu0 0
  %3338 = vmatpush1.bf16.msra.mxu0 %v3310
  %3339 = vmatprep.subr.bf16.mxu0 0
  %3340 = vmatpush1.bf16.msra.mxu0 %v3309
  %3341 = vmatprep.subr.bf16.mxu0 0
  %3342 = vmatpush2.bf16.msra.mxu0 0
  %3343 = vmatprep.subr.bf16.mxu0 0
  %3344 = vmatpush2.bf16.msra.mxu0 0
  %3345 = vmatprep.subr.bf16.mxu0 0
  %3346 = vmatpush2.bf16.msra.mxu0 0
  %3347 = vmatprep.subr.bf16.mxu0 0
  %3348 = vmatpush2.bf16.msra.mxu0 0
  %3349 = vmatprep.subr.bf16.mxu0 0
  %3350 = vmatpush2.bf16.msra.mxu0 0
  %3351 = vmatprep.subr.bf16.mxu0 0
  %3352 = vmatpush2.bf16.msra.mxu0 0
  %3353 = vmatprep.subr.bf16.mxu0 0
  %3354 = vmatpush2.bf16.msra.mxu0 0
  %3355 = vmatprep.subr.bf16.mxu0 0
  %3356 = vmatpush2.bf16.msra.mxu0 0
  %3357 = vmatprep.mubr.bf16.mxu0 0
  %3358 = vmatmul.mubr.bf16.gmra.mxu0 %v2940
  %v3359 = vpop.f32.mrf.mxu0
  %v3360 = vadd.f32 0.0, %v3359
  %v3361 = vpop.f32.mrf.mxu0
  %v3362 = vpop.f32.mrf.mxu0
  %v3363 = vadd.f32 0.0, %v3362
  %v3364 = vpop.f32.mrf.mxu0
  %3365 = vdwg.mxu0
  %v3366 = vadd.f32 %v3258, %v3360
  %v3367 = vadd.f32 %v3259, %v3363
  %v3368 = vld [vmem:[%s6] sm:$0x1]
  %v3370 = vlaneseq
  %v3371 = vshrl.u32 %v3370, 7
  %v3372 = vsub.s32 0, %v3371
  %v3373 = vrot.slane %v3368, %v3372
  %v3375 = vadd.f32 %v3366, %v3373
  %v3376 = vadd.f32 %v3367, %v3373
  %v3377 = vmax.f32 %v3375, 0.0
  %v3378 = vmax.f32 %v3376, 0.0
  %v3379 = vpack.c.bf16 %v3378, %v3377
  %v3380 = vld [vmem:[%s7] sm:$0xf]
  %v3381 = vld [vmem:[%s7 + $0x4] sm:$0xf]
  %v3382 = vld [vmem:[%s7 + $0x8] sm:$0xf]
  %v3383 = vld [vmem:[%s7 + $0xc] sm:$0xf]
  %v3384 = vld [vmem:[%s7 + $0x10] sm:$0xf]
  %v3385 = vld [vmem:[%s7 + $0x14] sm:$0xf]
  %v3386 = vld [vmem:[%s7 + $0x18] sm:$0xf]
  %v3387 = vld [vmem:[%s7 + $0x1c] sm:$0xf]
  %v3388 = vld [vmem:[%s7 + $0x20] sm:$0xf]
  %v3389 = vld [vmem:[%s7 + $0x24] sm:$0xf]
  %v3390 = vld [vmem:[%s7 + $0x28] sm:$0xf]
  %v3391 = vld [vmem:[%s7 + $0x2c] sm:$0xf]
  %v3392 = vld [vmem:[%s7 + $0x30] sm:$0xf]
  %v3393 = vld [vmem:[%s7 + $0x34] sm:$0xf]
  %v3394 = vld [vmem:[%s7 + $0x38] sm:$0xf]
  %v3395 = vld [vmem:[%s7 + $0x3c] sm:$0xf]
  %v3396 = vld [vmem:[%s8] sm:$0x1]
  %v3398 = vlaneseq
  %v3399 = vshrl.u32 %v3398, 7
  %v3400 = vsub.s32 0, %v3399
  %v3401 = vrot.slane %v3396, %v3400
  %v3419 = vunpack.c.l.b16 %v3380
  %v3420 = vunpack.c.l.b16 %v3381
  %v3421 = vunpack.c.l.b16 %v3382
  %v3422 = vunpack.c.l.b16 %v3383
  %v3423 = vunpack.c.l.b16 %v3384
  %v3424 = vunpack.c.l.b16 %v3385
  %v3425 = vunpack.c.l.b16 %v3386
  %v3426 = vunpack.c.l.b16 %v3387
  %v3427 = vunpack.c.l.b16 %v3388
  %v3428 = vunpack.c.l.b16 %v3389
  %v3429 = vunpack.c.l.b16 %v3390
  %v3430 = vunpack.c.l.b16 %v3391
  %v3431 = vunpack.c.l.b16 %v3392
  %v3432 = vunpack.c.l.b16 %v3393
  %v3433 = vunpack.c.l.b16 %v3394
  %v3434 = vunpack.c.l.b16 %v3395
  %v3435 = vpack.c.b16 %v3420, %v3419
  %v3436 = vpack.c.b16 %v3422, %v3421
  %v3437 = vpack.c.b16 %v3424, %v3423
  %v3438 = vpack.c.b16 %v3426, %v3425
  %v3439 = vpack.c.b16 %v3428, %v3427
  %v3440 = vpack.c.b16 %v3430, %v3429
  %v3441 = vpack.c.b16 %v3432, %v3431
  %v3442 = vpack.c.b16 %v3434, %v3433
  %3451 = vmatprep.subr.bf16.mxu0 0
  %3452 = vmatpush1.bf16.msra.mxu0 %v3442
  %3453 = vmatprep.subr.bf16.mxu0 0
  %3454 = vmatpush1.bf16.msra.mxu0 %v3441
  %3455 = vmatprep.subr.bf16.mxu0 0
  %3456 = vmatpush1.bf16.msra.mxu0 %v3440
  %3457 = vmatprep.subr.bf16.mxu0 0
  %3458 = vmatpush1.bf16.msra.mxu0 %v3439
  %3459 = vmatprep.subr.bf16.mxu0 0
  %3460 = vmatpush1.bf16.msra.mxu0 %v3438
  %3461 = vmatprep.subr.bf16.mxu0 0
  %3462 = vmatpush1.bf16.msra.mxu0 %v3437
  %3463 = vmatprep.subr.bf16.mxu0 0
  %3464 = vmatpush1.bf16.msra.mxu0 %v3436
  %3465 = vmatprep.subr.bf16.mxu0 0
  %3466 = vmatpush1.bf16.msra.mxu0 %v3435
  %3467 = vmatprep.subr.bf16.mxu0 0
  %3468 = vmatpush2.bf16.msra.mxu0 0
  %3469 = vmatprep.subr.bf16.mxu0 0
  %3470 = vmatpush2.bf16.msra.mxu0 0
  %3471 = vmatprep.subr.bf16.mxu0 0
  %3472 = vmatpush2.bf16.msra.mxu0 0
  %3473 = vmatprep.subr.bf16.mxu0 0
  %3474 = vmatpush2.bf16.msra.mxu0 0
  %3475 = vmatprep.subr.bf16.mxu0 0
  %3476 = vmatpush2.bf16.msra.mxu0 0
  %3477 = vmatprep.subr.bf16.mxu0 0
  %3478 = vmatpush2.bf16.msra.mxu0 0
  %3479 = vmatprep.subr.bf16.mxu0 0
  %3480 = vmatpush2.bf16.msra.mxu0 0
  %3481 = vmatprep.subr.bf16.mxu0 0
  %3482 = vmatpush2.bf16.msra.mxu0 0
  %3483 = vmatprep.mubr.bf16.mxu0 0
  %3484 = vmatmul.mubr.bf16.gmra.mxu0 %v3379
  %v3485 = vpop.f32.mrf.mxu0
  %v3486 = vadd.f32 %v3401, %v3485
  %v3487 = vpop.f32.mrf.mxu0
  %v3488 = vpop.f32.mrf.mxu0
  %v3489 = vadd.f32 %v3401, %v3488
  %v3490 = vpop.f32.mrf.mxu0
  %3491 = vdwg.mxu0
  %v3492 = vlaneseq
  %v3493 = vand.u32 %v3492, 127
  %vm3494 = vcmp.lt.s32.totalorder %v3493, 10
  %v3495 = vsel %vm3494, %v3486, -1e+30
  %v3496 = vsel %vm3494, %v3489, -1e+30
  %3497 = vmax.xlane.f32.xlu0 %v3495
  %v3498 = vpop.xlane.xlu0 %3497
  %3499 = vmax.xlane.f32.xlu0 %v3496
  %v3500 = vpop.xlane.xlu0 %3499
  %v3501 = vsub.f32 %v3495, %v3498
  %v3502 = vsub.f32 %v3496, %v3500
  %v3503 = vmul.f32 %v3501, 1.442695
  %v3504 = vpow.pop %v3503
  %v3505 = vmul.f32 %v3502, 1.442695
  %v3506 = vpow.pop %v3505
  %3507 = vadd.xlane.f32.xlu0 %v3504
  %v3508 = vpop.xlane.xlu0 %3507
  %3509 = vadd.xlane.f32.xlu0 %v3506
  %v3510 = vpop.xlane.xlu0 %3509
  %v3511 = vlog2.pop %v3508
  %v3512 = vmul.f32 %v3511, 0.6931472
  %v3513 = vlog2.pop %v3510
  %v3514 = vmul.f32 %v3513, 0.6931472
  %v3515 = vadd.f32 %v3512, %v3498
  %v3516 = vadd.f32 %v3514, %v3500
  %v3517 = vsub.f32 %v3486, %v3515
  %v3518 = vsub.f32 %v3489, %v3516
  %3519 = vst [vmem:[%s9] sm:$0xff] %v3517
  %3520 = vst [vmem:[%s9 + $0x8] sm:$0xff] %v3518
  // Predicated region
  $region38: #{net_forward.1} parent=0 // pred_check
    _
  $region39: #{net_forward.1} parent=0 // pred_check_branch
    %3522 = sbr.rel (0) target = $region41
  $region40: #{net_forward.1} parent=0 // pred_region
    _
  $region41: #{net_forward.1} parent=0 // pred_fallthru
    _
  // Predicated region
  $region42: #{net_forward.1} parent=0 // pred_check
    _
  $region43: #{net_forward.1} parent=0 // pred_check_branch
    %3524 = sbr.rel (0) target = $region45
  $region44: #{net_forward.1} parent=0 // pred_region
    _
  $region45: #{net_forward.1} parent=0 // pred_fallthru
    _

</llo_original>
